<compile_context>
chip_gen: v7x
topology: tpu7x:2x2x1
jax: 0.10.0
libtpu: 0.0.40
codegen_flags: <defaults>
</compile_context>

<pallas_src>
import functools

import jax
import jax.numpy as jnp
from jax import lax
from jax.experimental import pallas as pl
from jax.experimental.pallas import tpu as pltpu

LN_EPS = 1e-5
TB = 8          # GRU timestep block (sublane-aligned loads/stores)


def memory_gru_kernel(x_ref,                      # (B_blk, C, S_pad) channel-major
                      wih_ref, whh_ref, bih_ref, bhh_ref,
                      wgc_ref, bgc_ref,
                      mem_ref,                    # (S_pad, C) precomputed memory read
                      wqkv_ref, bqkv_ref,         # fused q/k/v projection
                      wo_ref, bo_ref,
                      lnw_ref, lnb_ref,           # (S_pad, C) pre-broadcast LN params
                      out_ref,                    # (B_blk, C, S_pad)
                      gx_scratch, hist_scratch,
                      *, s_real):
    f32 = jnp.float32
    Bb, C, Sp = x_ref.shape
    Hd = whh_ref.shape[0]

    x_cs = x_ref[...]                                    # (Bb, C, Sp)
    x_sc = jnp.transpose(x_cs, (0, 2, 1))                # (Bb, Sp, C)

    # ---- GRU: input-to-hidden projections for every (batch, timestep) at once ----
    gx = jnp.dot(x_sc.reshape(Bb * Sp, C), wih_ref[...],
                 preferred_element_type=f32) + bih_ref[...]        # (Bb*Sp, 3Hd)
    gx_scratch[...] = gx.reshape(Bb, Sp, 3 * Hd)

    w_hh = whh_ref[...]                                   # hoisted loop invariants
    b_hh = bhh_ref[...]

    # ---- GRU recurrence, batched over B_blk, processed in aligned 8-step blocks.
    # (GRU is causal, so running over the zero-padded extra timesteps does not
    #  affect the first s_real outputs.)
    def gru_block(i, h):
        t0 = pl.multiple_of(i * TB, TB)
        gx_blk = gx_scratch[:, pl.ds(t0, TB), :]          # (Bb, TB, 3Hd) aligned load
        hs = []
        for j in range(TB):                               # unrolled inner loop
            gx_t = gx_blk[:, j, :]                        # (Bb, 3Hd) static slice
            gh = jnp.dot(h, w_hh, preferred_element_type=f32) + b_hh
            r = jax.nn.sigmoid(gx_t[:, 0 * Hd:1 * Hd] + gh[:, 0 * Hd:1 * Hd])
            z = jax.nn.sigmoid(gx_t[:, 1 * Hd:2 * Hd] + gh[:, 1 * Hd:2 * Hd])
            n = jnp.tanh(gx_t[:, 2 * Hd:3 * Hd] + r * gh[:, 2 * Hd:3 * Hd])
            h = (1.0 - z) * n + z * h
            hs.append(h)
        hist_scratch[:, pl.ds(t0, TB), :] = jnp.stack(hs, axis=1)  # aligned store
        return h

    h0 = jnp.zeros((Bb, Hd), dtype=f32)
    lax.fori_loop(0, Sp // TB, gru_block, h0)

    hist = hist_scratch[...]                              # (Bb, Sp, Hd)

    # ---- gru_to_channel linear + (hoisted) memory read ----
    gru_ch = (jnp.dot(hist.reshape(Bb * Sp, Hd), wgc_ref[...],
                      preferred_element_type=f32) + bgc_ref[...]).reshape(Bb, Sp, C)
    combined = gru_ch + mem_ref[...][None]                # (Bb, Sp, C)

    # ---- single-head self-attention, fused q/k/v projection ----
    qkv = (jnp.dot(combined.reshape(Bb * Sp, C), wqkv_ref[...],
                   preferred_element_type=f32) + bqkv_ref[...]).reshape(Bb, Sp, 3 * C)
    q = qkv[..., 0 * C:1 * C]
    k = qkv[..., 1 * C:2 * C]
    v = qkv[..., 2 * C:3 * C]

    scale = 1.0 / (float(C) ** 0.5)                       # head_dim == C (num_heads=1)
    scores = jnp.einsum('bqc,bkc->bqk', q * scale, k,
                        preferred_element_type=f32)       # (Bb, Sp, Sp)
    col_ids = lax.broadcasted_iota(jnp.int32, (1, 1, Sp), 2)
    scores = jnp.where(col_ids < s_real, scores, -1e30)   # mask pad key columns
    m = jnp.max(scores, axis=-1, keepdims=True)
    p = jnp.exp(scores - m)
    denom = jnp.sum(p, axis=-1, keepdims=True)
    attn = jnp.einsum('bqk,bkc->bqc', p, v, preferred_element_type=f32)
    attn = attn * pl.reciprocal(denom, approx=True)       # EUP reciprocal
    attn = (jnp.dot(attn.reshape(Bb * Sp, C), wo_ref[...],
                    preferred_element_type=f32) + bo_ref[...]).reshape(Bb, Sp, C)

    # ---- LayerNorm([11, 11]): normalize over spatial axis per (batch, channel),
    #      excluding the pad rows from the statistics ----
    row_mask = lax.broadcasted_iota(jnp.int32, (1, Sp, 1), 1) < s_real
    inv_n = 1.0 / float(s_real)
    mu = jnp.sum(jnp.where(row_mask, attn, 0.0), axis=1, keepdims=True) * inv_n
    diff = jnp.where(row_mask, attn - mu, 0.0)
    var = jnp.sum(diff * diff, axis=1, keepdims=True) * inv_n
    normed = (attn - mu) * lax.rsqrt(var + LN_EPS)
    normed = normed * lnw_ref[...][None] + lnb_ref[...][None]

    # dropout (p=0.1): identity in eval mode.
    # Lane-dense channel-major store (last dim = S_pad = 128) + residual.
    out_ref[...] = jnp.transpose(normed, (0, 2, 1)) + x_cs


def memory_gru_forward(x_nchw, p, *, batch_block=None):
    B, C, H, W = x_nchw.shape
    S = H * W
    S_pad = ((S + 127) // 128) * 128                      # 121 -> 128
    d_model = p["w_hh"].shape[0]

    # Batch block size: whole batch in one block for small B (single TC, plenty
    # of VMEM); for large B on v7x pick a divisor of B so the grid keeps both
    # TensorCores busy.
    b_blk = B if batch_block is None else batch_block
    assert B % b_blk == 0, "batch_block must divide batch size"

    # Channel-major (lane-dense) input, spatial padded to 128.
    x_cs = jnp.pad(x_nchw.reshape(B, C, S), ((0, 0), (0, 0), (0, S_pad - S)))

    # Hoisted batch-invariant memory read.
    mem_out = jnp.dot(p["memory"][:S], p["w_mr"]) + p["b_mr"]           # (S, C)
    mem_out = jnp.pad(mem_out, ((0, S_pad - S), (0, 0)))

    # Fused q/k/v projection weights.
    w_qkv = jnp.concatenate([p["w_q"], p["w_k"], p["w_v"]], axis=1)     # (C, 3C)
    b_qkv = jnp.concatenate([p["b_q"], p["b_k"], p["b_v"]], axis=1)     # (1, 3C)

    # LayerNorm params pre-broadcast to (S_pad, C).
    ln_w = jnp.broadcast_to(jnp.pad(p["ln_w"], (0, S_pad - S))[:, None], (S_pad, C))
    ln_b = jnp.broadcast_to(jnp.pad(p["ln_b"], (0, S_pad - S))[:, None], (S_pad, C))

    inputs = [x_cs,
              p["w_ih"], p["w_hh"], p["b_ih"], p["b_hh"],
              p["w_gc"], p["b_gc"],
              mem_out,
              w_qkv, b_qkv,
              p["w_o"], p["b_o"],
              ln_w, ln_b]

    def const_spec(a):
        return pl.BlockSpec(a.shape, lambda b: (0,) * a.ndim)

    in_specs = [pl.BlockSpec((b_blk, C, S_pad), lambda b: (b, 0, 0))]
    in_specs += [const_spec(a) for a in inputs[1:]]

    kernel = functools.partial(memory_gru_kernel, s_real=S)

    out_cs = pl.pallas_call(
        kernel,
        out_shape=jax.ShapeDtypeStruct((B, C, S_pad), jnp.float32),
        grid=(B // b_blk,),
        in_specs=in_specs,
        out_specs=pl.BlockSpec((b_blk, C, S_pad), lambda b: (b, 0, 0)),
        scratch_shapes=[
            pltpu.VMEM((b_blk, S_pad, 3 * d_model), jnp.float32),   # gate projections
            pltpu.VMEM((b_blk, S_pad, d_model), jnp.float32),       # GRU hidden history
        ],
        compiler_params=pltpu.CompilerParams(
            dimension_semantics=("parallel",)),
    )(*inputs)

    return out_cs[:, :, :S].reshape(B, C, H, W)


def init_params(key, channel_size, d_model, memory_size, S):
    keys = jax.random.split(key, 18)

    def u(k, shape, scale=0.1):
        return jax.random.uniform(k, shape, jnp.float32, -scale, scale)

    p = {}
    # GRU (weights stored pre-transposed so the kernel does x @ W); gate order [r, z, n]
    p["w_ih"] = u(keys[0], (channel_size, 3 * d_model))
    p["w_hh"] = u(keys[1], (d_model, 3 * d_model))
    p["b_ih"] = u(keys[2], (1, 3 * d_model))
    p["b_hh"] = u(keys[3], (1, 3 * d_model))
    # gru_to_channel
    p["w_gc"] = u(keys[4], (d_model, channel_size))
    p["b_gc"] = u(keys[5], (1, channel_size))
    # memory + memory_read
    p["memory"] = jax.random.normal(keys[6], (memory_size, d_model), jnp.float32)
    p["w_mr"] = u(keys[7], (d_model, channel_size))
    p["b_mr"] = u(keys[8], (1, channel_size))
    # MultiheadAttention (in_proj split into q/k/v, out_proj)
    p["w_q"] = u(keys[9], (channel_size, channel_size))
    p["b_q"] = u(keys[10], (1, channel_size))
    p["w_k"] = u(keys[11], (channel_size, channel_size))
    p["b_k"] = u(keys[12], (1, channel_size))
    p["w_v"] = u(keys[13], (channel_size, channel_size))
    p["b_v"] = u(keys[14], (1, channel_size))
    p["w_o"] = u(keys[15], (channel_size, channel_size))
    p["b_o"] = u(keys[16], (1, channel_size))
    # LayerNorm([11, 11]) default init, flattened row-major to (S,)
    p["ln_w"] = jnp.ones((S,), jnp.float32)
    p["ln_b"] = jnp.zeros((S,), jnp.float32)
    return p


if __name__ == "__main__":
    channel_size = 4
    d_model = 32
    memory_size = 128           # must be >= H*W = 121
    B, H, W = 2, 11, 11         # LayerNorm([11, 11]) pins the spatial dims to 11x11

    key = jax.random.PRNGKey(0)
    kx, kp = jax.random.split(key)
    x = jax.random.normal(kx, (B, channel_size, H, W), jnp.float32)
    params = init_params(kp, channel_size, d_model, memory_size, H * W)

    out = memory_gru_forward(x, params)
    out = jax.block_until_ready(out)
    assert out.shape == (B, channel_size, H, W)
    assert jnp.all(jnp.isfinite(out))
    print("KERNEL_OK")
</pallas_src>

<mosaic_0001>
module attributes {stable_mosaic.version = 11 : i64} {
  func.func @memory_gru_kernel(%arg0: i32, %arg1: memref<2x4x128xf32, #tpu.memory_space<vmem>>, %arg2: memref<4x96xf32, #tpu.memory_space<vmem>>, %arg3: memref<32x96xf32, #tpu.memory_space<vmem>>, %arg4: memref<1x96xf32, #tpu.memory_space<vmem>>, %arg5: memref<1x96xf32, #tpu.memory_space<vmem>>, %arg6: memref<32x4xf32, #tpu.memory_space<vmem>>, %arg7: memref<1x4xf32, #tpu.memory_space<vmem>>, %arg8: memref<128x4xf32, #tpu.memory_space<vmem>>, %arg9: memref<4x12xf32, #tpu.memory_space<vmem>>, %arg10: memref<1x12xf32, #tpu.memory_space<vmem>>, %arg11: memref<4x4xf32, #tpu.memory_space<vmem>>, %arg12: memref<1x4xf32, #tpu.memory_space<vmem>>, %arg13: memref<128x4xf32, #tpu.memory_space<vmem>>, %arg14: memref<128x4xf32, #tpu.memory_space<vmem>>, %arg15: memref<2x4x128xf32, #tpu.memory_space<vmem>>, %arg16: memref<2x128x96xf32, #tpu.memory_space<vmem>>, %arg17: memref<2x128x32xf32, #tpu.memory_space<vmem>>) attributes {dimension_semantics = [#tpu.dimension_semantics<parallel>], iteration_bounds = array<i64: 1>, scalar_prefetch = 0 : i64, scratch_operands = 2 : i64, tpu.core_type = #tpu.core_type<tc>, window_params = [{transform_indices = @transform_0, window_bounds = array<i64: 2, 4, 128>}, {pipeline_mode = #tpu.pipeline_mode<synchronous>, transform_indices = @transform_1, window_bounds = array<i64: 4, 96>}, {pipeline_mode = #tpu.pipeline_mode<synchronous>, transform_indices = @transform_2, window_bounds = array<i64: 32, 96>}, {pipeline_mode = #tpu.pipeline_mode<synchronous>, transform_indices = @transform_3, window_bounds = array<i64: 1, 96>}, {pipeline_mode = #tpu.pipeline_mode<synchronous>, transform_indices = @transform_4, window_bounds = array<i64: 1, 96>}, {pipeline_mode = #tpu.pipeline_mode<synchronous>, transform_indices = @transform_5, window_bounds = array<i64: 32, 4>}, {pipeline_mode = #tpu.pipeline_mode<synchronous>, transform_indices = @transform_6, window_bounds = array<i64: 1, 4>}, {pipeline_mode = #tpu.pipeline_mode<synchronous>, transform_indices = @transform_7, window_bounds = array<i64: 128, 4>}, {pipeline_mode = #tpu.pipeline_mode<synchronous>, transform_indices = @transform_8, window_bounds = array<i64: 4, 12>}, {pipeline_mode = #tpu.pipeline_mode<synchronous>, transform_indices = @transform_9, window_bounds = array<i64: 1, 12>}, {pipeline_mode = #tpu.pipeline_mode<synchronous>, transform_indices = @transform_10, window_bounds = array<i64: 4, 4>}, {pipeline_mode = #tpu.pipeline_mode<synchronous>, transform_indices = @transform_11, window_bounds = array<i64: 1, 4>}, {pipeline_mode = #tpu.pipeline_mode<synchronous>, transform_indices = @transform_12, window_bounds = array<i64: 128, 4>}, {pipeline_mode = #tpu.pipeline_mode<synchronous>, transform_indices = @transform_13, window_bounds = array<i64: 128, 4>}, {transform_indices = @transform_14, window_bounds = array<i64: 2, 4, 128>}]} {
    %c0 = arith.constant 0 : index
    %c0_0 = arith.constant 0 : index
    %c0_1 = arith.constant 0 : index
    %0 = vector.load %arg1[%c0, %c0_0, %c0_1] : memref<2x4x128xf32, #tpu.memory_space<vmem>>, vector<2x4x128xf32>
    %1 = tpu.transpose %0, [0, 2, 1] : vector<2x4x128xf32> -> vector<2x128x4xf32>
    %2 = vector.shape_cast %1 : vector<2x128x4xf32> to vector<256x4xf32>
    %c0_2 = arith.constant 0 : index
    %c0_3 = arith.constant 0 : index
    %3 = vector.load %arg2[%c0_2, %c0_3] : memref<4x96xf32, #tpu.memory_space<vmem>>, vector<4x96xf32>
    %cst = arith.constant dense<0.000000e+00> : vector<256x96xf32>
    %4 = tpu.matmul %2, %3, %cst {dimension_numbers = #tpu.dot_dimension_numbers<[1], [0], [0], [1], [0, 0, 1, 1], [], []>} : vector<256x4xf32>, vector<4x96xf32>, vector<256x96xf32> -> vector<256x96xf32>
    %c0_4 = arith.constant 0 : index
    %c0_5 = arith.constant 0 : index
    %5 = vector.load %arg4[%c0_4, %c0_5] : memref<1x96xf32, #tpu.memory_space<vmem>>, vector<1x96xf32>
    %6 = vector.broadcast %5 : vector<1x96xf32> to vector<256x96xf32>
    %7 = arith.addf %4, %6 : vector<256x96xf32>
    %8 = vector.shape_cast %7 : vector<256x96xf32> to vector<2x128x96xf32>
    %c0_6 = arith.constant 0 : index
    %c0_7 = arith.constant 0 : index
    %c0_8 = arith.constant 0 : index
    %9 = vector.load %arg16[%c0_6, %c0_7, %c0_8] : memref<2x128x96xf32, #tpu.memory_space<vmem>>, vector<2x128x96xf32>
    tpu.vector_store %arg16[%c0_6, %c0_7, %c0_8], %8 {strides = array<i32>} : memref<2x128x96xf32, #tpu.memory_space<vmem>>, vector<2x128x96xf32>,
    %c0_9 = arith.constant 0 : index
    %c0_10 = arith.constant 0 : index
    %10 = vector.load %arg3[%c0_9, %c0_10] : memref<32x96xf32, #tpu.memory_space<vmem>>, vector<32x96xf32>
    %c0_11 = arith.constant 0 : index
    %c0_12 = arith.constant 0 : index
    %11 = vector.load %arg5[%c0_11, %c0_12] : memref<1x96xf32, #tpu.memory_space<vmem>>, vector<1x96xf32>
    %cst_13 = arith.constant 0.000000e+00 : f32
    %12 = vector.broadcast %cst_13 : f32 to vector<2x32xf32>
    %c0_i32 = arith.constant 0 : i32
    %c16_i32 = arith.constant 16 : i32
    %13 = arith.addi %c0_i32, %c16_i32 : i32
    %c1_i32 = arith.constant 1 : i32
    %14 = scf.for %arg18 = %c0_i32 to %13 step %c1_i32 iter_args(%arg19 = %12) -> (vector<2x32xf32>)  : i32 {
      %c8_i32 = arith.constant 8 : i32
      %105 = arith.muli %arg18, %c8_i32 : i32
      %106 = tpu.assume_multiple %105, 8 : i32
      %c0_56 = arith.constant 0 : index
      %107 = arith.index_cast %106 : i32 to index
      %c0_57 = arith.constant 0 : index
      %108 = vector.load %arg16[%c0_56, %107, %c0_57] : memref<2x128x96xf32, #tpu.memory_space<vmem>>, vector<2x8x96xf32>
      %109 = vector.extract_strided_slice %108 {offsets = [0, 0, 0], sizes = [2, 1, 96], strides = [1, 1, 1]} : vector<2x8x96xf32> to vector<2x1x96xf32>
      %110 = vector.shape_cast %109 : vector<2x1x96xf32> to vector<2x96xf32>
      %cst_58 = arith.constant dense<0.000000e+00> : vector<2x96xf32>
      %111 = tpu.matmul %arg19, %10, %cst_58 {dimension_numbers = #tpu.dot_dimension_numbers<[1], [0], [0], [1], [0, 0, 1, 1], [], []>} : vector<2x32xf32>, vector<32x96xf32>, vector<2x96xf32> -> vector<2x96xf32>
      %112 = vector.broadcast %11 : vector<1x96xf32> to vector<2x96xf32>
      %113 = arith.addf %111, %112 : vector<2x96xf32>
      %114 = vector.extract_strided_slice %110 {offsets = [0, 0], sizes = [2, 32], strides = [1, 1]} : vector<2x96xf32> to vector<2x32xf32>
      %115 = vector.extract_strided_slice %113 {offsets = [0, 0], sizes = [2, 32], strides = [1, 1]} : vector<2x96xf32> to vector<2x32xf32>
      %116 = arith.addf %114, %115 : vector<2x32xf32>
      %117 = arith.negf %116 : vector<2x32xf32>
      %118 = math.exp %117 : vector<2x32xf32>
      %cst_59 = arith.constant 1.000000e+00 : f32
      %119 = vector.broadcast %cst_59 : f32 to vector<2x32xf32>
      %120 = arith.addf %119, %118 : vector<2x32xf32>
      %121 = arith.divf %119, %120 : vector<2x32xf32>
      %122 = vector.extract_strided_slice %110 {offsets = [0, 32], sizes = [2, 32], strides = [1, 1]} : vector<2x96xf32> to vector<2x32xf32>
      %123 = vector.extract_strided_slice %113 {offsets = [0, 32], sizes = [2, 32], strides = [1, 1]} : vector<2x96xf32> to vector<2x32xf32>
      %124 = arith.addf %122, %123 : vector<2x32xf32>
      %125 = arith.negf %124 : vector<2x32xf32>
      %126 = math.exp %125 : vector<2x32xf32>
      %cst_60 = arith.constant 1.000000e+00 : f32
      %127 = vector.broadcast %cst_60 : f32 to vector<2x32xf32>
      %128 = arith.addf %127, %126 : vector<2x32xf32>
      %129 = arith.divf %127, %128 : vector<2x32xf32>
      %130 = vector.extract_strided_slice %110 {offsets = [0, 64], sizes = [2, 32], strides = [1, 1]} : vector<2x96xf32> to vector<2x32xf32>
      %131 = vector.extract_strided_slice %113 {offsets = [0, 64], sizes = [2, 32], strides = [1, 1]} : vector<2x96xf32> to vector<2x32xf32>
      %132 = arith.mulf %121, %131 : vector<2x32xf32>
      %133 = arith.addf %130, %132 : vector<2x32xf32>
      %134 = math.tanh %133 : vector<2x32xf32>
      %cst_61 = arith.constant 1.000000e+00 : f32
      %135 = vector.broadcast %cst_61 : f32 to vector<2x32xf32>
      %136 = arith.subf %135, %129 : vector<2x32xf32>
      %137 = arith.mulf %136, %134 : vector<2x32xf32>
      %138 = arith.mulf %129, %arg19 : vector<2x32xf32>
      %139 = arith.addf %137, %138 : vector<2x32xf32>
      %140 = vector.extract_strided_slice %108 {offsets = [0, 1, 0], sizes = [2, 1, 96], strides = [1, 1, 1]} : vector<2x8x96xf32> to vector<2x1x96xf32>
      %141 = vector.shape_cast %140 : vector<2x1x96xf32> to vector<2x96xf32>
      %cst_62 = arith.constant dense<0.000000e+00> : vector<2x96xf32>
      %142 = tpu.matmul %139, %10, %cst_62 {dimension_numbers = #tpu.dot_dimension_numbers<[1], [0], [0], [1], [0, 0, 1, 1], [], []>} : vector<2x32xf32>, vector<32x96xf32>, vector<2x96xf32> -> vector<2x96xf32>
      %143 = vector.broadcast %11 : vector<1x96xf32> to vector<2x96xf32>
      %144 = arith.addf %142, %143 : vector<2x96xf32>
      %145 = vector.extract_strided_slice %141 {offsets = [0, 0], sizes = [2, 32], strides = [1, 1]} : vector<2x96xf32> to vector<2x32xf32>
      %146 = vector.extract_strided_slice %144 {offsets = [0, 0], sizes = [2, 32], strides = [1, 1]} : vector<2x96xf32> to vector<2x32xf32>
      %147 = arith.addf %145, %146 : vector<2x32xf32>
      %148 = arith.negf %147 : vector<2x32xf32>
      %149 = math.exp %148 : vector<2x32xf32>
      %cst_63 = arith.constant 1.000000e+00 : f32
      %150 = vector.broadcast %cst_63 : f32 to vector<2x32xf32>
      %151 = arith.addf %150, %149 : vector<2x32xf32>
      %152 = arith.divf %150, %151 : vector<2x32xf32>
      %153 = vector.extract_strided_slice %141 {offsets = [0, 32], sizes = [2, 32], strides = [1, 1]} : vector<2x96xf32> to vector<2x32xf32>
      %154 = vector.extract_strided_slice %144 {offsets = [0, 32], sizes = [2, 32], strides = [1, 1]} : vector<2x96xf32> to vector<2x32xf32>
      %155 = arith.addf %153, %154 : vector<2x32xf32>
      %156 = arith.negf %155 : vector<2x32xf32>
      %157 = math.exp %156 : vector<2x32xf32>
      %cst_64 = arith.constant 1.000000e+00 : f32
      %158 = vector.broadcast %cst_64 : f32 to vector<2x32xf32>
      %159 = arith.addf %158, %157 : vector<2x32xf32>
      %160 = arith.divf %158, %159 : vector<2x32xf32>
      %161 = vector.extract_strided_slice %141 {offsets = [0, 64], sizes = [2, 32], strides = [1, 1]} : vector<2x96xf32> to vector<2x32xf32>
      %162 = vector.extract_strided_slice %144 {offsets = [0, 64], sizes = [2, 32], strides = [1, 1]} : vector<2x96xf32> to vector<2x32xf32>
      %163 = arith.mulf %152, %162 : vector<2x32xf32>
      %164 = arith.addf %161, %163 : vector<2x32xf32>
      %165 = math.tanh %164 : vector<2x32xf32>
      %cst_65 = arith.constant 1.000000e+00 : f32
      %166 = vector.broadcast %cst_65 : f32 to vector<2x32xf32>
      %167 = arith.subf %166, %160 : vector<2x32xf32>
      %168 = arith.mulf %167, %165 : vector<2x32xf32>
      %169 = arith.mulf %160, %139 : vector<2x32xf32>
      %170 = arith.addf %168, %169 : vector<2x32xf32>
      %171 = vector.extract_strided_slice %108 {offsets = [0, 2, 0], sizes = [2, 1, 96], strides = [1, 1, 1]} : vector<2x8x96xf32> to vector<2x1x96xf32>
      %172 = vector.shape_cast %171 : vector<2x1x96xf32> to vector<2x96xf32>
      %cst_66 = arith.constant dense<0.000000e+00> : vector<2x96xf32>
      %173 = tpu.matmul %170, %10, %cst_66 {dimension_numbers = #tpu.dot_dimension_numbers<[1], [0], [0], [1], [0, 0, 1, 1], [], []>} : vector<2x32xf32>, vector<32x96xf32>, vector<2x96xf32> -> vector<2x96xf32>
      %174 = vector.broadcast %11 : vector<1x96xf32> to vector<2x96xf32>
      %175 = arith.addf %173, %174 : vector<2x96xf32>
      %176 = vector.extract_strided_slice %172 {offsets = [0, 0], sizes = [2, 32], strides = [1, 1]} : vector<2x96xf32> to vector<2x32xf32>
      %177 = vector.extract_strided_slice %175 {offsets = [0, 0], sizes = [2, 32], strides = [1, 1]} : vector<2x96xf32> to vector<2x32xf32>
      %178 = arith.addf %176, %177 : vector<2x32xf32>
      %179 = arith.negf %178 : vector<2x32xf32>
      %180 = math.exp %179 : vector<2x32xf32>
      %cst_67 = arith.constant 1.000000e+00 : f32
      %181 = vector.broadcast %cst_67 : f32 to vector<2x32xf32>
      %182 = arith.addf %181, %180 : vector<2x32xf32>
      %183 = arith.divf %181, %182 : vector<2x32xf32>
      %184 = vector.extract_strided_slice %172 {offsets = [0, 32], sizes = [2, 32], strides = [1, 1]} : vector<2x96xf32> to vector<2x32xf32>
      %185 = vector.extract_strided_slice %175 {offsets = [0, 32], sizes = [2, 32], strides = [1, 1]} : vector<2x96xf32> to vector<2x32xf32>
      %186 = arith.addf %184, %185 : vector<2x32xf32>
      %187 = arith.negf %186 : vector<2x32xf32>
      %188 = math.exp %187 : vector<2x32xf32>
      %cst_68 = arith.constant 1.000000e+00 : f32
      %189 = vector.broadcast %cst_68 : f32 to vector<2x32xf32>
      %190 = arith.addf %189, %188 : vector<2x32xf32>
      %191 = arith.divf %189, %190 : vector<2x32xf32>
      %192 = vector.extract_strided_slice %172 {offsets = [0, 64], sizes = [2, 32], strides = [1, 1]} : vector<2x96xf32> to vector<2x32xf32>
      %193 = vector.extract_strided_slice %175 {offsets = [0, 64], sizes = [2, 32], strides = [1, 1]} : vector<2x96xf32> to vector<2x32xf32>
      %194 = arith.mulf %183, %193 : vector<2x32xf32>
      %195 = arith.addf %192, %194 : vector<2x32xf32>
      %196 = math.tanh %195 : vector<2x32xf32>
      %cst_69 = arith.constant 1.000000e+00 : f32
      %197 = vector.broadcast %cst_69 : f32 to vector<2x32xf32>
      %198 = arith.subf %197, %191 : vector<2x32xf32>
      %199 = arith.mulf %198, %196 : vector<2x32xf32>
      %200 = arith.mulf %191, %170 : vector<2x32xf32>
      %201 = arith.addf %199, %200 : vector<2x32xf32>
      %202 = vector.extract_strided_slice %108 {offsets = [0, 3, 0], sizes = [2, 1, 96], strides = [1, 1, 1]} : vector<2x8x96xf32> to vector<2x1x96xf32>
      %203 = vector.shape_cast %202 : vector<2x1x96xf32> to vector<2x96xf32>
      %cst_70 = arith.constant dense<0.000000e+00> : vector<2x96xf32>
      %204 = tpu.matmul %201, %10, %cst_70 {dimension_numbers = #tpu.dot_dimension_numbers<[1], [0], [0], [1], [0, 0, 1, 1], [], []>} : vector<2x32xf32>, vector<32x96xf32>, vector<2x96xf32> -> vector<2x96xf32>
      %205 = vector.broadcast %11 : vector<1x96xf32> to vector<2x96xf32>
      %206 = arith.addf %204, %205 : vector<2x96xf32>
      %207 = vector.extract_strided_slice %203 {offsets = [0, 0], sizes = [2, 32], strides = [1, 1]} : vector<2x96xf32> to vector<2x32xf32>
      %208 = vector.extract_strided_slice %206 {offsets = [0, 0], sizes = [2, 32], strides = [1, 1]} : vector<2x96xf32> to vector<2x32xf32>
      %209 = arith.addf %207, %208 : vector<2x32xf32>
      %210 = arith.negf %209 : vector<2x32xf32>
      %211 = math.exp %210 : vector<2x32xf32>
      %cst_71 = arith.constant 1.000000e+00 : f32
      %212 = vector.broadcast %cst_71 : f32 to vector<2x32xf32>
      %213 = arith.addf %212, %211 : vector<2x32xf32>
      %214 = arith.divf %212, %213 : vector<2x32xf32>
      %215 = vector.extract_strided_slice %203 {offsets = [0, 32], sizes = [2, 32], strides = [1, 1]} : vector<2x96xf32> to vector<2x32xf32>
      %216 = vector.extract_strided_slice %206 {offsets = [0, 32], sizes = [2, 32], strides = [1, 1]} : vector<2x96xf32> to vector<2x32xf32>
      %217 = arith.addf %215, %216 : vector<2x32xf32>
      %218 = arith.negf %217 : vector<2x32xf32>
      %219 = math.exp %218 : vector<2x32xf32>
      %cst_72 = arith.constant 1.000000e+00 : f32
      %220 = vector.broadcast %cst_72 : f32 to vector<2x32xf32>
      %221 = arith.addf %220, %219 : vector<2x32xf32>
      %222 = arith.divf %220, %221 : vector<2x32xf32>
      %223 = vector.extract_strided_slice %203 {offsets = [0, 64], sizes = [2, 32], strides = [1, 1]} : vector<2x96xf32> to vector<2x32xf32>
      %224 = vector.extract_strided_slice %206 {offsets = [0, 64], sizes = [2, 32], strides = [1, 1]} : vector<2x96xf32> to vector<2x32xf32>
      %225 = arith.mulf %214, %224 : vector<2x32xf32>
      %226 = arith.addf %223, %225 : vector<2x32xf32>
      %227 = math.tanh %226 : vector<2x32xf32>
      %cst_73 = arith.constant 1.000000e+00 : f32
      %228 = vector.broadcast %cst_73 : f32 to vector<2x32xf32>
      %229 = arith.subf %228, %222 : vector<2x32xf32>
      %230 = arith.mulf %229, %227 : vector<2x32xf32>
      %231 = arith.mulf %222, %201 : vector<2x32xf32>
      %232 = arith.addf %230, %231 : vector<2x32xf32>
      %233 = vector.extract_strided_slice %108 {offsets = [0, 4, 0], sizes = [2, 1, 96], strides = [1, 1, 1]} : vector<2x8x96xf32> to vector<2x1x96xf32>
      %234 = vector.shape_cast %233 : vector<2x1x96xf32> to vector<2x96xf32>
      %cst_74 = arith.constant dense<0.000000e+00> : vector<2x96xf32>
      %235 = tpu.matmul %232, %10, %cst_74 {dimension_numbers = #tpu.dot_dimension_numbers<[1], [0], [0], [1], [0, 0, 1, 1], [], []>} : vector<2x32xf32>, vector<32x96xf32>, vector<2x96xf32> -> vector<2x96xf32>
      %236 = vector.broadcast %11 : vector<1x96xf32> to vector<2x96xf32>
      %237 = arith.addf %235, %236 : vector<2x96xf32>
      %238 = vector.extract_strided_slice %234 {offsets = [0, 0], sizes = [2, 32], strides = [1, 1]} : vector<2x96xf32> to vector<2x32xf32>
      %239 = vector.extract_strided_slice %237 {offsets = [0, 0], sizes = [2, 32], strides = [1, 1]} : vector<2x96xf32> to vector<2x32xf32>
      %240 = arith.addf %238, %239 : vector<2x32xf32>
      %241 = arith.negf %240 : vector<2x32xf32>
      %242 = math.exp %241 : vector<2x32xf32>
      %cst_75 = arith.constant 1.000000e+00 : f32
      %243 = vector.broadcast %cst_75 : f32 to vector<2x32xf32>
      %244 = arith.addf %243, %242 : vector<2x32xf32>
      %245 = arith.divf %243, %244 : vector<2x32xf32>
      %246 = vector.extract_strided_slice %234 {offsets = [0, 32], sizes = [2, 32], strides = [1, 1]} : vector<2x96xf32> to vector<2x32xf32>
      %247 = vector.extract_strided_slice %237 {offsets = [0, 32], sizes = [2, 32], strides = [1, 1]} : vector<2x96xf32> to vector<2x32xf32>
      %248 = arith.addf %246, %247 : vector<2x32xf32>
      %249 = arith.negf %248 : vector<2x32xf32>
      %250 = math.exp %249 : vector<2x32xf32>
      %cst_76 = arith.constant 1.000000e+00 : f32
      %251 = vector.broadcast %cst_76 : f32 to vector<2x32xf32>
      %252 = arith.addf %251, %250 : vector<2x32xf32>
      %253 = arith.divf %251, %252 : vector<2x32xf32>
      %254 = vector.extract_strided_slice %234 {offsets = [0, 64], sizes = [2, 32], strides = [1, 1]} : vector<2x96xf32> to vector<2x32xf32>
      %255 = vector.extract_strided_slice %237 {offsets = [0, 64], sizes = [2, 32], strides = [1, 1]} : vector<2x96xf32> to vector<2x32xf32>
      %256 = arith.mulf %245, %255 : vector<2x32xf32>
      %257 = arith.addf %254, %256 : vector<2x32xf32>
      %258 = math.tanh %257 : vector<2x32xf32>
      %cst_77 = arith.constant 1.000000e+00 : f32
      %259 = vector.broadcast %cst_77 : f32 to vector<2x32xf32>
      %260 = arith.subf %259, %253 : vector<2x32xf32>
      %261 = arith.mulf %260, %258 : vector<2x32xf32>
      %262 = arith.mulf %253, %232 : vector<2x32xf32>
      %263 = arith.addf %261, %262 : vector<2x32xf32>
      %264 = vector.extract_strided_slice %108 {offsets = [0, 5, 0], sizes = [2, 1, 96], strides = [1, 1, 1]} : vector<2x8x96xf32> to vector<2x1x96xf32>
      %265 = vector.shape_cast %264 : vector<2x1x96xf32> to vector<2x96xf32>
      %cst_78 = arith.constant dense<0.000000e+00> : vector<2x96xf32>
      %266 = tpu.matmul %263, %10, %cst_78 {dimension_numbers = #tpu.dot_dimension_numbers<[1], [0], [0], [1], [0, 0, 1, 1], [], []>} : vector<2x32xf32>, vector<32x96xf32>, vector<2x96xf32> -> vector<2x96xf32>
      %267 = vector.broadcast %11 : vector<1x96xf32> to vector<2x96xf32>
      %268 = arith.addf %266, %267 : vector<2x96xf32>
      %269 = vector.extract_strided_slice %265 {offsets = [0, 0], sizes = [2, 32], strides = [1, 1]} : vector<2x96xf32> to vector<2x32xf32>
      %270 = vector.extract_strided_slice %268 {offsets = [0, 0], sizes = [2, 32], strides = [1, 1]} : vector<2x96xf32> to vector<2x32xf32>
      %271 = arith.addf %269, %270 : vector<2x32xf32>
      %272 = arith.negf %271 : vector<2x32xf32>
      %273 = math.exp %272 : vector<2x32xf32>
      %cst_79 = arith.constant 1.000000e+00 : f32
      %274 = vector.broadcast %cst_79 : f32 to vector<2x32xf32>
      %275 = arith.addf %274, %273 : vector<2x32xf32>
      %276 = arith.divf %274, %275 : vector<2x32xf32>
      %277 = vector.extract_strided_slice %265 {offsets = [0, 32], sizes = [2, 32], strides = [1, 1]} : vector<2x96xf32> to vector<2x32xf32>
      %278 = vector.extract_strided_slice %268 {offsets = [0, 32], sizes = [2, 32], strides = [1, 1]} : vector<2x96xf32> to vector<2x32xf32>
      %279 = arith.addf %277, %278 : vector<2x32xf32>
      %280 = arith.negf %279 : vector<2x32xf32>
      %281 = math.exp %280 : vector<2x32xf32>
      %cst_80 = arith.constant 1.000000e+00 : f32
      %282 = vector.broadcast %cst_80 : f32 to vector<2x32xf32>
      %283 = arith.addf %282, %281 : vector<2x32xf32>
      %284 = arith.divf %282, %283 : vector<2x32xf32>
      %285 = vector.extract_strided_slice %265 {offsets = [0, 64], sizes = [2, 32], strides = [1, 1]} : vector<2x96xf32> to vector<2x32xf32>
      %286 = vector.extract_strided_slice %268 {offsets = [0, 64], sizes = [2, 32], strides = [1, 1]} : vector<2x96xf32> to vector<2x32xf32>
      %287 = arith.mulf %276, %286 : vector<2x32xf32>
      %288 = arith.addf %285, %287 : vector<2x32xf32>
      %289 = math.tanh %288 : vector<2x32xf32>
      %cst_81 = arith.constant 1.000000e+00 : f32
      %290 = vector.broadcast %cst_81 : f32 to vector<2x32xf32>
      %291 = arith.subf %290, %284 : vector<2x32xf32>
      %292 = arith.mulf %291, %289 : vector<2x32xf32>
      %293 = arith.mulf %284, %263 : vector<2x32xf32>
      %294 = arith.addf %292, %293 : vector<2x32xf32>
      %295 = vector.extract_strided_slice %108 {offsets = [0, 6, 0], sizes = [2, 1, 96], strides = [1, 1, 1]} : vector<2x8x96xf32> to vector<2x1x96xf32>
      %296 = vector.shape_cast %295 : vector<2x1x96xf32> to vector<2x96xf32>
      %cst_82 = arith.constant dense<0.000000e+00> : vector<2x96xf32>
      %297 = tpu.matmul %294, %10, %cst_82 {dimension_numbers = #tpu.dot_dimension_numbers<[1], [0], [0], [1], [0, 0, 1, 1], [], []>} : vector<2x32xf32>, vector<32x96xf32>, vector<2x96xf32> -> vector<2x96xf32>
      %298 = vector.broadcast %11 : vector<1x96xf32> to vector<2x96xf32>
      %299 = arith.addf %297, %298 : vector<2x96xf32>
      %300 = vector.extract_strided_slice %296 {offsets = [0, 0], sizes = [2, 32], strides = [1, 1]} : vector<2x96xf32> to vector<2x32xf32>
      %301 = vector.extract_strided_slice %299 {offsets = [0, 0], sizes = [2, 32], strides = [1, 1]} : vector<2x96xf32> to vector<2x32xf32>
      %302 = arith.addf %300, %301 : vector<2x32xf32>
      %303 = arith.negf %302 : vector<2x32xf32>
      %304 = math.exp %303 : vector<2x32xf32>
      %cst_83 = arith.constant 1.000000e+00 : f32
      %305 = vector.broadcast %cst_83 : f32 to vector<2x32xf32>
      %306 = arith.addf %305, %304 : vector<2x32xf32>
      %307 = arith.divf %305, %306 : vector<2x32xf32>
      %308 = vector.extract_strided_slice %296 {offsets = [0, 32], sizes = [2, 32], strides = [1, 1]} : vector<2x96xf32> to vector<2x32xf32>
      %309 = vector.extract_strided_slice %299 {offsets = [0, 32], sizes = [2, 32], strides = [1, 1]} : vector<2x96xf32> to vector<2x32xf32>
      %310 = arith.addf %308, %309 : vector<2x32xf32>
      %311 = arith.negf %310 : vector<2x32xf32>
      %312 = math.exp %311 : vector<2x32xf32>
      %cst_84 = arith.constant 1.000000e+00 : f32
      %313 = vector.broadcast %cst_84 : f32 to vector<2x32xf32>
      %314 = arith.addf %313, %312 : vector<2x32xf32>
      %315 = arith.divf %313, %314 : vector<2x32xf32>
      %316 = vector.extract_strided_slice %296 {offsets = [0, 64], sizes = [2, 32], strides = [1, 1]} : vector<2x96xf32> to vector<2x32xf32>
      %317 = vector.extract_strided_slice %299 {offsets = [0, 64], sizes = [2, 32], strides = [1, 1]} : vector<2x96xf32> to vector<2x32xf32>
      %318 = arith.mulf %307, %317 : vector<2x32xf32>
      %319 = arith.addf %316, %318 : vector<2x32xf32>
      %320 = math.tanh %319 : vector<2x32xf32>
      %cst_85 = arith.constant 1.000000e+00 : f32
      %321 = vector.broadcast %cst_85 : f32 to vector<2x32xf32>
      %322 = arith.subf %321, %315 : vector<2x32xf32>
      %323 = arith.mulf %322, %320 : vector<2x32xf32>
      %324 = arith.mulf %315, %294 : vector<2x32xf32>
      %325 = arith.addf %323, %324 : vector<2x32xf32>
      %326 = vector.extract_strided_slice %108 {offsets = [0, 7, 0], sizes = [2, 1, 96], strides = [1, 1, 1]} : vector<2x8x96xf32> to vector<2x1x96xf32>
      %327 = vector.shape_cast %326 : vector<2x1x96xf32> to vector<2x96xf32>
      %cst_86 = arith.constant dense<0.000000e+00> : vector<2x96xf32>
      %328 = tpu.matmul %325, %10, %cst_86 {dimension_numbers = #tpu.dot_dimension_numbers<[1], [0], [0], [1], [0, 0, 1, 1], [], []>} : vector<2x32xf32>, vector<32x96xf32>, vector<2x96xf32> -> vector<2x96xf32>
      %329 = vector.broadcast %11 : vector<1x96xf32> to vector<2x96xf32>
      %330 = arith.addf %328, %329 : vector<2x96xf32>
      %331 = vector.extract_strided_slice %327 {offsets = [0, 0], sizes = [2, 32], strides = [1, 1]} : vector<2x96xf32> to vector<2x32xf32>
      %332 = vector.extract_strided_slice %330 {offsets = [0, 0], sizes = [2, 32], strides = [1, 1]} : vector<2x96xf32> to vector<2x32xf32>
      %333 = arith.addf %331, %332 : vector<2x32xf32>
      %334 = arith.negf %333 : vector<2x32xf32>
      %335 = math.exp %334 : vector<2x32xf32>
      %cst_87 = arith.constant 1.000000e+00 : f32
      %336 = vector.broadcast %cst_87 : f32 to vector<2x32xf32>
      %337 = arith.addf %336, %335 : vector<2x32xf32>
      %338 = arith.divf %336, %337 : vector<2x32xf32>
      %339 = vector.extract_strided_slice %327 {offsets = [0, 32], sizes = [2, 32], strides = [1, 1]} : vector<2x96xf32> to vector<2x32xf32>
      %340 = vector.extract_strided_slice %330 {offsets = [0, 32], sizes = [2, 32], strides = [1, 1]} : vector<2x96xf32> to vector<2x32xf32>
      %341 = arith.addf %339, %340 : vector<2x32xf32>
      %342 = arith.negf %341 : vector<2x32xf32>
      %343 = math.exp %342 : vector<2x32xf32>
      %cst_88 = arith.constant 1.000000e+00 : f32
      %344 = vector.broadcast %cst_88 : f32 to vector<2x32xf32>
      %345 = arith.addf %344, %343 : vector<2x32xf32>
      %346 = arith.divf %344, %345 : vector<2x32xf32>
      %347 = vector.extract_strided_slice %327 {offsets = [0, 64], sizes = [2, 32], strides = [1, 1]} : vector<2x96xf32> to vector<2x32xf32>
      %348 = vector.extract_strided_slice %330 {offsets = [0, 64], sizes = [2, 32], strides = [1, 1]} : vector<2x96xf32> to vector<2x32xf32>
      %349 = arith.mulf %338, %348 : vector<2x32xf32>
      %350 = arith.addf %347, %349 : vector<2x32xf32>
      %351 = math.tanh %350 : vector<2x32xf32>
      %cst_89 = arith.constant 1.000000e+00 : f32
      %352 = vector.broadcast %cst_89 : f32 to vector<2x32xf32>
      %353 = arith.subf %352, %346 : vector<2x32xf32>
      %354 = arith.mulf %353, %351 : vector<2x32xf32>
      %355 = arith.mulf %346, %325 : vector<2x32xf32>
      %356 = arith.addf %354, %355 : vector<2x32xf32>
      %357 = vector.shape_cast %139 : vector<2x32xf32> to vector<2x1x32xf32>
      %358 = vector.shape_cast %170 : vector<2x32xf32> to vector<2x1x32xf32>
      %359 = vector.shape_cast %201 : vector<2x32xf32> to vector<2x1x32xf32>
      %360 = vector.shape_cast %232 : vector<2x32xf32> to vector<2x1x32xf32>
      %361 = vector.shape_cast %263 : vector<2x32xf32> to vector<2x1x32xf32>
      %362 = vector.shape_cast %294 : vector<2x32xf32> to vector<2x1x32xf32>
      %363 = vector.shape_cast %325 : vector<2x32xf32> to vector<2x1x32xf32>
      %364 = vector.shape_cast %356 : vector<2x32xf32> to vector<2x1x32xf32>
      %365 = tpu.concatenate %357, %358, %359, %360, %361, %362, %363, %364 in 1 : vector<2x1x32xf32>, vector<2x1x32xf32>, vector<2x1x32xf32>, vector<2x1x32xf32>, vector<2x1x32xf32>, vector<2x1x32xf32>, vector<2x1x32xf32>, vector<2x1x32xf32> -> vector<2x8x32xf32>
      %c0_90 = arith.constant 0 : index
      %366 = arith.index_cast %106 : i32 to index
      %c0_91 = arith.constant 0 : index
      %367 = vector.load %arg17[%c0_90, %366, %c0_91] : memref<2x128x32xf32, #tpu.memory_space<vmem>>, vector<2x8x32xf32>
      tpu.vector_store %arg17[%c0_90, %366, %c0_91], %365 {strides = array<i32>} : memref<2x128x32xf32, #tpu.memory_space<vmem>>, vector<2x8x32xf32>,
      scf.yield %356 : vector<2x32xf32>
    }
    %c16_i32_14 = arith.constant 16 : i32
    %c0_15 = arith.constant 0 : index
    %c0_16 = arith.constant 0 : index
    %c0_17 = arith.constant 0 : index
    %15 = vector.load %arg17[%c0_15, %c0_16, %c0_17] : memref<2x128x32xf32, #tpu.memory_space<vmem>>, vector<2x128x32xf32>
    %16 = vector.shape_cast %15 : vector<2x128x32xf32> to vector<256x32xf32>
    %c0_18 = arith.constant 0 : index
    %c0_19 = arith.constant 0 : index
    %17 = vector.load %arg6[%c0_18, %c0_19] : memref<32x4xf32, #tpu.memory_space<vmem>>, vector<32x4xf32>
    %cst_20 = arith.constant dense<0.000000e+00> : vector<256x4xf32>
    %18 = tpu.matmul %16, %17, %cst_20 {dimension_numbers = #tpu.dot_dimension_numbers<[1], [0], [0], [1], [0, 0, 1, 1], [], []>} : vector<256x32xf32>, vector<32x4xf32>, vector<256x4xf32> -> vector<256x4xf32>
    %c0_21 = arith.constant 0 : index
    %c0_22 = arith.constant 0 : index
    %19 = vector.load %arg7[%c0_21, %c0_22] : memref<1x4xf32, #tpu.memory_space<vmem>>, vector<1x4xf32>
    %20 = vector.broadcast %19 : vector<1x4xf32> to vector<256x4xf32>
    %21 = arith.addf %18, %20 : vector<256x4xf32>
    %22 = vector.shape_cast %21 : vector<256x4xf32> to vector<2x128x4xf32>
    %c0_23 = arith.constant 0 : index
    %c0_24 = arith.constant 0 : index
    %23 = vector.load %arg8[%c0_23, %c0_24] : memref<128x4xf32, #tpu.memory_space<vmem>>, vector<128x4xf32>
    %24 = vector.shape_cast %23 : vector<128x4xf32> to vector<1x128x4xf32>
    %25 = vector.broadcast %24 : vector<1x128x4xf32> to vector<2x128x4xf32>
    %26 = arith.addf %22, %25 : vector<2x128x4xf32>
    %27 = vector.shape_cast %26 : vector<2x128x4xf32> to vector<256x4xf32>
    %c0_25 = arith.constant 0 : index
    %c0_26 = arith.constant 0 : index
    %28 = vector.load %arg9[%c0_25, %c0_26] : memref<4x12xf32, #tpu.memory_space<vmem>>, vector<4x12xf32>
    %cst_27 = arith.constant dense<0.000000e+00> : vector<256x12xf32>
    %29 = tpu.matmul %27, %28, %cst_27 {dimension_numbers = #tpu.dot_dimension_numbers<[1], [0], [0], [1], [0, 0, 1, 1], [], []>} : vector<256x4xf32>, vector<4x12xf32>, vector<256x12xf32> -> vector<256x12xf32>
    %c0_28 = arith.constant 0 : index
    %c0_29 = arith.constant 0 : index
    %30 = vector.load %arg10[%c0_28, %c0_29] : memref<1x12xf32, #tpu.memory_space<vmem>>, vector<1x12xf32>
    %31 = vector.broadcast %30 : vector<1x12xf32> to vector<256x12xf32>
    %32 = arith.addf %29, %31 : vector<256x12xf32>
    %33 = vector.shape_cast %32 : vector<256x12xf32> to vector<2x128x12xf32>
    %34 = vector.extract_strided_slice %33 {offsets = [0, 0, 0], sizes = [2, 128, 4], strides = [1, 1, 1]} : vector<2x128x12xf32> to vector<2x128x4xf32>
    %35 = vector.extract_strided_slice %33 {offsets = [0, 0, 4], sizes = [2, 128, 4], strides = [1, 1, 1]} : vector<2x128x12xf32> to vector<2x128x4xf32>
    %36 = vector.extract_strided_slice %33 {offsets = [0, 0, 8], sizes = [2, 128, 4], strides = [1, 1, 1]} : vector<2x128x12xf32> to vector<2x128x4xf32>
    %cst_30 = arith.constant 5.000000e-01 : f32
    %37 = vector.broadcast %cst_30 : f32 to vector<2x128x4xf32>
    %38 = arith.mulf %34, %37 : vector<2x128x4xf32>
    "tpu.trace_start"() <{level = 10 : i32, message = "bqc,bkc->bqk"}> : () -> ()
    %cst_31 = arith.constant dense<0.000000e+00> : vector<2x128x128xf32>
    %39 = tpu.matmul %38, %35, %cst_31 {dimension_numbers = #tpu.dot_dimension_numbers<[2], [2], [1], [1], [0, 0, 0, 1, 1, 1], [0], [0]>} : vector<2x128x4xf32>, vector<2x128x4xf32>, vector<2x128x128xf32> -> vector<2x128x128xf32>
    "tpu.trace_stop"() : () -> ()
    %40 = tpu.iota {dimensions = array<i32: 2>} : vector<1x1x128xi32>
    %c121_i32 = arith.constant 121 : i32
    %41 = vector.broadcast %c121_i32 : i32 to vector<1x1x128xi32>
    %42 = arith.cmpi slt, %40, %41 : vector<1x1x128xi32>
    %cst_32 = arith.constant -1.000000e+30 : f32
    %43 = vector.shape_cast %42 : vector<1x1x128xi1> to vector<1x1x128xi1>
    %44 = vector.broadcast %43 : vector<1x1x128xi1> to vector<2x128x128xi1>
    %45 = vector.broadcast %cst_32 : f32 to vector<2x128x128xf32>
    %46 = arith.select %44, %39, %45 : vector<2x128x128xi1>, vector<2x128x128xf32>
    %cst_33 = arith.constant dense<0xFF800000> : vector<2x128xf32>
    %47 = vector.multi_reduction <maximumf>, %46, %cst_33 [2] : vector<2x128x128xf32> to vector<2x128xf32>
    %48 = vector.shape_cast %47 : vector<2x128xf32> to vector<2x128x1xf32>
    %49 = vector.broadcast %48 : vector<2x128x1xf32> to vector<2x128x128xf32>
    %50 = arith.subf %46, %49 : vector<2x128x128xf32>
    %51 = math.exp %50 : vector<2x128x128xf32>
    %cst_34 = arith.constant dense<0.000000e+00> : vector<2x128xf32>
    %52 = vector.multi_reduction <add>, %51, %cst_34 [2] : vector<2x128x128xf32> to vector<2x128xf32>
    %53 = vector.shape_cast %52 : vector<2x128xf32> to vector<2x128x1xf32>
    "tpu.trace_start"() <{level = 10 : i32, message = "bqk,bkc->bqc"}> : () -> ()
    %cst_35 = arith.constant dense<0.000000e+00> : vector<2x128x4xf32>
    %54 = tpu.matmul %51, %36, %cst_35 {dimension_numbers = #tpu.dot_dimension_numbers<[2], [1], [1], [2], [0, 0, 0, 1, 1, 2], [0], [0]>} : vector<2x128x128xf32>, vector<2x128x4xf32>, vector<2x128x4xf32> -> vector<2x128x4xf32>
    "tpu.trace_stop"() : () -> ()
    %55 = tpu.reciprocal %53 {approx = true} : vector<2x128x1xf32> -> vector<2x128x1xf32>
    %56 = vector.broadcast %55 : vector<2x128x1xf32> to vector<2x128x4xf32>
    %57 = arith.mulf %54, %56 : vector<2x128x4xf32>
    %58 = vector.shape_cast %57 : vector<2x128x4xf32> to vector<256x4xf32>
    %c0_36 = arith.constant 0 : index
    %c0_37 = arith.constant 0 : index
    %59 = vector.load %arg11[%c0_36, %c0_37] : memref<4x4xf32, #tpu.memory_space<vmem>>, vector<4x4xf32>
    %cst_38 = arith.constant dense<0.000000e+00> : vector<256x4xf32>
    %60 = tpu.matmul %58, %59, %cst_38 {dimension_numbers = #tpu.dot_dimension_numbers<[1], [0], [0], [1], [0, 0, 1, 1], [], []>} : vector<256x4xf32>, vector<4x4xf32>, vector<256x4xf32> -> vector<256x4xf32>
    %c0_39 = arith.constant 0 : index
    %c0_40 = arith.constant 0 : index
    %61 = vector.load %arg12[%c0_39, %c0_40] : memref<1x4xf32, #tpu.memory_space<vmem>>, vector<1x4xf32>
    %62 = vector.broadcast %61 : vector<1x4xf32> to vector<256x4xf32>
    %63 = arith.addf %60, %62 : vector<256x4xf32>
    %64 = vector.shape_cast %63 : vector<256x4xf32> to vector<2x128x4xf32>
    %65 = tpu.iota {dimensions = array<i32: 1>} : vector<1x128x1xi32>
    %c121_i32_41 = arith.constant 121 : i32
    %66 = vector.broadcast %c121_i32_41 : i32 to vector<1x128x1xi32>
    %67 = arith.cmpi slt, %65, %66 : vector<1x128x1xi32>
    %cst_42 = arith.constant 0.000000e+00 : f32
    %68 = vector.shape_cast %67 : vector<1x128x1xi1> to vector<1x128x1xi1>
    %69 = vector.broadcast %68 : vector<1x128x1xi1> to vector<2x128x4xi1>
    %70 = vector.broadcast %cst_42 : f32 to vector<2x128x4xf32>
    %71 = arith.select %69, %64, %70 : vector<2x128x4xi1>, vector<2x128x4xf32>
    %cst_43 = arith.constant dense<0.000000e+00> : vector<2x4xf32>
    %72 = vector.multi_reduction <add>, %71, %cst_43 [1] : vector<2x128x4xf32> to vector<2x4xf32>
    %73 = vector.shape_cast %72 : vector<2x4xf32> to vector<2x1x4xf32>
    %cst_44 = arith.constant 0.00826446246 : f32
    %74 = vector.broadcast %cst_44 : f32 to vector<2x1x4xf32>
    %75 = arith.mulf %73, %74 : vector<2x1x4xf32>
    %76 = vector.broadcast %75 : vector<2x1x4xf32> to vector<2x128x4xf32>
    %77 = arith.subf %64, %76 : vector<2x128x4xf32>
    %cst_45 = arith.constant 0.000000e+00 : f32
    %78 = vector.shape_cast %67 : vector<1x128x1xi1> to vector<1x128x1xi1>
    %79 = vector.broadcast %78 : vector<1x128x1xi1> to vector<2x128x4xi1>
    %80 = vector.broadcast %cst_45 : f32 to vector<2x128x4xf32>
    %81 = arith.select %79, %77, %80 : vector<2x128x4xi1>, vector<2x128x4xf32>
    %82 = arith.mulf %81, %81 : vector<2x128x4xf32>
    %cst_46 = arith.constant dense<0.000000e+00> : vector<2x4xf32>
    %83 = vector.multi_reduction <add>, %82, %cst_46 [1] : vector<2x128x4xf32> to vector<2x4xf32>
    %84 = vector.shape_cast %83 : vector<2x4xf32> to vector<2x1x4xf32>
    %cst_47 = arith.constant 0.00826446246 : f32
    %85 = vector.broadcast %cst_47 : f32 to vector<2x1x4xf32>
    %86 = arith.mulf %84, %85 : vector<2x1x4xf32>
    %87 = vector.broadcast %75 : vector<2x1x4xf32> to vector<2x128x4xf32>
    %88 = arith.subf %64, %87 : vector<2x128x4xf32>
    %cst_48 = arith.constant 9.99999974E-6 : f32
    %89 = vector.broadcast %cst_48 : f32 to vector<2x1x4xf32>
    %90 = arith.addf %86, %89 : vector<2x1x4xf32>
    %91 = math.rsqrt %90 : vector<2x1x4xf32>
    %92 = vector.broadcast %91 : vector<2x1x4xf32> to vector<2x128x4xf32>
    %93 = arith.mulf %88, %92 : vector<2x128x4xf32>
    %c0_49 = arith.constant 0 : index
    %c0_50 = arith.constant 0 : index
    %94 = vector.load %arg13[%c0_49, %c0_50] : memref<128x4xf32, #tpu.memory_space<vmem>>, vector<128x4xf32>
    %95 = vector.shape_cast %94 : vector<128x4xf32> to vector<1x128x4xf32>
    %96 = vector.broadcast %95 : vector<1x128x4xf32> to vector<2x128x4xf32>
    %97 = arith.mulf %93, %96 : vector<2x128x4xf32>
    %c0_51 = arith.constant 0 : index
    %c0_52 = arith.constant 0 : index
    %98 = vector.load %arg14[%c0_51, %c0_52] : memref<128x4xf32, #tpu.memory_space<vmem>>, vector<128x4xf32>
    %99 = vector.shape_cast %98 : vector<128x4xf32> to vector<1x128x4xf32>
    %100 = vector.broadcast %99 : vector<1x128x4xf32> to vector<2x128x4xf32>
    %101 = arith.addf %97, %100 : vector<2x128x4xf32>
    %102 = tpu.transpose %101, [0, 2, 1] : vector<2x128x4xf32> -> vector<2x4x128xf32>
    %103 = arith.addf %102, %0 : vector<2x4x128xf32>
    %c0_53 = arith.constant 0 : index
    %c0_54 = arith.constant 0 : index
    %c0_55 = arith.constant 0 : index
    %104 = vector.load %arg15[%c0_53, %c0_54, %c0_55] : memref<2x4x128xf32, #tpu.memory_space<vmem>>, vector<2x4x128xf32>
    tpu.vector_store %arg15[%c0_53, %c0_54, %c0_55], %103 {strides = array<i32>} : memref<2x4x128xf32, #tpu.memory_space<vmem>>, vector<2x4x128xf32>,
    return
  }
  func.func @transform_0(%arg0: i32) -> (i32, i32, i32) {
    %c0_i32 = arith.constant 0 : i32
    %c0_i32_0 = arith.constant 0 : i32
    %c0_i32_1 = arith.constant 0 : i32
    return %arg0, %c0_i32, %c0_i32_0 : i32, i32, i32
  }
  func.func @transform_1(%arg0: i32) -> (i32, i32) {
    %c0_i32 = arith.constant 0 : i32
    %c0_i32_0 = arith.constant 0 : i32
    %c0_i32_1 = arith.constant 0 : i32
    return %c0_i32, %c0_i32_0 : i32, i32
  }
  func.func @transform_2(%arg0: i32) -> (i32, i32) {
    %c0_i32 = arith.constant 0 : i32
    %c0_i32_0 = arith.constant 0 : i32
    %c0_i32_1 = arith.constant 0 : i32
    return %c0_i32, %c0_i32_0 : i32, i32
  }
  func.func @transform_3(%arg0: i32) -> (i32, i32) {
    %c0_i32 = arith.constant 0 : i32
    %c0_i32_0 = arith.constant 0 : i32
    %c0_i32_1 = arith.constant 0 : i32
    return %c0_i32, %c0_i32_0 : i32, i32
  }
  func.func @transform_4(%arg0: i32) -> (i32, i32) {
    %c0_i32 = arith.constant 0 : i32
    %c0_i32_0 = arith.constant 0 : i32
    %c0_i32_1 = arith.constant 0 : i32
    return %c0_i32, %c0_i32_0 : i32, i32
  }
  func.func @transform_5(%arg0: i32) -> (i32, i32) {
    %c0_i32 = arith.constant 0 : i32
    %c0_i32_0 = arith.constant 0 : i32
    %c0_i32_1 = arith.constant 0 : i32
    return %c0_i32, %c0_i32_0 : i32, i32
  }
  func.func @transform_6(%arg0: i32) -> (i32, i32) {
    %c0_i32 = arith.constant 0 : i32
    %c0_i32_0 = arith.constant 0 : i32
    %c0_i32_1 = arith.constant 0 : i32
    return %c0_i32, %c0_i32_0 : i32, i32
  }
  func.func @transform_7(%arg0: i32) -> (i32, i32) {
    %c0_i32 = arith.constant 0 : i32
    %c0_i32_0 = arith.constant 0 : i32
    %c0_i32_1 = arith.constant 0 : i32
    return %c0_i32, %c0_i32_0 : i32, i32
  }
  func.func @transform_8(%arg0: i32) -> (i32, i32) {
    %c0_i32 = arith.constant 0 : i32
    %c0_i32_0 = arith.constant 0 : i32
    %c0_i32_1 = arith.constant 0 : i32
    return %c0_i32, %c0_i32_0 : i32, i32
  }
  func.func @transform_9(%arg0: i32) -> (i32, i32) {
    %c0_i32 = arith.constant 0 : i32
    %c0_i32_0 = arith.constant 0 : i32
    %c0_i32_1 = arith.constant 0 : i32
    return %c0_i32, %c0_i32_0 : i32, i32
  }
  func.func @transform_10(%arg0: i32) -> (i32, i32) {
    %c0_i32 = arith.constant 0 : i32
    %c0_i32_0 = arith.constant 0 : i32
    %c0_i32_1 = arith.constant 0 : i32
    return %c0_i32, %c0_i32_0 : i32, i32
  }
  func.func @transform_11(%arg0: i32) -> (i32, i32) {
    %c0_i32 = arith.constant 0 : i32
    %c0_i32_0 = arith.constant 0 : i32
    %c0_i32_1 = arith.constant 0 : i32
    return %c0_i32, %c0_i32_0 : i32, i32
  }
  func.func @transform_12(%arg0: i32) -> (i32, i32) {
    %c0_i32 = arith.constant 0 : i32
    %c0_i32_0 = arith.constant 0 : i32
    %c0_i32_1 = arith.constant 0 : i32
    return %c0_i32, %c0_i32_0 : i32, i32
  }
  func.func @transform_13(%arg0: i32) -> (i32, i32) {
    %c0_i32 = arith.constant 0 : i32
    %c0_i32_0 = arith.constant 0 : i32
    %c0_i32_1 = arith.constant 0 : i32
    return %c0_i32, %c0_i32_0 : i32, i32
  }
  func.func @transform_14(%arg0: i32) -> (i32, i32, i32) {
    %c0_i32 = arith.constant 0 : i32
    %c0_i32_0 = arith.constant 0 : i32
    %c0_i32_1 = arith.constant 0 : i32
    return %arg0, %c0_i32, %c0_i32_0 : i32, i32, i32
  }
}

</mosaic_0001>

<llo_original>
// kernel: tpu_custom_call.1
$region0: #{tpu_custom_call.1}
  #allocation0 [shape = 'u32[]', space=smem, size = 0x4, offset = 0x4, fixed_abs, tag = 'smem constant byte address 0x4 - core index']
  #allocation1 [shape = 'u32[144,128]{1,0:T(1,128)}', space=vmem, size = 0x12000, scoped, tag = 'internal scratch']
  #allocation2 [shape = 'f32[2,128,96]{2,1,0:T(8,128)}', space=vmem, size = 0x20000, scoped, tag = 'scratch operand']
  #allocation3 [shape = 'f32[2,128,32]{2,1,0:T(8,128)}', space=vmem, size = 0x20000, scoped, tag = 'scratch operand']
  %s0 = inlined_call_operand.vmem [shape: f32[2,4,128], index: 0, kind: input, shape index: {}]
  %s1 = inlined_call_operand.vmem [shape: f32[4,96], index: 1, kind: input, shape index: {}]
  %s2 = inlined_call_operand.vmem [shape: f32[32,96], index: 2, kind: input, shape index: {}]
  %s3 = inlined_call_operand.vmem [shape: f32[1,96], index: 3, kind: input, shape index: {}]
  %s4 = inlined_call_operand.vmem [shape: f32[1,96], index: 4, kind: input, shape index: {}]
  %s5 = inlined_call_operand.vmem [shape: f32[32,4], index: 5, kind: input, shape index: {}]
  %s6 = inlined_call_operand.vmem [shape: f32[1,4], index: 6, kind: input, shape index: {}]
  %s7 = inlined_call_operand.vmem [shape: f32[128,4], index: 7, kind: input, shape index: {}]
  %s8 = inlined_call_operand.vmem [shape: f32[4,12], index: 8, kind: input, shape index: {}]
  %s9 = inlined_call_operand.vmem [shape: f32[1,12], index: 9, kind: input, shape index: {}]
  %s10 = inlined_call_operand.vmem [shape: f32[4,4], index: 10, kind: input, shape index: {}]
  %s11 = inlined_call_operand.vmem [shape: f32[1,4], index: 11, kind: input, shape index: {}]
  %s12 = inlined_call_operand.vmem [shape: f32[128,4], index: 12, kind: input, shape index: {}]
  %s13 = inlined_call_operand.vmem [shape: f32[128,4], index: 13, kind: input, shape index: {}]
  %s14 = inlined_call_operand.hbm [shape: f32[2,4,128], index: 14, kind: output, shape index: {}]
  %s15 = sld [smem:[#allocation0]]
  $region73: #{tpu_custom_call.1} parent=0
    _
  %s17 = ssub.s32 1, %s15
  %s18 = scalar_select 0, %s17, %s15
  $region1: #{tpu_custom_call.1} parent=0
    #allocation4 [shape = 'u8[4096]{0}', space=vmem, size = 0x1000, scoped, tag = 'output window, operand 0, single buffered']
    #allocation5 [shape = 's32[1]{0}', space=sflag, size = 0x4, scoped, tag = 'scoped memory for tpu_custom_call.1']
    %19 = vsyncpa [#allocation5], 0
    // Predicated region
    $region2: #{tpu_custom_call.1} parent=1 // pred_check
      _
    $region3: #{tpu_custom_call.1} parent=1 // pred_check_branch
      %21 = sbr.rel (0) target = $region5
    $region4: #{tpu_custom_call.1} parent=1 // pred_region
      _
    $region5: #{tpu_custom_call.1} parent=1 // pred_fallthru
      _
    // Predicated region
    $region6: #{tpu_custom_call.1} parent=1 // pred_check
      _
    $region7: #{tpu_custom_call.1} parent=1 // pred_check_branch
      %23 = sbr.rel (0) target = $region9
    $region8: #{tpu_custom_call.1} parent=1 // pred_region
      _
    $region9: #{tpu_custom_call.1} parent=1 // pred_fallthru
      _
    // Predicated region
    $region10: #{tpu_custom_call.1} parent=1 // pred_check
      _
    $region11: #{tpu_custom_call.1} parent=1 // pred_check_branch
      %25 = sbr.rel (0) target = $region13
    $region12: #{tpu_custom_call.1} parent=1 // pred_region
      _
    $region13: #{tpu_custom_call.1} parent=1 // pred_fallthru
      _
    // Predicated region
    $region14: #{tpu_custom_call.1} parent=1 // pred_check
      _
    $region15: #{tpu_custom_call.1} parent=1 // pred_check_branch
      %27 = sbr.rel (0) target = $region17
    $region16: #{tpu_custom_call.1} parent=1 // pred_region
      _
    $region17: #{tpu_custom_call.1} parent=1 // pred_fallthru
      _
    // Predicated region
    $region18: #{tpu_custom_call.1} parent=1 // pred_check
      _
    $region19: #{tpu_custom_call.1} parent=1 // pred_check_branch
      %29 = sbr.rel (0) target = $region21
    $region20: #{tpu_custom_call.1} parent=1 // pred_region
      _
    $region21: #{tpu_custom_call.1} parent=1 // pred_fallthru
      _
    // Predicated region
    $region22: #{tpu_custom_call.1} parent=1 // pred_check
      _
    $region23: #{tpu_custom_call.1} parent=1 // pred_check_branch
      %31 = sbr.rel (0) target = $region25
    $region24: #{tpu_custom_call.1} parent=1 // pred_region
      _
    $region25: #{tpu_custom_call.1} parent=1 // pred_fallthru
      _
    // Predicated region
    $region26: #{tpu_custom_call.1} parent=1 // pred_check
      _
    $region27: #{tpu_custom_call.1} parent=1 // pred_check_branch
      %33 = sbr.rel (0) target = $region29
    $region28: #{tpu_custom_call.1} parent=1 // pred_region
      _
    $region29: #{tpu_custom_call.1} parent=1 // pred_fallthru
      _
    // Predicated region
    $region30: #{tpu_custom_call.1} parent=1 // pred_check
      _
    $region31: #{tpu_custom_call.1} parent=1 // pred_check_branch
      %35 = sbr.rel (0) target = $region33
    $region32: #{tpu_custom_call.1} parent=1 // pred_region
      _
    $region33: #{tpu_custom_call.1} parent=1 // pred_fallthru
      _
    // Predicated region
    $region34: #{tpu_custom_call.1} parent=1 // pred_check
      _
    $region35: #{tpu_custom_call.1} parent=1 // pred_check_branch
      %37 = sbr.rel (0) target = $region37
    $region36: #{tpu_custom_call.1} parent=1 // pred_region
      _
    $region37: #{tpu_custom_call.1} parent=1 // pred_fallthru
      _
    // Predicated region
    $region38: #{tpu_custom_call.1} parent=1 // pred_check
      _
    $region39: #{tpu_custom_call.1} parent=1 // pred_check_branch
      %39 = sbr.rel (0) target = $region41
    $region40: #{tpu_custom_call.1} parent=1 // pred_region
      _
    $region41: #{tpu_custom_call.1} parent=1 // pred_fallthru
      _
    // Predicated region
    $region42: #{tpu_custom_call.1} parent=1 // pred_check
      _
    $region43: #{tpu_custom_call.1} parent=1 // pred_check_branch
      %41 = sbr.rel (0) target = $region45
    $region44: #{tpu_custom_call.1} parent=1 // pred_region
      _
    $region45: #{tpu_custom_call.1} parent=1 // pred_fallthru
      _
    // Predicated region
    $region46: #{tpu_custom_call.1} parent=1 // pred_check
      _
    $region47: #{tpu_custom_call.1} parent=1 // pred_check_branch
      %43 = sbr.rel (0) target = $region49
    $region48: #{tpu_custom_call.1} parent=1 // pred_region
      _
    $region49: #{tpu_custom_call.1} parent=1 // pred_fallthru
      _
    // Predicated region
    $region50: #{tpu_custom_call.1} parent=1 // pred_check
      _
    $region51: #{tpu_custom_call.1} parent=1 // pred_check_branch
      %45 = sbr.rel (0) target = $region53
    $region52: #{tpu_custom_call.1} parent=1 // pred_region
      _
    $region53: #{tpu_custom_call.1} parent=1 // pred_fallthru
      _
    // Predicated region
    $region54: #{tpu_custom_call.1} parent=1 // pred_check
      _
    $region55: #{tpu_custom_call.1} parent=1 // pred_check_branch
      %47 = sbr.rel (0) target = $region57
    $region56: #{tpu_custom_call.1} parent=1 // pred_region
      _
    $region57: #{tpu_custom_call.1} parent=1 // pred_fallthru
      _
    %v48 = vld [vmem:[%s0] sm:$0xf]
    %v49 = vld [vmem:[%s0 + $0x4] sm:$0xf]
    %50 = vxpose.xlu0.b32.start [1/16] %v48, 128
    %51 = vxpose.xlu0.b32.cont [2/16] 0.0, 128
    %52 = vxpose.xlu0.b32.cont [3/16] 0.0, 128
    %53 = vxpose.xlu0.b32.cont [4/16] 0.0, 128
    %54 = vxpose.xlu0.b32.cont [5/16] 0.0, 128
    %55 = vxpose.xlu0.b32.cont [6/16] 0.0, 128
    %56 = vxpose.xlu0.b32.cont [7/16] 0.0, 128
    %57 = vxpose.xlu0.b32.cont [8/16] 0.0, 128
    %58 = vxpose.xlu0.b32.cont [9/16] 0.0, 128
    %59 = vxpose.xlu0.b32.cont [10/16] 0.0, 128
    %60 = vxpose.xlu0.b32.cont [11/16] 0.0, 128
    %61 = vxpose.xlu0.b32.cont [12/16] 0.0, 128
    %62 = vxpose.xlu0.b32.cont [13/16] 0.0, 128
    %63 = vxpose.xlu0.b32.cont [14/16] 0.0, 128
    %64 = vxpose.xlu0.b32.cont [15/16] 0.0, 128
    %65 = vxpose.xlu0.b32.end [16/16] 0.0, 128
    %v66 = vpop.trf.xlu0
    %v67 = vpop.trf.xlu0
    %v68 = vpop.trf.xlu0
    %v69 = vpop.trf.xlu0
    %v70 = vpop.trf.xlu0
    %v71 = vpop.trf.xlu0
    %v72 = vpop.trf.xlu0
    %v73 = vpop.trf.xlu0
    %v74 = vpop.trf.xlu0
    %v75 = vpop.trf.xlu0
    %v76 = vpop.trf.xlu0
    %v77 = vpop.trf.xlu0
    %v78 = vpop.trf.xlu0
    %v79 = vpop.trf.xlu0
    %v80 = vpop.trf.xlu0
    %v81 = vpop.trf.xlu0
    %82 = vxpose.xlu0.b32.start [1/16] %v49, 128
    %83 = vxpose.xlu0.b32.cont [2/16] 0.0, 128
    %84 = vxpose.xlu0.b32.cont [3/16] 0.0, 128
    %85 = vxpose.xlu0.b32.cont [4/16] 0.0, 128
    %86 = vxpose.xlu0.b32.cont [5/16] 0.0, 128
    %87 = vxpose.xlu0.b32.cont [6/16] 0.0, 128
    %88 = vxpose.xlu0.b32.cont [7/16] 0.0, 128
    %89 = vxpose.xlu0.b32.cont [8/16] 0.0, 128
    %90 = vxpose.xlu0.b32.cont [9/16] 0.0, 128
    %91 = vxpose.xlu0.b32.cont [10/16] 0.0, 128
    %92 = vxpose.xlu0.b32.cont [11/16] 0.0, 128
    %93 = vxpose.xlu0.b32.cont [12/16] 0.0, 128
    %94 = vxpose.xlu0.b32.cont [13/16] 0.0, 128
    %95 = vxpose.xlu0.b32.cont [14/16] 0.0, 128
    %96 = vxpose.xlu0.b32.cont [15/16] 0.0, 128
    %97 = vxpose.xlu0.b32.end [16/16] 0.0, 128
    %v98 = vpop.trf.xlu0
    %v99 = vpop.trf.xlu0
    %v100 = vpop.trf.xlu0
    %v101 = vpop.trf.xlu0
    %v102 = vpop.trf.xlu0
    %v103 = vpop.trf.xlu0
    %v104 = vpop.trf.xlu0
    %v105 = vpop.trf.xlu0
    %v106 = vpop.trf.xlu0
    %v107 = vpop.trf.xlu0
    %v108 = vpop.trf.xlu0
    %v109 = vpop.trf.xlu0
    %v110 = vpop.trf.xlu0
    %v111 = vpop.trf.xlu0
    %v112 = vpop.trf.xlu0
    %v113 = vpop.trf.xlu0
    %v114 = vld [vmem:[%s1] sm:$0xf]
    %v115 = vld [vmem:[%s3] sm:$0x1]
    %v117 = vlaneseq
    %v118 = vshrl.u32 %v117, 7
    %v119 = vsub.s32 0, %v118
    %v120 = vrot.slane %v115, %v119
    %vm122 = vcmask 31744
    %v124 = vsel %vm122, %v66, 0
    %v127 = vsel %vm122, %v67, 0
    %v130 = vsel %vm122, %v68, 0
    %v133 = vsel %vm122, %v69, 0
    %v136 = vsel %vm122, %v70, 0
    %v139 = vsel %vm122, %v71, 0
    %v142 = vsel %vm122, %v72, 0
    %v145 = vsel %vm122, %v73, 0
    %v148 = vsel %vm122, %v74, 0
    %v151 = vsel %vm122, %v75, 0
    %v154 = vsel %vm122, %v76, 0
    %v157 = vsel %vm122, %v77, 0
    %v160 = vsel %vm122, %v78, 0
    %v163 = vsel %vm122, %v79, 0
    %v166 = vsel %vm122, %v80, 0
    %v169 = vsel %vm122, %v81, 0
    %v172 = vsel %vm122, %v98, 0
    %v175 = vsel %vm122, %v99, 0
    %v178 = vsel %vm122, %v100, 0
    %v181 = vsel %vm122, %v101, 0
    %v184 = vsel %vm122, %v102, 0
    %v187 = vsel %vm122, %v103, 0
    %v190 = vsel %vm122, %v104, 0
    %v193 = vsel %vm122, %v105, 0
    %v196 = vsel %vm122, %v106, 0
    %v199 = vsel %vm122, %v107, 0
    %v202 = vsel %vm122, %v108, 0
    %v205 = vsel %vm122, %v109, 0
    %v208 = vsel %vm122, %v110, 0
    %v211 = vsel %vm122, %v111, 0
    %v214 = vsel %vm122, %v112, 0
    %v217 = vsel %vm122, %v113, 0
    %vm219 = vcmask 1043456
    %v221 = vsel %vm219, %v114, 0
    %223 = vmatprep.subr.mxu0 0.0
    %224 = vmatpush1.msra.mxu0 %v221
    %225 = vmatprep.subr.mxu0 0.0
    %226 = vmatpush1.msra.mxu0 0.0
    %227 = vmatprep.subr.mxu0 0.0
    %228 = vmatpush1.msra.mxu0 0.0
    %229 = vmatprep.subr.mxu0 0.0
    %230 = vmatpush1.msra.mxu0 0.0
    %231 = vmatprep.subr.mxu0 0.0
    %232 = vmatpush1.msra.mxu0 0.0
    %233 = vmatprep.subr.mxu0 0.0
    %234 = vmatpush1.msra.mxu0 0.0
    %235 = vmatprep.subr.mxu0 0.0
    %236 = vmatpush1.msra.mxu0 0.0
    %237 = vmatprep.subr.mxu0 0.0
    %238 = vmatpush1.msra.mxu0 0.0
    %239 = vmatprep.subr.mxu0 0.0
    %240 = vmatpush1.msra.mxu0 0.0
    %241 = vmatprep.subr.mxu0 0.0
    %242 = vmatpush1.msra.mxu0 0.0
    %243 = vmatprep.subr.mxu0 0.0
    %244 = vmatpush1.msra.mxu0 0.0
    %245 = vmatprep.subr.mxu0 0.0
    %246 = vmatpush1.msra.mxu0 0.0
    %247 = vmatprep.subr.mxu0 0.0
    %248 = vmatpush1.msra.mxu0 0.0
    %249 = vmatprep.subr.mxu0 0.0
    %250 = vmatpush1.msra.mxu0 0.0
    %251 = vmatprep.subr.mxu0 0.0
    %252 = vmatpush1.msra.mxu0 0.0
    %253 = vmatprep.subr.mxu0 0.0
    %254 = vmatpush1.msra.mxu0 0.0
    %255 = vmatprep.subr.mxu0 0.0
    %256 = vmatpush1.msra.mxu0 0.0
    %257 = vmatprep.subr.mxu0 0.0
    %258 = vmatpush1.msra.mxu0 0.0
    %259 = vmatprep.subr.mxu0 0.0
    %260 = vmatpush1.msra.mxu0 0.0
    %261 = vmatprep.subr.mxu0 0.0
    %262 = vmatpush1.msra.mxu0 0.0
    %263 = vmatprep.subr.mxu0 0.0
    %264 = vmatpush1.msra.mxu0 0.0
    %265 = vmatprep.subr.mxu0 0.0
    %266 = vmatpush1.msra.mxu0 0.0
    %267 = vmatprep.subr.mxu0 0.0
    %268 = vmatpush1.msra.mxu0 0.0
    %269 = vmatprep.subr.mxu0 0.0
    %270 = vmatpush1.msra.mxu0 0.0
    %271 = vmatprep.subr.mxu0 0.0
    %272 = vmatpush1.msra.mxu0 0.0
    %273 = vmatprep.subr.mxu0 0.0
    %274 = vmatpush1.msra.mxu0 0.0
    %275 = vmatprep.subr.mxu0 0.0
    %276 = vmatpush1.msra.mxu0 0.0
    %277 = vmatprep.subr.mxu0 0.0
    %278 = vmatpush1.msra.mxu0 0.0
    %279 = vmatprep.subr.mxu0 0.0
    %280 = vmatpush1.msra.mxu0 0.0
    %281 = vmatprep.subr.mxu0 0.0
    %282 = vmatpush1.msra.mxu0 0.0
    %283 = vmatprep.subr.mxu0 0.0
    %284 = vmatpush1.msra.mxu0 0.0
    %285 = vmatprep.subr.mxu0 0.0
    %286 = vmatpush1.msra.mxu0 0.0
    %287 = vmatprep.mubr.f32.mxu0 0.0
    %288 = vmatmul.mubr.f32.gmra.mrb[0].mxu0 %v124
    %v289 = vpop.f32.mrb[0].mxu0
    %v290 = vadd.f32 %v120, %v289
    %v291 = vpop.f32.mrb[0].mxu0
    %292 = vmatprep.mubr.f32.mxu0 0.0
    %293 = vmatmul.mubr.f32.gmra.mrb[0].mxu0 %v127
    %v294 = vpop.f32.mrb[0].mxu0
    %v295 = vadd.f32 %v120, %v294
    %v296 = vpop.f32.mrb[0].mxu0
    %297 = vmatprep.mubr.f32.mxu0 0.0
    %298 = vmatmul.mubr.f32.gmra.mrb[0].mxu0 %v130
    %v299 = vpop.f32.mrb[0].mxu0
    %v300 = vadd.f32 %v120, %v299
    %v301 = vpop.f32.mrb[0].mxu0
    %302 = vmatprep.mubr.f32.mxu0 0.0
    %303 = vmatmul.mubr.f32.gmra.mrb[0].mxu0 %v133
    %v304 = vpop.f32.mrb[0].mxu0
    %v305 = vadd.f32 %v120, %v304
    %v306 = vpop.f32.mrb[0].mxu0
    %307 = vmatprep.mubr.f32.mxu0 0.0
    %308 = vmatmul.mubr.f32.gmra.mrb[0].mxu0 %v136
    %v309 = vpop.f32.mrb[0].mxu0
    %v310 = vadd.f32 %v120, %v309
    %v311 = vpop.f32.mrb[0].mxu0
    %312 = vmatprep.mubr.f32.mxu0 0.0
    %313 = vmatmul.mubr.f32.gmra.mrb[0].mxu0 %v139
    %v314 = vpop.f32.mrb[0].mxu0
    %v315 = vadd.f32 %v120, %v314
    %v316 = vpop.f32.mrb[0].mxu0
    %317 = vmatprep.mubr.f32.mxu0 0.0
    %318 = vmatmul.mubr.f32.gmra.mrb[0].mxu0 %v142
    %v319 = vpop.f32.mrb[0].mxu0
    %v320 = vadd.f32 %v120, %v319
    %v321 = vpop.f32.mrb[0].mxu0
    %322 = vmatprep.mubr.f32.mxu0 0.0
    %323 = vmatmul.mubr.f32.gmra.mrb[0].mxu0 %v145
    %v324 = vpop.f32.mrb[0].mxu0
    %v325 = vadd.f32 %v120, %v324
    %v326 = vpop.f32.mrb[0].mxu0
    %327 = vmatprep.mubr.f32.mxu0 0.0
    %328 = vmatmul.mubr.f32.gmra.mrb[0].mxu0 %v148
    %v329 = vpop.f32.mrb[0].mxu0
    %v330 = vadd.f32 %v120, %v329
    %v331 = vpop.f32.mrb[0].mxu0
    %332 = vmatprep.mubr.f32.mxu0 0.0
    %333 = vmatmul.mubr.f32.gmra.mrb[0].mxu0 %v151
    %v334 = vpop.f32.mrb[0].mxu0
    %v335 = vadd.f32 %v120, %v334
    %v336 = vpop.f32.mrb[0].mxu0
    %337 = vmatprep.mubr.f32.mxu0 0.0
    %338 = vmatmul.mubr.f32.gmra.mrb[0].mxu0 %v154
    %v339 = vpop.f32.mrb[0].mxu0
    %v340 = vadd.f32 %v120, %v339
    %v341 = vpop.f32.mrb[0].mxu0
    %342 = vmatprep.mubr.f32.mxu0 0.0
    %343 = vmatmul.mubr.f32.gmra.mrb[0].mxu0 %v157
    %v344 = vpop.f32.mrb[0].mxu0
    %v345 = vadd.f32 %v120, %v344
    %v346 = vpop.f32.mrb[0].mxu0
    %347 = vmatprep.mubr.f32.mxu0 0.0
    %348 = vmatmul.mubr.f32.gmra.mrb[0].mxu0 %v160
    %v349 = vpop.f32.mrb[0].mxu0
    %v350 = vadd.f32 %v120, %v349
    %v351 = vpop.f32.mrb[0].mxu0
    %352 = vmatprep.mubr.f32.mxu0 0.0
    %353 = vmatmul.mubr.f32.gmra.mrb[0].mxu0 %v163
    %v354 = vpop.f32.mrb[0].mxu0
    %v355 = vadd.f32 %v120, %v354
    %v356 = vpop.f32.mrb[0].mxu0
    %357 = vmatprep.mubr.f32.mxu0 0.0
    %358 = vmatmul.mubr.f32.gmra.mrb[0].mxu0 %v166
    %v359 = vpop.f32.mrb[0].mxu0
    %v360 = vadd.f32 %v120, %v359
    %v361 = vpop.f32.mrb[0].mxu0
    %362 = vmatprep.mubr.f32.mxu0 0.0
    %363 = vmatmul.mubr.f32.gmra.mrb[0].mxu0 %v169
    %v364 = vpop.f32.mrb[0].mxu0
    %v365 = vadd.f32 %v120, %v364
    %v366 = vpop.f32.mrb[0].mxu0
    %367 = vmatprep.mubr.f32.mxu0 0.0
    %368 = vmatmul.mubr.f32.gmra.mrb[0].mxu0 %v172
    %v369 = vpop.f32.mrb[0].mxu0
    %v370 = vadd.f32 %v120, %v369
    %v371 = vpop.f32.mrb[0].mxu0
    %372 = vmatprep.mubr.f32.mxu0 0.0
    %373 = vmatmul.mubr.f32.gmra.mrb[0].mxu0 %v175
    %v374 = vpop.f32.mrb[0].mxu0
    %v375 = vadd.f32 %v120, %v374
    %v376 = vpop.f32.mrb[0].mxu0
    %377 = vmatprep.mubr.f32.mxu0 0.0
    %378 = vmatmul.mubr.f32.gmra.mrb[0].mxu0 %v178
    %v379 = vpop.f32.mrb[0].mxu0
    %v380 = vadd.f32 %v120, %v379
    %v381 = vpop.f32.mrb[0].mxu0
    %382 = vmatprep.mubr.f32.mxu0 0.0
    %383 = vmatmul.mubr.f32.gmra.mrb[0].mxu0 %v181
    %v384 = vpop.f32.mrb[0].mxu0
    %v385 = vadd.f32 %v120, %v384
    %v386 = vpop.f32.mrb[0].mxu0
    %387 = vmatprep.mubr.f32.mxu0 0.0
    %388 = vmatmul.mubr.f32.gmra.mrb[0].mxu0 %v184
    %v389 = vpop.f32.mrb[0].mxu0
    %v390 = vadd.f32 %v120, %v389
    %v391 = vpop.f32.mrb[0].mxu0
    %392 = vmatprep.mubr.f32.mxu0 0.0
    %393 = vmatmul.mubr.f32.gmra.mrb[0].mxu0 %v187
    %v394 = vpop.f32.mrb[0].mxu0
    %v395 = vadd.f32 %v120, %v394
    %v396 = vpop.f32.mrb[0].mxu0
    %397 = vmatprep.mubr.f32.mxu0 0.0
    %398 = vmatmul.mubr.f32.gmra.mrb[0].mxu0 %v190
    %v399 = vpop.f32.mrb[0].mxu0
    %v400 = vadd.f32 %v120, %v399
    %v401 = vpop.f32.mrb[0].mxu0
    %402 = vmatprep.mubr.f32.mxu0 0.0
    %403 = vmatmul.mubr.f32.gmra.mrb[0].mxu0 %v193
    %v404 = vpop.f32.mrb[0].mxu0
    %v405 = vadd.f32 %v120, %v404
    %v406 = vpop.f32.mrb[0].mxu0
    %407 = vmatprep.mubr.f32.mxu0 0.0
    %408 = vmatmul.mubr.f32.gmra.mrb[0].mxu0 %v196
    %v409 = vpop.f32.mrb[0].mxu0
    %v410 = vadd.f32 %v120, %v409
    %v411 = vpop.f32.mrb[0].mxu0
    %412 = vmatprep.mubr.f32.mxu0 0.0
    %413 = vmatmul.mubr.f32.gmra.mrb[0].mxu0 %v199
    %v414 = vpop.f32.mrb[0].mxu0
    %v415 = vadd.f32 %v120, %v414
    %v416 = vpop.f32.mrb[0].mxu0
    %417 = vmatprep.mubr.f32.mxu0 0.0
    %418 = vmatmul.mubr.f32.gmra.mrb[0].mxu0 %v202
    %v419 = vpop.f32.mrb[0].mxu0
    %v420 = vadd.f32 %v120, %v419
    %v421 = vpop.f32.mrb[0].mxu0
    %422 = vmatprep.mubr.f32.mxu0 0.0
    %423 = vmatmul.mubr.f32.gmra.mrb[0].mxu0 %v205
    %v424 = vpop.f32.mrb[0].mxu0
    %v425 = vadd.f32 %v120, %v424
    %v426 = vpop.f32.mrb[0].mxu0
    %427 = vmatprep.mubr.f32.mxu0 0.0
    %428 = vmatmul.mubr.f32.gmra.mrb[0].mxu0 %v208
    %v429 = vpop.f32.mrb[0].mxu0
    %v430 = vadd.f32 %v120, %v429
    %v431 = vpop.f32.mrb[0].mxu0
    %432 = vmatprep.mubr.f32.mxu0 0.0
    %433 = vmatmul.mubr.f32.gmra.mrb[0].mxu0 %v211
    %v434 = vpop.f32.mrb[0].mxu0
    %v435 = vadd.f32 %v120, %v434
    %v436 = vpop.f32.mrb[0].mxu0
    %437 = vmatprep.mubr.f32.mxu0 0.0
    %438 = vmatmul.mubr.f32.gmra.mrb[0].mxu0 %v214
    %v439 = vpop.f32.mrb[0].mxu0
    %v440 = vadd.f32 %v120, %v439
    %v441 = vpop.f32.mrb[0].mxu0
    %442 = vmatprep.mubr.f32.mxu0 0.0
    %443 = vmatmul.mubr.f32.gmra.mrb[0].mxu0 %v217
    %v444 = vpop.f32.mrb[0].mxu0
    %v445 = vadd.f32 %v120, %v444
    %v446 = vpop.f32.mrb[0].mxu0
    %447 = vdwg.mxu0
    %vm448 = vcmask 785408
    %449 = vst.msk [vmem:[#allocation2] sm:$0xff] %vm448, %v290
    %450 = vst.msk [vmem:[#allocation2 + $0x8] sm:$0xff] %vm448, %v295
    %451 = vst.msk [vmem:[#allocation2 + $0x10] sm:$0xff] %vm448, %v300
    %452 = vst.msk [vmem:[#allocation2 + $0x18] sm:$0xff] %vm448, %v305
    %453 = vst.msk [vmem:[#allocation2 + $0x20] sm:$0xff] %vm448, %v310
    %454 = vst.msk [vmem:[#allocation2 + $0x28] sm:$0xff] %vm448, %v315
    %455 = vst.msk [vmem:[#allocation2 + $0x30] sm:$0xff] %vm448, %v320
    %456 = vst.msk [vmem:[#allocation2 + $0x38] sm:$0xff] %vm448, %v325
    %457 = vst.msk [vmem:[#allocation2 + $0x40] sm:$0xff] %vm448, %v330
    %458 = vst.msk [vmem:[#allocation2 + $0x48] sm:$0xff] %vm448, %v335
    %459 = vst.msk [vmem:[#allocation2 + $0x50] sm:$0xff] %vm448, %v340
    %460 = vst.msk [vmem:[#allocation2 + $0x58] sm:$0xff] %vm448, %v345
    %461 = vst.msk [vmem:[#allocation2 + $0x60] sm:$0xff] %vm448, %v350
    %462 = vst.msk [vmem:[#allocation2 + $0x68] sm:$0xff] %vm448, %v355
    %463 = vst.msk [vmem:[#allocation2 + $0x70] sm:$0xff] %vm448, %v360
    %464 = vst.msk [vmem:[#allocation2 + $0x78] sm:$0xff] %vm448, %v365
    %465 = vst.msk [vmem:[#allocation2 + $0x80] sm:$0xff] %vm448, %v370
    %466 = vst.msk [vmem:[#allocation2 + $0x88] sm:$0xff] %vm448, %v375
    %467 = vst.msk [vmem:[#allocation2 + $0x90] sm:$0xff] %vm448, %v380
    %468 = vst.msk [vmem:[#allocation2 + $0x98] sm:$0xff] %vm448, %v385
    %469 = vst.msk [vmem:[#allocation2 + $0xa0] sm:$0xff] %vm448, %v390
    %470 = vst.msk [vmem:[#allocation2 + $0xa8] sm:$0xff] %vm448, %v395
    %471 = vst.msk [vmem:[#allocation2 + $0xb0] sm:$0xff] %vm448, %v400
    %472 = vst.msk [vmem:[#allocation2 + $0xb8] sm:$0xff] %vm448, %v405
    %473 = vst.msk [vmem:[#allocation2 + $0xc0] sm:$0xff] %vm448, %v410
    %474 = vst.msk [vmem:[#allocation2 + $0xc8] sm:$0xff] %vm448, %v415
    %475 = vst.msk [vmem:[#allocation2 + $0xd0] sm:$0xff] %vm448, %v420
    %476 = vst.msk [vmem:[#allocation2 + $0xd8] sm:$0xff] %vm448, %v425
    %477 = vst.msk [vmem:[#allocation2 + $0xe0] sm:$0xff] %vm448, %v430
    %478 = vst.msk [vmem:[#allocation2 + $0xe8] sm:$0xff] %vm448, %v435
    %479 = vst.msk [vmem:[#allocation2 + $0xf0] sm:$0xff] %vm448, %v440
    %480 = vst.msk [vmem:[#allocation2 + $0xf8] sm:$0xff] %vm448, %v445
    %v481 = vld [vmem:[%s2] sm:$0xff]
    %v482 = vld [vmem:[%s2 + $0x8] sm:$0xff]
    %v483 = vld [vmem:[%s2 + $0x10] sm:$0xff]
    %v484 = vld [vmem:[%s2 + $0x18] sm:$0xff]
    %v485 = vld [vmem:[%s4] sm:$0x1]
    loop: start=0, step=1, limit=16
    $region58: #{tpu_custom_call.1} parent=1 // loop_pre_header
      _
    $region59: #{tpu_custom_call.1} parent=1 // loop_header
      %s487 = sphi 0, %s491
      %p488 = scmp.ge.s32.totalorder %s487, 16
      %v492 = vphi 0.0, %v1602
      %v493 = vphi 0.0, %v1603
    $region60: #{tpu_custom_call.1} parent=1 // loop_header_branch
      %490 = sbr.rel (%p488) target = $region64
    $region61: #{tpu_custom_call.1} parent=1 // loop_body
      %s494 = smul.u32 %s487, 8
      %s495 = scalar_lea.vmem [#allocation2], %s494
      %v496 = vld [vmem:[%s495] sm:$0xff]
      %v497 = vld [vmem:[%s495 + $0x80] sm:$0xff]
      %v499 = vlaneseq
      %v500 = vshrl.u32 %v499, 7
      %v501 = vsub.s32 0, %v500
      %v502 = vrot.slane %v485, %v501
      %v506 = vrot.slane %v492, 7
      %v507 = vrot.slane %v493, 6
      %vm508 = vcmask 1041409
      %v509 = vsel %vm508, %v507, %v506
      %510 = vrot.lane.b32.xlu0 %v509, 96
      %v511 = vpop.permute.xlu0 %510
      %vm512 = vcmask 261120
      %v513 = vsel %vm512, %v511, 0
      %515 = vmatprep.subr.mxu0 0.0
      %516 = vmatpush1.msra.mxu0 %v481
      %517 = vmatprep.subr.mxu0 0.0
      %518 = vmatpush1.msra.mxu0 %v482
      %519 = vmatprep.subr.mxu0 0.0
      %520 = vmatpush1.msra.mxu0 %v483
      %521 = vmatprep.subr.mxu0 0.0
      %522 = vmatpush1.msra.mxu0 %v484
      %523 = vmatprep.subr.mxu0 0.0
      %524 = vmatpush1.msra.mxu0 0.0
      %525 = vmatprep.subr.mxu0 0.0
      %526 = vmatpush1.msra.mxu0 0.0
      %527 = vmatprep.subr.mxu0 0.0
      %528 = vmatpush1.msra.mxu0 0.0
      %529 = vmatprep.subr.mxu0 0.0
      %530 = vmatpush1.msra.mxu0 0.0
      %531 = vmatprep.subr.mxu0 0.0
      %532 = vmatpush1.msra.mxu0 0.0
      %533 = vmatprep.subr.mxu0 0.0
      %534 = vmatpush1.msra.mxu0 0.0
      %535 = vmatprep.subr.mxu0 0.0
      %536 = vmatpush1.msra.mxu0 0.0
      %537 = vmatprep.subr.mxu0 0.0
      %538 = vmatpush1.msra.mxu0 0.0
      %539 = vmatprep.subr.mxu0 0.0
      %540 = vmatpush1.msra.mxu0 0.0
      %541 = vmatprep.subr.mxu0 0.0
      %542 = vmatpush1.msra.mxu0 0.0
      %543 = vmatprep.subr.mxu0 0.0
      %544 = vmatpush1.msra.mxu0 0.0
      %545 = vmatprep.subr.mxu0 0.0
      %546 = vmatpush1.msra.mxu0 0.0
      %547 = vmatprep.subr.mxu0 0.0
      %548 = vmatpush1.msra.mxu0 0.0
      %549 = vmatprep.subr.mxu0 0.0
      %550 = vmatpush1.msra.mxu0 0.0
      %551 = vmatprep.subr.mxu0 0.0
      %552 = vmatpush1.msra.mxu0 0.0
      %553 = vmatprep.subr.mxu0 0.0
      %554 = vmatpush1.msra.mxu0 0.0
      %555 = vmatprep.subr.mxu0 0.0
      %556 = vmatpush1.msra.mxu0 0.0
      %557 = vmatprep.subr.mxu0 0.0
      %558 = vmatpush1.msra.mxu0 0.0
      %559 = vmatprep.subr.mxu0 0.0
      %560 = vmatpush1.msra.mxu0 0.0
      %561 = vmatprep.subr.mxu0 0.0
      %562 = vmatpush1.msra.mxu0 0.0
      %563 = vmatprep.subr.mxu0 0.0
      %564 = vmatpush1.msra.mxu0 0.0
      %565 = vmatprep.subr.mxu0 0.0
      %566 = vmatpush1.msra.mxu0 0.0
      %567 = vmatprep.subr.mxu0 0.0
      %568 = vmatpush1.msra.mxu0 0.0
      %569 = vmatprep.subr.mxu0 0.0
      %570 = vmatpush1.msra.mxu0 0.0
      %571 = vmatprep.subr.mxu0 0.0
      %572 = vmatpush1.msra.mxu0 0.0
      %573 = vmatprep.subr.mxu0 0.0
      %574 = vmatpush1.msra.mxu0 0.0
      %575 = vmatprep.subr.mxu0 0.0
      %576 = vmatpush1.msra.mxu0 0.0
      %577 = vmatprep.subr.mxu0 0.0
      %578 = vmatpush1.msra.mxu0 0.0
      %579 = vmatprep.mubr.f32.mxu0 0.0
      %580 = vmatmul.mubr.f32.gmra.mrb[0].mxu0 %v513
      %v581 = vpop.f32.mrb[0].mxu0
      %v582 = vadd.f32 %v502, %v581
      %v583 = vpop.f32.mrb[0].mxu0
      %584 = vdwg.mxu0
      %v586 = vrot.slane %v582, 1
      %v589 = vadd.f32 %v496, %v582
      %v590 = vadd.f32 %v497, %v586
      %v591 = vxor.u32 %v589, 2147483648
      %v592 = vxor.u32 %v590, 2147483648
      %v593 = vmul.f32 %v591, 1.442695
      %v594 = vpow.pop %v593
      %v595 = vmul.f32 %v592, 1.442695
      %v596 = vpow.pop %v595
      %v597 = vadd.f32 %v594, 1.0
      %v598 = vadd.f32 %v596, 1.0
      %v599 = vrcp.pop %v597
      %v600 = vmul.f32 1.0, %v599
      %v601 = vrcp.pop %v598
      %v602 = vmul.f32 1.0, %v601
      %603 = vrot.lane.b32.xlu0 %v582, 64
      %v604 = vpop.permute.xlu0 %603
      %605 = vrot.lane.b32.xlu0 %v586, 64
      %v606 = vpop.permute.xlu0 %605
      %v609 = vmul.f32 %v600, %v604
      %v610 = vmul.f32 %v602, %v606
      %613 = vrot.lane.b32.xlu0 %v609, 64
      %v614 = vpop.permute.xlu0 %613
      %615 = vrot.lane.b32.xlu0 %v610, 64
      %v616 = vpop.permute.xlu0 %615
      %v619 = vadd.f32 %v496, %v614
      %v620 = vadd.f32 %v497, %v616
      %v621 = vtanh.pop %v619
      %v622 = vtanh.pop %v620
      %v623 = vsub.f32 1.0, %v600
      %v624 = vsub.f32 1.0, %v602
      %627 = vrot.lane.b32.xlu0 %v621, 96
      %v628 = vpop.permute.xlu0 %627
      %629 = vrot.lane.b32.xlu0 %v622, 96
      %v630 = vpop.permute.xlu0 %629
      %v633 = vmul.f32 %v623, %v628
      %v634 = vmul.f32 %v624, %v630
      %v635 = vrot.slane %v493, 7
      %v638 = vmul.f32 %v600, %v506
      %v639 = vmul.f32 %v602, %v635
      %v640 = vadd.f32 %v633, %v638
      %v641 = vadd.f32 %v634, %v639
      %v644 = vrot.slane %v641, 7
      %v645 = vsel %vm508, %v644, %v640
      %646 = vrot.lane.b32.xlu0 %v645, 96
      %v647 = vpop.permute.xlu0 %646
      %v648 = vsel %vm512, %v647, 0
      %650 = vmatprep.subr.mxu0 0.0
      %651 = vmatpush1.msra.mxu0 %v481
      %652 = vmatprep.subr.mxu0 0.0
      %653 = vmatpush1.msra.mxu0 %v482
      %654 = vmatprep.subr.mxu0 0.0
      %655 = vmatpush1.msra.mxu0 %v483
      %656 = vmatprep.subr.mxu0 0.0
      %657 = vmatpush1.msra.mxu0 %v484
      %658 = vmatprep.subr.mxu0 0.0
      %659 = vmatpush1.msra.mxu0 0.0
      %660 = vmatprep.subr.mxu0 0.0
      %661 = vmatpush1.msra.mxu0 0.0
      %662 = vmatprep.subr.mxu0 0.0
      %663 = vmatpush1.msra.mxu0 0.0
      %664 = vmatprep.subr.mxu0 0.0
      %665 = vmatpush1.msra.mxu0 0.0
      %666 = vmatprep.subr.mxu0 0.0
      %667 = vmatpush1.msra.mxu0 0.0
      %668 = vmatprep.subr.mxu0 0.0
      %669 = vmatpush1.msra.mxu0 0.0
      %670 = vmatprep.subr.mxu0 0.0
      %671 = vmatpush1.msra.mxu0 0.0
      %672 = vmatprep.subr.mxu0 0.0
      %673 = vmatpush1.msra.mxu0 0.0
      %674 = vmatprep.subr.mxu0 0.0
      %675 = vmatpush1.msra.mxu0 0.0
      %676 = vmatprep.subr.mxu0 0.0
      %677 = vmatpush1.msra.mxu0 0.0
      %678 = vmatprep.subr.mxu0 0.0
      %679 = vmatpush1.msra.mxu0 0.0
      %680 = vmatprep.subr.mxu0 0.0
      %681 = vmatpush1.msra.mxu0 0.0
      %682 = vmatprep.subr.mxu0 0.0
      %683 = vmatpush1.msra.mxu0 0.0
      %684 = vmatprep.subr.mxu0 0.0
      %685 = vmatpush1.msra.mxu0 0.0
      %686 = vmatprep.subr.mxu0 0.0
      %687 = vmatpush1.msra.mxu0 0.0
      %688 = vmatprep.subr.mxu0 0.0
      %689 = vmatpush1.msra.mxu0 0.0
      %690 = vmatprep.subr.mxu0 0.0
      %691 = vmatpush1.msra.mxu0 0.0
      %692 = vmatprep.subr.mxu0 0.0
      %693 = vmatpush1.msra.mxu0 0.0
      %694 = vmatprep.subr.mxu0 0.0
      %695 = vmatpush1.msra.mxu0 0.0
      %696 = vmatprep.subr.mxu0 0.0
      %697 = vmatpush1.msra.mxu0 0.0
      %698 = vmatprep.subr.mxu0 0.0
      %699 = vmatpush1.msra.mxu0 0.0
      %700 = vmatprep.subr.mxu0 0.0
      %701 = vmatpush1.msra.mxu0 0.0
      %702 = vmatprep.subr.mxu0 0.0
      %703 = vmatpush1.msra.mxu0 0.0
      %704 = vmatprep.subr.mxu0 0.0
      %705 = vmatpush1.msra.mxu0 0.0
      %706 = vmatprep.subr.mxu0 0.0
      %707 = vmatpush1.msra.mxu0 0.0
      %708 = vmatprep.subr.mxu0 0.0
      %709 = vmatpush1.msra.mxu0 0.0
      %710 = vmatprep.subr.mxu0 0.0
      %711 = vmatpush1.msra.mxu0 0.0
      %712 = vmatprep.subr.mxu0 0.0
      %713 = vmatpush1.msra.mxu0 0.0
      %714 = vmatprep.mubr.f32.mxu0 0.0
      %715 = vmatmul.mubr.f32.gmra.mrb[0].mxu0 %v648
      %v716 = vpop.f32.mrb[0].mxu0
      %v717 = vadd.f32 %v502, %v716
      %v718 = vpop.f32.mrb[0].mxu0
      %719 = vdwg.mxu0
      %v721 = vrot.slane %v717, 7
      %v724 = vadd.f32 %v496, %v721
      %v725 = vadd.f32 %v497, %v717
      %v726 = vxor.u32 %v724, 2147483648
      %v727 = vxor.u32 %v725, 2147483648
      %v728 = vmul.f32 %v726, 1.442695
      %v729 = vpow.pop %v728
      %v730 = vmul.f32 %v727, 1.442695
      %v731 = vpow.pop %v730
      %v732 = vadd.f32 %v729, 1.0
      %v733 = vadd.f32 %v731, 1.0
      %v734 = vrcp.pop %v732
      %v735 = vmul.f32 1.0, %v734
      %v736 = vrcp.pop %v733
      %v737 = vmul.f32 1.0, %v736
      %738 = vrot.lane.b32.xlu0 %v721, 64
      %v739 = vpop.permute.xlu0 %738
      %740 = vrot.lane.b32.xlu0 %v717, 64
      %v741 = vpop.permute.xlu0 %740
      %v744 = vmul.f32 %v735, %v739
      %v745 = vmul.f32 %v737, %v741
      %748 = vrot.lane.b32.xlu0 %v744, 64
      %v749 = vpop.permute.xlu0 %748
      %750 = vrot.lane.b32.xlu0 %v745, 64
      %v751 = vpop.permute.xlu0 %750
      %v754 = vadd.f32 %v496, %v749
      %v755 = vadd.f32 %v497, %v751
      %v756 = vtanh.pop %v754
      %v757 = vtanh.pop %v755
      %v758 = vsub.f32 1.0, %v735
      %v759 = vsub.f32 1.0, %v737
      %762 = vrot.lane.b32.xlu0 %v756, 96
      %v763 = vpop.permute.xlu0 %762
      %764 = vrot.lane.b32.xlu0 %v757, 96
      %v765 = vpop.permute.xlu0 %764
      %v768 = vmul.f32 %v758, %v763
      %v769 = vmul.f32 %v759, %v765
      %v770 = vrot.slane %v640, 7
      %v773 = vmul.f32 %v735, %v770
      %v774 = vmul.f32 %v737, %v644
      %v775 = vadd.f32 %v768, %v773
      %v776 = vadd.f32 %v769, %v774
      %v779 = vrot.slane %v775, 1
      %v780 = vsel %vm508, %v776, %v779
      %781 = vrot.lane.b32.xlu0 %v780, 96
      %v782 = vpop.permute.xlu0 %781
      %v783 = vsel %vm512, %v782, 0
      %785 = vmatprep.subr.mxu0 0.0
      %786 = vmatpush1.msra.mxu0 %v481
      %787 = vmatprep.subr.mxu0 0.0
      %788 = vmatpush1.msra.mxu0 %v482
      %789 = vmatprep.subr.mxu0 0.0
      %790 = vmatpush1.msra.mxu0 %v483
      %791 = vmatprep.subr.mxu0 0.0
      %792 = vmatpush1.msra.mxu0 %v484
      %793 = vmatprep.subr.mxu0 0.0
      %794 = vmatpush1.msra.mxu0 0.0
      %795 = vmatprep.subr.mxu0 0.0
      %796 = vmatpush1.msra.mxu0 0.0
      %797 = vmatprep.subr.mxu0 0.0
      %798 = vmatpush1.msra.mxu0 0.0
      %799 = vmatprep.subr.mxu0 0.0
      %800 = vmatpush1.msra.mxu0 0.0
      %801 = vmatprep.subr.mxu0 0.0
      %802 = vmatpush1.msra.mxu0 0.0
      %803 = vmatprep.subr.mxu0 0.0
      %804 = vmatpush1.msra.mxu0 0.0
      %805 = vmatprep.subr.mxu0 0.0
      %806 = vmatpush1.msra.mxu0 0.0
      %807 = vmatprep.subr.mxu0 0.0
      %808 = vmatpush1.msra.mxu0 0.0
      %809 = vmatprep.subr.mxu0 0.0
      %810 = vmatpush1.msra.mxu0 0.0
      %811 = vmatprep.subr.mxu0 0.0
      %812 = vmatpush1.msra.mxu0 0.0
      %813 = vmatprep.subr.mxu0 0.0
      %814 = vmatpush1.msra.mxu0 0.0
      %815 = vmatprep.subr.mxu0 0.0
      %816 = vmatpush1.msra.mxu0 0.0
      %817 = vmatprep.subr.mxu0 0.0
      %818 = vmatpush1.msra.mxu0 0.0
      %819 = vmatprep.subr.mxu0 0.0
      %820 = vmatpush1.msra.mxu0 0.0
      %821 = vmatprep.subr.mxu0 0.0
      %822 = vmatpush1.msra.mxu0 0.0
      %823 = vmatprep.subr.mxu0 0.0
      %824 = vmatpush1.msra.mxu0 0.0
      %825 = vmatprep.subr.mxu0 0.0
      %826 = vmatpush1.msra.mxu0 0.0
      %827 = vmatprep.subr.mxu0 0.0
      %828 = vmatpush1.msra.mxu0 0.0
      %829 = vmatprep.subr.mxu0 0.0
      %830 = vmatpush1.msra.mxu0 0.0
      %831 = vmatprep.subr.mxu0 0.0
      %832 = vmatpush1.msra.mxu0 0.0
      %833 = vmatprep.subr.mxu0 0.0
      %834 = vmatpush1.msra.mxu0 0.0
      %835 = vmatprep.subr.mxu0 0.0
      %836 = vmatpush1.msra.mxu0 0.0
      %837 = vmatprep.subr.mxu0 0.0
      %838 = vmatpush1.msra.mxu0 0.0
      %839 = vmatprep.subr.mxu0 0.0
      %840 = vmatpush1.msra.mxu0 0.0
      %841 = vmatprep.subr.mxu0 0.0
      %842 = vmatpush1.msra.mxu0 0.0
      %843 = vmatprep.subr.mxu0 0.0
      %844 = vmatpush1.msra.mxu0 0.0
      %845 = vmatprep.subr.mxu0 0.0
      %846 = vmatpush1.msra.mxu0 0.0
      %847 = vmatprep.subr.mxu0 0.0
      %848 = vmatpush1.msra.mxu0 0.0
      %849 = vmatprep.mubr.f32.mxu0 0.0
      %850 = vmatmul.mubr.f32.gmra.mrb[0].mxu0 %v783
      %v851 = vpop.f32.mrb[0].mxu0
      %v852 = vadd.f32 %v502, %v851
      %v853 = vpop.f32.mrb[0].mxu0
      %854 = vdwg.mxu0
      %v856 = vrot.slane %v852, 6
      %v857 = vrot.slane %v852, 7
      %v860 = vadd.f32 %v496, %v856
      %v861 = vadd.f32 %v497, %v857
      %v862 = vxor.u32 %v860, 2147483648
      %v863 = vxor.u32 %v861, 2147483648
      %v864 = vmul.f32 %v862, 1.442695
      %v865 = vpow.pop %v864
      %v866 = vmul.f32 %v863, 1.442695
      %v867 = vpow.pop %v866
      %v868 = vadd.f32 %v865, 1.0
      %v869 = vadd.f32 %v867, 1.0
      %v870 = vrcp.pop %v868
      %v871 = vmul.f32 1.0, %v870
      %v872 = vrcp.pop %v869
      %v873 = vmul.f32 1.0, %v872
      %874 = vrot.lane.b32.xlu0 %v856, 64
      %v875 = vpop.permute.xlu0 %874
      %876 = vrot.lane.b32.xlu0 %v857, 64
      %v877 = vpop.permute.xlu0 %876
      %v880 = vmul.f32 %v871, %v875
      %v881 = vmul.f32 %v873, %v877
      %884 = vrot.lane.b32.xlu0 %v880, 64
      %v885 = vpop.permute.xlu0 %884
      %886 = vrot.lane.b32.xlu0 %v881, 64
      %v887 = vpop.permute.xlu0 %886
      %v890 = vadd.f32 %v496, %v885
      %v891 = vadd.f32 %v497, %v887
      %v892 = vtanh.pop %v890
      %v893 = vtanh.pop %v891
      %v894 = vsub.f32 1.0, %v871
      %v895 = vsub.f32 1.0, %v873
      %898 = vrot.lane.b32.xlu0 %v892, 96
      %v899 = vpop.permute.xlu0 %898
      %900 = vrot.lane.b32.xlu0 %v893, 96
      %v901 = vpop.permute.xlu0 %900
      %v904 = vmul.f32 %v894, %v899
      %v905 = vmul.f32 %v895, %v901
      %v906 = vrot.slane %v775, 7
      %v907 = vrot.slane %v776, 7
      %v910 = vmul.f32 %v871, %v906
      %v911 = vmul.f32 %v873, %v907
      %v912 = vadd.f32 %v904, %v910
      %v913 = vadd.f32 %v905, %v911
      %v916 = vrot.slane %v912, 2
      %v917 = vrot.slane %v913, 1
      %v918 = vsel %vm508, %v917, %v916
      %919 = vrot.lane.b32.xlu0 %v918, 96
      %v920 = vpop.permute.xlu0 %919
      %v921 = vsel %vm512, %v920, 0
      %923 = vmatprep.subr.mxu0 0.0
      %924 = vmatpush1.msra.mxu0 %v481
      %925 = vmatprep.subr.mxu0 0.0
      %926 = vmatpush1.msra.mxu0 %v482
      %927 = vmatprep.subr.mxu0 0.0
      %928 = vmatpush1.msra.mxu0 %v483
      %929 = vmatprep.subr.mxu0 0.0
      %930 = vmatpush1.msra.mxu0 %v484
      %931 = vmatprep.subr.mxu0 0.0
      %932 = vmatpush1.msra.mxu0 0.0
      %933 = vmatprep.subr.mxu0 0.0
      %934 = vmatpush1.msra.mxu0 0.0
      %935 = vmatprep.subr.mxu0 0.0
      %936 = vmatpush1.msra.mxu0 0.0
      %937 = vmatprep.subr.mxu0 0.0
      %938 = vmatpush1.msra.mxu0 0.0
      %939 = vmatprep.subr.mxu0 0.0
      %940 = vmatpush1.msra.mxu0 0.0
      %941 = vmatprep.subr.mxu0 0.0
      %942 = vmatpush1.msra.mxu0 0.0
      %943 = vmatprep.subr.mxu0 0.0
      %944 = vmatpush1.msra.mxu0 0.0
      %945 = vmatprep.subr.mxu0 0.0
      %946 = vmatpush1.msra.mxu0 0.0
      %947 = vmatprep.subr.mxu0 0.0
      %948 = vmatpush1.msra.mxu0 0.0
      %949 = vmatprep.subr.mxu0 0.0
      %950 = vmatpush1.msra.mxu0 0.0
      %951 = vmatprep.subr.mxu0 0.0
      %952 = vmatpush1.msra.mxu0 0.0
      %953 = vmatprep.subr.mxu0 0.0
      %954 = vmatpush1.msra.mxu0 0.0
      %955 = vmatprep.subr.mxu0 0.0
      %956 = vmatpush1.msra.mxu0 0.0
      %957 = vmatprep.subr.mxu0 0.0
      %958 = vmatpush1.msra.mxu0 0.0
      %959 = vmatprep.subr.mxu0 0.0
      %960 = vmatpush1.msra.mxu0 0.0
      %961 = vmatprep.subr.mxu0 0.0
      %962 = vmatpush1.msra.mxu0 0.0
      %963 = vmatprep.subr.mxu0 0.0
      %964 = vmatpush1.msra.mxu0 0.0
      %965 = vmatprep.subr.mxu0 0.0
      %966 = vmatpush1.msra.mxu0 0.0
      %967 = vmatprep.subr.mxu0 0.0
      %968 = vmatpush1.msra.mxu0 0.0
      %969 = vmatprep.subr.mxu0 0.0
      %970 = vmatpush1.msra.mxu0 0.0
      %971 = vmatprep.subr.mxu0 0.0
      %972 = vmatpush1.msra.mxu0 0.0
      %973 = vmatprep.subr.mxu0 0.0
      %974 = vmatpush1.msra.mxu0 0.0
      %975 = vmatprep.subr.mxu0 0.0
      %976 = vmatpush1.msra.mxu0 0.0
      %977 = vmatprep.subr.mxu0 0.0
      %978 = vmatpush1.msra.mxu0 0.0
      %979 = vmatprep.subr.mxu0 0.0
      %980 = vmatpush1.msra.mxu0 0.0
      %981 = vmatprep.subr.mxu0 0.0
      %982 = vmatpush1.msra.mxu0 0.0
      %983 = vmatprep.subr.mxu0 0.0
      %984 = vmatpush1.msra.mxu0 0.0
      %985 = vmatprep.subr.mxu0 0.0
      %986 = vmatpush1.msra.mxu0 0.0
      %987 = vmatprep.mubr.f32.mxu0 0.0
      %988 = vmatmul.mubr.f32.gmra.mrb[0].mxu0 %v921
      %v989 = vpop.f32.mrb[0].mxu0
      %v990 = vadd.f32 %v502, %v989
      %v991 = vpop.f32.mrb[0].mxu0
      %992 = vdwg.mxu0
      %v994 = vrot.slane %v990, 5
      %v995 = vrot.slane %v990, 6
      %v998 = vadd.f32 %v496, %v994
      %v999 = vadd.f32 %v497, %v995
      %v1000 = vxor.u32 %v998, 2147483648
      %v1001 = vxor.u32 %v999, 2147483648
      %v1002 = vmul.f32 %v1000, 1.442695
      %v1003 = vpow.pop %v1002
      %v1004 = vmul.f32 %v1001, 1.442695
      %v1005 = vpow.pop %v1004
      %v1006 = vadd.f32 %v1003, 1.0
      %v1007 = vadd.f32 %v1005, 1.0
      %v1008 = vrcp.pop %v1006
      %v1009 = vmul.f32 1.0, %v1008
      %v1010 = vrcp.pop %v1007
      %v1011 = vmul.f32 1.0, %v1010
      %1012 = vrot.lane.b32.xlu0 %v994, 64
      %v1013 = vpop.permute.xlu0 %1012
      %1014 = vrot.lane.b32.xlu0 %v995, 64
      %v1015 = vpop.permute.xlu0 %1014
      %v1018 = vmul.f32 %v1009, %v1013
      %v1019 = vmul.f32 %v1011, %v1015
      %1022 = vrot.lane.b32.xlu0 %v1018, 64
      %v1023 = vpop.permute.xlu0 %1022
      %1024 = vrot.lane.b32.xlu0 %v1019, 64
      %v1025 = vpop.permute.xlu0 %1024
      %v1028 = vadd.f32 %v496, %v1023
      %v1029 = vadd.f32 %v497, %v1025
      %v1030 = vtanh.pop %v1028
      %v1031 = vtanh.pop %v1029
      %v1032 = vsub.f32 1.0, %v1009
      %v1033 = vsub.f32 1.0, %v1011
      %1036 = vrot.lane.b32.xlu0 %v1030, 96
      %v1037 = vpop.permute.xlu0 %1036
      %1038 = vrot.lane.b32.xlu0 %v1031, 96
      %v1039 = vpop.permute.xlu0 %1038
      %v1042 = vmul.f32 %v1032, %v1037
      %v1043 = vmul.f32 %v1033, %v1039
      %v1044 = vrot.slane %v912, 7
      %v1045 = vrot.slane %v913, 7
      %v1048 = vmul.f32 %v1009, %v1044
      %v1049 = vmul.f32 %v1011, %v1045
      %v1050 = vadd.f32 %v1042, %v1048
      %v1051 = vadd.f32 %v1043, %v1049
      %v1054 = vrot.slane %v1050, 3
      %v1055 = vrot.slane %v1051, 2
      %v1056 = vsel %vm508, %v1055, %v1054
      %1057 = vrot.lane.b32.xlu0 %v1056, 96
      %v1058 = vpop.permute.xlu0 %1057
      %v1059 = vsel %vm512, %v1058, 0
      %1061 = vmatprep.subr.mxu0 0.0
      %1062 = vmatpush1.msra.mxu0 %v481
      %1063 = vmatprep.subr.mxu0 0.0
      %1064 = vmatpush1.msra.mxu0 %v482
      %1065 = vmatprep.subr.mxu0 0.0
      %1066 = vmatpush1.msra.mxu0 %v483
      %1067 = vmatprep.subr.mxu0 0.0
      %1068 = vmatpush1.msra.mxu0 %v484
      %1069 = vmatprep.subr.mxu0 0.0
      %1070 = vmatpush1.msra.mxu0 0.0
      %1071 = vmatprep.subr.mxu0 0.0
      %1072 = vmatpush1.msra.mxu0 0.0
      %1073 = vmatprep.subr.mxu0 0.0
      %1074 = vmatpush1.msra.mxu0 0.0
      %1075 = vmatprep.subr.mxu0 0.0
      %1076 = vmatpush1.msra.mxu0 0.0
      %1077 = vmatprep.subr.mxu0 0.0
      %1078 = vmatpush1.msra.mxu0 0.0
      %1079 = vmatprep.subr.mxu0 0.0
      %1080 = vmatpush1.msra.mxu0 0.0
      %1081 = vmatprep.subr.mxu0 0.0
      %1082 = vmatpush1.msra.mxu0 0.0
      %1083 = vmatprep.subr.mxu0 0.0
      %1084 = vmatpush1.msra.mxu0 0.0
      %1085 = vmatprep.subr.mxu0 0.0
      %1086 = vmatpush1.msra.mxu0 0.0
      %1087 = vmatprep.subr.mxu0 0.0
      %1088 = vmatpush1.msra.mxu0 0.0
      %1089 = vmatprep.subr.mxu0 0.0
      %1090 = vmatpush1.msra.mxu0 0.0
      %1091 = vmatprep.subr.mxu0 0.0
      %1092 = vmatpush1.msra.mxu0 0.0
      %1093 = vmatprep.subr.mxu0 0.0
      %1094 = vmatpush1.msra.mxu0 0.0
      %1095 = vmatprep.subr.mxu0 0.0
      %1096 = vmatpush1.msra.mxu0 0.0
      %1097 = vmatprep.subr.mxu0 0.0
      %1098 = vmatpush1.msra.mxu0 0.0
      %1099 = vmatprep.subr.mxu0 0.0
      %1100 = vmatpush1.msra.mxu0 0.0
      %1101 = vmatprep.subr.mxu0 0.0
      %1102 = vmatpush1.msra.mxu0 0.0
      %1103 = vmatprep.subr.mxu0 0.0
      %1104 = vmatpush1.msra.mxu0 0.0
      %1105 = vmatprep.subr.mxu0 0.0
      %1106 = vmatpush1.msra.mxu0 0.0
      %1107 = vmatprep.subr.mxu0 0.0
      %1108 = vmatpush1.msra.mxu0 0.0
      %1109 = vmatprep.subr.mxu0 0.0
      %1110 = vmatpush1.msra.mxu0 0.0
      %1111 = vmatprep.subr.mxu0 0.0
      %1112 = vmatpush1.msra.mxu0 0.0
      %1113 = vmatprep.subr.mxu0 0.0
      %1114 = vmatpush1.msra.mxu0 0.0
      %1115 = vmatprep.subr.mxu0 0.0
      %1116 = vmatpush1.msra.mxu0 0.0
      %1117 = vmatprep.subr.mxu0 0.0
      %1118 = vmatpush1.msra.mxu0 0.0
      %1119 = vmatprep.subr.mxu0 0.0
      %1120 = vmatpush1.msra.mxu0 0.0
      %1121 = vmatprep.subr.mxu0 0.0
      %1122 = vmatpush1.msra.mxu0 0.0
      %1123 = vmatprep.subr.mxu0 0.0
      %1124 = vmatpush1.msra.mxu0 0.0
      %1125 = vmatprep.mubr.f32.mxu0 0.0
      %1126 = vmatmul.mubr.f32.gmra.mrb[0].mxu0 %v1059
      %v1127 = vpop.f32.mrb[0].mxu0
      %v1128 = vadd.f32 %v502, %v1127
      %v1129 = vpop.f32.mrb[0].mxu0
      %1130 = vdwg.mxu0
      %v1132 = vrot.slane %v1128, 4
      %v1133 = vrot.slane %v1128, 5
      %v1136 = vadd.f32 %v496, %v1132
      %v1137 = vadd.f32 %v497, %v1133
      %v1138 = vxor.u32 %v1136, 2147483648
      %v1139 = vxor.u32 %v1137, 2147483648
      %v1140 = vmul.f32 %v1138, 1.442695
      %v1141 = vpow.pop %v1140
      %v1142 = vmul.f32 %v1139, 1.442695
      %v1143 = vpow.pop %v1142
      %v1144 = vadd.f32 %v1141, 1.0
      %v1145 = vadd.f32 %v1143, 1.0
      %v1146 = vrcp.pop %v1144
      %v1147 = vmul.f32 1.0, %v1146
      %v1148 = vrcp.pop %v1145
      %v1149 = vmul.f32 1.0, %v1148
      %1150 = vrot.lane.b32.xlu0 %v1132, 64
      %v1151 = vpop.permute.xlu0 %1150
      %1152 = vrot.lane.b32.xlu0 %v1133, 64
      %v1153 = vpop.permute.xlu0 %1152
      %v1156 = vmul.f32 %v1147, %v1151
      %v1157 = vmul.f32 %v1149, %v1153
      %1160 = vrot.lane.b32.xlu0 %v1156, 64
      %v1161 = vpop.permute.xlu0 %1160
      %1162 = vrot.lane.b32.xlu0 %v1157, 64
      %v1163 = vpop.permute.xlu0 %1162
      %v1166 = vadd.f32 %v496, %v1161
      %v1167 = vadd.f32 %v497, %v1163
      %v1168 = vtanh.pop %v1166
      %v1169 = vtanh.pop %v1167
      %v1170 = vsub.f32 1.0, %v1147
      %v1171 = vsub.f32 1.0, %v1149
      %1174 = vrot.lane.b32.xlu0 %v1168, 96
      %v1175 = vpop.permute.xlu0 %1174
      %1176 = vrot.lane.b32.xlu0 %v1169, 96
      %v1177 = vpop.permute.xlu0 %1176
      %v1180 = vmul.f32 %v1170, %v1175
      %v1181 = vmul.f32 %v1171, %v1177
      %v1182 = vrot.slane %v1050, 7
      %v1183 = vrot.slane %v1051, 7
      %v1186 = vmul.f32 %v1147, %v1182
      %v1187 = vmul.f32 %v1149, %v1183
      %v1188 = vadd.f32 %v1180, %v1186
      %v1189 = vadd.f32 %v1181, %v1187
      %v1192 = vrot.slane %v1188, 4
      %v1193 = vrot.slane %v1189, 3
      %v1194 = vsel %vm508, %v1193, %v1192
      %1195 = vrot.lane.b32.xlu0 %v1194, 96
      %v1196 = vpop.permute.xlu0 %1195
      %v1197 = vsel %vm512, %v1196, 0
      %1199 = vmatprep.subr.mxu0 0.0
      %1200 = vmatpush1.msra.mxu0 %v481
      %1201 = vmatprep.subr.mxu0 0.0
      %1202 = vmatpush1.msra.mxu0 %v482
      %1203 = vmatprep.subr.mxu0 0.0
      %1204 = vmatpush1.msra.mxu0 %v483
      %1205 = vmatprep.subr.mxu0 0.0
      %1206 = vmatpush1.msra.mxu0 %v484
      %1207 = vmatprep.subr.mxu0 0.0
      %1208 = vmatpush1.msra.mxu0 0.0
      %1209 = vmatprep.subr.mxu0 0.0
      %1210 = vmatpush1.msra.mxu0 0.0
      %1211 = vmatprep.subr.mxu0 0.0
      %1212 = vmatpush1.msra.mxu0 0.0
      %1213 = vmatprep.subr.mxu0 0.0
      %1214 = vmatpush1.msra.mxu0 0.0
      %1215 = vmatprep.subr.mxu0 0.0
      %1216 = vmatpush1.msra.mxu0 0.0
      %1217 = vmatprep.subr.mxu0 0.0
      %1218 = vmatpush1.msra.mxu0 0.0
      %1219 = vmatprep.subr.mxu0 0.0
      %1220 = vmatpush1.msra.mxu0 0.0
      %1221 = vmatprep.subr.mxu0 0.0
      %1222 = vmatpush1.msra.mxu0 0.0
      %1223 = vmatprep.subr.mxu0 0.0
      %1224 = vmatpush1.msra.mxu0 0.0
      %1225 = vmatprep.subr.mxu0 0.0
      %1226 = vmatpush1.msra.mxu0 0.0
      %1227 = vmatprep.subr.mxu0 0.0
      %1228 = vmatpush1.msra.mxu0 0.0
      %1229 = vmatprep.subr.mxu0 0.0
      %1230 = vmatpush1.msra.mxu0 0.0
      %1231 = vmatprep.subr.mxu0 0.0
      %1232 = vmatpush1.msra.mxu0 0.0
      %1233 = vmatprep.subr.mxu0 0.0
      %1234 = vmatpush1.msra.mxu0 0.0
      %1235 = vmatprep.subr.mxu0 0.0
      %1236 = vmatpush1.msra.mxu0 0.0
      %1237 = vmatprep.subr.mxu0 0.0
      %1238 = vmatpush1.msra.mxu0 0.0
      %1239 = vmatprep.subr.mxu0 0.0
      %1240 = vmatpush1.msra.mxu0 0.0
      %1241 = vmatprep.subr.mxu0 0.0
      %1242 = vmatpush1.msra.mxu0 0.0
      %1243 = vmatprep.subr.mxu0 0.0
      %1244 = vmatpush1.msra.mxu0 0.0
      %1245 = vmatprep.subr.mxu0 0.0
      %1246 = vmatpush1.msra.mxu0 0.0
      %1247 = vmatprep.subr.mxu0 0.0
      %1248 = vmatpush1.msra.mxu0 0.0
      %1249 = vmatprep.subr.mxu0 0.0
      %1250 = vmatpush1.msra.mxu0 0.0
      %1251 = vmatprep.subr.mxu0 0.0
      %1252 = vmatpush1.msra.mxu0 0.0
      %1253 = vmatprep.subr.mxu0 0.0
      %1254 = vmatpush1.msra.mxu0 0.0
      %1255 = vmatprep.subr.mxu0 0.0
      %1256 = vmatpush1.msra.mxu0 0.0
      %1257 = vmatprep.subr.mxu0 0.0
      %1258 = vmatpush1.msra.mxu0 0.0
      %1259 = vmatprep.subr.mxu0 0.0
      %1260 = vmatpush1.msra.mxu0 0.0
      %1261 = vmatprep.subr.mxu0 0.0
      %1262 = vmatpush1.msra.mxu0 0.0
      %1263 = vmatprep.mubr.f32.mxu0 0.0
      %1264 = vmatmul.mubr.f32.gmra.mrb[0].mxu0 %v1197
      %v1265 = vpop.f32.mrb[0].mxu0
      %v1266 = vadd.f32 %v502, %v1265
      %v1267 = vpop.f32.mrb[0].mxu0
      %1268 = vdwg.mxu0
      %v1270 = vrot.slane %v1266, 3
      %v1271 = vrot.slane %v1266, 4
      %v1274 = vadd.f32 %v496, %v1270
      %v1275 = vadd.f32 %v497, %v1271
      %v1276 = vxor.u32 %v1274, 2147483648
      %v1277 = vxor.u32 %v1275, 2147483648
      %v1278 = vmul.f32 %v1276, 1.442695
      %v1279 = vpow.pop %v1278
      %v1280 = vmul.f32 %v1277, 1.442695
      %v1281 = vpow.pop %v1280
      %v1282 = vadd.f32 %v1279, 1.0
      %v1283 = vadd.f32 %v1281, 1.0
      %v1284 = vrcp.pop %v1282
      %v1285 = vmul.f32 1.0, %v1284
      %v1286 = vrcp.pop %v1283
      %v1287 = vmul.f32 1.0, %v1286
      %1288 = vrot.lane.b32.xlu0 %v1270, 64
      %v1289 = vpop.permute.xlu0 %1288
      %1290 = vrot.lane.b32.xlu0 %v1271, 64
      %v1291 = vpop.permute.xlu0 %1290
      %v1294 = vmul.f32 %v1285, %v1289
      %v1295 = vmul.f32 %v1287, %v1291
      %1298 = vrot.lane.b32.xlu0 %v1294, 64
      %v1299 = vpop.permute.xlu0 %1298
      %1300 = vrot.lane.b32.xlu0 %v1295, 64
      %v1301 = vpop.permute.xlu0 %1300
      %v1304 = vadd.f32 %v496, %v1299
      %v1305 = vadd.f32 %v497, %v1301
      %v1306 = vtanh.pop %v1304
      %v1307 = vtanh.pop %v1305
      %v1308 = vsub.f32 1.0, %v1285
      %v1309 = vsub.f32 1.0, %v1287
      %1312 = vrot.lane.b32.xlu0 %v1306, 96
      %v1313 = vpop.permute.xlu0 %1312
      %1314 = vrot.lane.b32.xlu0 %v1307, 96
      %v1315 = vpop.permute.xlu0 %1314
      %v1318 = vmul.f32 %v1308, %v1313
      %v1319 = vmul.f32 %v1309, %v1315
      %v1320 = vrot.slane %v1188, 7
      %v1321 = vrot.slane %v1189, 7
      %v1324 = vmul.f32 %v1285, %v1320
      %v1325 = vmul.f32 %v1287, %v1321
      %v1326 = vadd.f32 %v1318, %v1324
      %v1327 = vadd.f32 %v1319, %v1325
      %v1330 = vrot.slane %v1326, 5
      %v1331 = vrot.slane %v1327, 4
      %v1332 = vsel %vm508, %v1331, %v1330
      %1333 = vrot.lane.b32.xlu0 %v1332, 96
      %v1334 = vpop.permute.xlu0 %1333
      %v1335 = vsel %vm512, %v1334, 0
      %1337 = vmatprep.subr.mxu0 0.0
      %1338 = vmatpush1.msra.mxu0 %v481
      %1339 = vmatprep.subr.mxu0 0.0
      %1340 = vmatpush1.msra.mxu0 %v482
      %1341 = vmatprep.subr.mxu0 0.0
      %1342 = vmatpush1.msra.mxu0 %v483
      %1343 = vmatprep.subr.mxu0 0.0
      %1344 = vmatpush1.msra.mxu0 %v484
      %1345 = vmatprep.subr.mxu0 0.0
      %1346 = vmatpush1.msra.mxu0 0.0
      %1347 = vmatprep.subr.mxu0 0.0
      %1348 = vmatpush1.msra.mxu0 0.0
      %1349 = vmatprep.subr.mxu0 0.0
      %1350 = vmatpush1.msra.mxu0 0.0
      %1351 = vmatprep.subr.mxu0 0.0
      %1352 = vmatpush1.msra.mxu0 0.0
      %1353 = vmatprep.subr.mxu0 0.0
      %1354 = vmatpush1.msra.mxu0 0.0
      %1355 = vmatprep.subr.mxu0 0.0
      %1356 = vmatpush1.msra.mxu0 0.0
      %1357 = vmatprep.subr.mxu0 0.0
      %1358 = vmatpush1.msra.mxu0 0.0
      %1359 = vmatprep.subr.mxu0 0.0
      %1360 = vmatpush1.msra.mxu0 0.0
      %1361 = vmatprep.subr.mxu0 0.0
      %1362 = vmatpush1.msra.mxu0 0.0
      %1363 = vmatprep.subr.mxu0 0.0
      %1364 = vmatpush1.msra.mxu0 0.0
      %1365 = vmatprep.subr.mxu0 0.0
      %1366 = vmatpush1.msra.mxu0 0.0
      %1367 = vmatprep.subr.mxu0 0.0
      %1368 = vmatpush1.msra.mxu0 0.0
      %1369 = vmatprep.subr.mxu0 0.0
      %1370 = vmatpush1.msra.mxu0 0.0
      %1371 = vmatprep.subr.mxu0 0.0
      %1372 = vmatpush1.msra.mxu0 0.0
      %1373 = vmatprep.subr.mxu0 0.0
      %1374 = vmatpush1.msra.mxu0 0.0
      %1375 = vmatprep.subr.mxu0 0.0
      %1376 = vmatpush1.msra.mxu0 0.0
      %1377 = vmatprep.subr.mxu0 0.0
      %1378 = vmatpush1.msra.mxu0 0.0
      %1379 = vmatprep.subr.mxu0 0.0
      %1380 = vmatpush1.msra.mxu0 0.0
      %1381 = vmatprep.subr.mxu0 0.0
      %1382 = vmatpush1.msra.mxu0 0.0
      %1383 = vmatprep.subr.mxu0 0.0
      %1384 = vmatpush1.msra.mxu0 0.0
      %1385 = vmatprep.subr.mxu0 0.0
      %1386 = vmatpush1.msra.mxu0 0.0
      %1387 = vmatprep.subr.mxu0 0.0
      %1388 = vmatpush1.msra.mxu0 0.0
      %1389 = vmatprep.subr.mxu0 0.0
      %1390 = vmatpush1.msra.mxu0 0.0
      %1391 = vmatprep.subr.mxu0 0.0
      %1392 = vmatpush1.msra.mxu0 0.0
      %1393 = vmatprep.subr.mxu0 0.0
      %1394 = vmatpush1.msra.mxu0 0.0
      %1395 = vmatprep.subr.mxu0 0.0
      %1396 = vmatpush1.msra.mxu0 0.0
      %1397 = vmatprep.subr.mxu0 0.0
      %1398 = vmatpush1.msra.mxu0 0.0
      %1399 = vmatprep.subr.mxu0 0.0
      %1400 = vmatpush1.msra.mxu0 0.0
      %1401 = vmatprep.mubr.f32.mxu0 0.0
      %1402 = vmatmul.mubr.f32.gmra.mrb[0].mxu0 %v1335
      %v1403 = vpop.f32.mrb[0].mxu0
      %v1404 = vadd.f32 %v502, %v1403
      %v1405 = vpop.f32.mrb[0].mxu0
      %1406 = vdwg.mxu0
      %v1408 = vrot.slane %v1404, 2
      %v1409 = vrot.slane %v1404, 3
      %v1412 = vadd.f32 %v496, %v1408
      %v1413 = vadd.f32 %v497, %v1409
      %v1414 = vxor.u32 %v1412, 2147483648
      %v1415 = vxor.u32 %v1413, 2147483648
      %v1416 = vmul.f32 %v1414, 1.442695
      %v1417 = vpow.pop %v1416
      %v1418 = vmul.f32 %v1415, 1.442695
      %v1419 = vpow.pop %v1418
      %v1420 = vadd.f32 %v1417, 1.0
      %v1421 = vadd.f32 %v1419, 1.0
      %v1422 = vrcp.pop %v1420
      %v1423 = vmul.f32 1.0, %v1422
      %v1424 = vrcp.pop %v1421
      %v1425 = vmul.f32 1.0, %v1424
      %1426 = vrot.lane.b32.xlu0 %v1408, 64
      %v1427 = vpop.permute.xlu0 %1426
      %1428 = vrot.lane.b32.xlu0 %v1409, 64
      %v1429 = vpop.permute.xlu0 %1428
      %v1432 = vmul.f32 %v1423, %v1427
      %v1433 = vmul.f32 %v1425, %v1429
      %1436 = vrot.lane.b32.xlu0 %v1432, 64
      %v1437 = vpop.permute.xlu0 %1436
      %1438 = vrot.lane.b32.xlu0 %v1433, 64
      %v1439 = vpop.permute.xlu0 %1438
      %v1442 = vadd.f32 %v496, %v1437
      %v1443 = vadd.f32 %v497, %v1439
      %v1444 = vtanh.pop %v1442
      %v1445 = vtanh.pop %v1443
      %v1446 = vsub.f32 1.0, %v1423
      %v1447 = vsub.f32 1.0, %v1425
      %1450 = vrot.lane.b32.xlu0 %v1444, 96
      %v1451 = vpop.permute.xlu0 %1450
      %1452 = vrot.lane.b32.xlu0 %v1445, 96
      %v1453 = vpop.permute.xlu0 %1452
      %v1456 = vmul.f32 %v1446, %v1451
      %v1457 = vmul.f32 %v1447, %v1453
      %v1458 = vrot.slane %v1326, 7
      %v1459 = vrot.slane %v1327, 7
      %v1462 = vmul.f32 %v1423, %v1458
      %v1463 = vmul.f32 %v1425, %v1459
      %v1464 = vadd.f32 %v1456, %v1462
      %v1465 = vadd.f32 %v1457, %v1463
      %v1468 = vrot.slane %v1464, 6
      %v1469 = vrot.slane %v1465, 5
      %v1470 = vsel %vm508, %v1469, %v1468
      %1471 = vrot.lane.b32.xlu0 %v1470, 96
      %v1472 = vpop.permute.xlu0 %1471
      %v1473 = vsel %vm512, %v1472, 0
      %1475 = vmatprep.subr.mxu0 0.0
      %1476 = vmatpush1.msra.mxu0 %v481
      %1477 = vmatprep.subr.mxu0 0.0
      %1478 = vmatpush1.msra.mxu0 %v482
      %1479 = vmatprep.subr.mxu0 0.0
      %1480 = vmatpush1.msra.mxu0 %v483
      %1481 = vmatprep.subr.mxu0 0.0
      %1482 = vmatpush1.msra.mxu0 %v484
      %1483 = vmatprep.subr.mxu0 0.0
      %1484 = vmatpush1.msra.mxu0 0.0
      %1485 = vmatprep.subr.mxu0 0.0
      %1486 = vmatpush1.msra.mxu0 0.0
      %1487 = vmatprep.subr.mxu0 0.0
      %1488 = vmatpush1.msra.mxu0 0.0
      %1489 = vmatprep.subr.mxu0 0.0
      %1490 = vmatpush1.msra.mxu0 0.0
      %1491 = vmatprep.subr.mxu0 0.0
      %1492 = vmatpush1.msra.mxu0 0.0
      %1493 = vmatprep.subr.mxu0 0.0
      %1494 = vmatpush1.msra.mxu0 0.0
      %1495 = vmatprep.subr.mxu0 0.0
      %1496 = vmatpush1.msra.mxu0 0.0
      %1497 = vmatprep.subr.mxu0 0.0
      %1498 = vmatpush1.msra.mxu0 0.0
      %1499 = vmatprep.subr.mxu0 0.0
      %1500 = vmatpush1.msra.mxu0 0.0
      %1501 = vmatprep.subr.mxu0 0.0
      %1502 = vmatpush1.msra.mxu0 0.0
      %1503 = vmatprep.subr.mxu0 0.0
      %1504 = vmatpush1.msra.mxu0 0.0
      %1505 = vmatprep.subr.mxu0 0.0
      %1506 = vmatpush1.msra.mxu0 0.0
      %1507 = vmatprep.subr.mxu0 0.0
      %1508 = vmatpush1.msra.mxu0 0.0
      %1509 = vmatprep.subr.mxu0 0.0
      %1510 = vmatpush1.msra.mxu0 0.0
      %1511 = vmatprep.subr.mxu0 0.0
      %1512 = vmatpush1.msra.mxu0 0.0
      %1513 = vmatprep.subr.mxu0 0.0
      %1514 = vmatpush1.msra.mxu0 0.0
      %1515 = vmatprep.subr.mxu0 0.0
      %1516 = vmatpush1.msra.mxu0 0.0
      %1517 = vmatprep.subr.mxu0 0.0
      %1518 = vmatpush1.msra.mxu0 0.0
      %1519 = vmatprep.subr.mxu0 0.0
      %1520 = vmatpush1.msra.mxu0 0.0
      %1521 = vmatprep.subr.mxu0 0.0
      %1522 = vmatpush1.msra.mxu0 0.0
      %1523 = vmatprep.subr.mxu0 0.0
      %1524 = vmatpush1.msra.mxu0 0.0
      %1525 = vmatprep.subr.mxu0 0.0
      %1526 = vmatpush1.msra.mxu0 0.0
      %1527 = vmatprep.subr.mxu0 0.0
      %1528 = vmatpush1.msra.mxu0 0.0
      %1529 = vmatprep.subr.mxu0 0.0
      %1530 = vmatpush1.msra.mxu0 0.0
      %1531 = vmatprep.subr.mxu0 0.0
      %1532 = vmatpush1.msra.mxu0 0.0
      %1533 = vmatprep.subr.mxu0 0.0
      %1534 = vmatpush1.msra.mxu0 0.0
      %1535 = vmatprep.subr.mxu0 0.0
      %1536 = vmatpush1.msra.mxu0 0.0
      %1537 = vmatprep.subr.mxu0 0.0
      %1538 = vmatpush1.msra.mxu0 0.0
      %1539 = vmatprep.mubr.f32.mxu0 0.0
      %1540 = vmatmul.mubr.f32.gmra.mrb[0].mxu0 %v1473
      %v1541 = vpop.f32.mrb[0].mxu0
      %v1542 = vadd.f32 %v502, %v1541
      %v1543 = vpop.f32.mrb[0].mxu0
      %1544 = vdwg.mxu0
      %v1546 = vrot.slane %v1542, 1
      %v1547 = vrot.slane %v1542, 2
      %v1550 = vadd.f32 %v496, %v1546
      %v1551 = vadd.f32 %v497, %v1547
      %v1552 = vxor.u32 %v1550, 2147483648
      %v1553 = vxor.u32 %v1551, 2147483648
      %v1554 = vmul.f32 %v1552, 1.442695
      %v1555 = vpow.pop %v1554
      %v1556 = vmul.f32 %v1553, 1.442695
      %v1557 = vpow.pop %v1556
      %v1558 = vadd.f32 %v1555, 1.0
      %v1559 = vadd.f32 %v1557, 1.0
      %v1560 = vrcp.pop %v1558
      %v1561 = vmul.f32 1.0, %v1560
      %v1562 = vrcp.pop %v1559
      %v1563 = vmul.f32 1.0, %v1562
      %1564 = vrot.lane.b32.xlu0 %v1546, 64
      %v1565 = vpop.permute.xlu0 %1564
      %1566 = vrot.lane.b32.xlu0 %v1547, 64
      %v1567 = vpop.permute.xlu0 %1566
      %v1570 = vmul.f32 %v1561, %v1565
      %v1571 = vmul.f32 %v1563, %v1567
      %1574 = vrot.lane.b32.xlu0 %v1570, 64
      %v1575 = vpop.permute.xlu0 %1574
      %1576 = vrot.lane.b32.xlu0 %v1571, 64
      %v1577 = vpop.permute.xlu0 %1576
      %v1580 = vadd.f32 %v496, %v1575
      %v1581 = vadd.f32 %v497, %v1577
      %v1582 = vtanh.pop %v1580
      %v1583 = vtanh.pop %v1581
      %v1584 = vsub.f32 1.0, %v1561
      %v1585 = vsub.f32 1.0, %v1563
      %1588 = vrot.lane.b32.xlu0 %v1582, 96
      %v1589 = vpop.permute.xlu0 %1588
      %1590 = vrot.lane.b32.xlu0 %v1583, 96
      %v1591 = vpop.permute.xlu0 %1590
      %v1594 = vmul.f32 %v1584, %v1589
      %v1595 = vmul.f32 %v1585, %v1591
      %v1596 = vrot.slane %v1464, 7
      %v1597 = vrot.slane %v1465, 7
      %v1600 = vmul.f32 %v1561, %v1596
      %v1601 = vmul.f32 %v1563, %v1597
      %v1602 = vadd.f32 %v1594, %v1600
      %v1603 = vadd.f32 %v1595, %v1601
      %vm1604 = vcmask 1040384
      %v1605 = vsel %vm1604, %v640, %v775
      %v1606 = vsel %vm1604, %v641, %v776
      %vm1607 = vcmask 1041408
      %v1608 = vsel %vm1607, %v1605, %v912
      %v1609 = vsel %vm1607, %v1606, %v913
      %vm1610 = vcmask 1042432
      %v1611 = vsel %vm1610, %v1608, %v1050
      %v1612 = vsel %vm1610, %v1609, %v1051
      %v1613 = vsel %vm219, %v1611, %v1188
      %v1614 = vsel %vm219, %v1612, %v1189
      %vm1615 = vcmask 1044480
      %v1616 = vsel %vm1615, %v1613, %v1326
      %v1617 = vsel %vm1615, %v1614, %v1327
      %vm1618 = vcmask 1045504
      %v1619 = vsel %vm1618, %v1616, %v1464
      %v1620 = vsel %vm1618, %v1617, %v1465
      %vm1621 = vcmask 1046528
      %v1622 = vsel %vm1621, %v1619, %v1602
      %v1623 = vsel %vm1621, %v1620, %v1603
      %1626 = vrot.lane.b32.xlu0 %v1622, 96
      %v1627 = vpop.permute.xlu0 %1626
      %1628 = vrot.lane.b32.xlu0 %v1623, 96
      %v1629 = vpop.permute.xlu0 %1628
      %s1632 = scalar_lea.vmem [#allocation3], %s494
      %1633 = vst.msk [vmem:[%s1632] sm:$0xff] %vm512, %v1627
      %1634 = vst.msk [vmem:[%s1632 + $0x80] sm:$0xff] %vm512, %v1629
    $region62: #{tpu_custom_call.1} parent=1 // loop_footer
      %s491 = sadd.s32 1, %s487
    $region63: #{tpu_custom_call.1} parent=1 // loop_footer_branch
      %486 = sbr.rel target = $region59
    $region64: #{tpu_custom_call.1} parent=1 // loop_exit
      _
    %v1635 = vld [vmem:[#allocation3] sm:$0xff]
    %v1636 = vld [vmem:[#allocation3 + $0x8] sm:$0xff]
    %v1637 = vld [vmem:[#allocation3 + $0x10] sm:$0xff]
    %v1638 = vld [vmem:[#allocation3 + $0x18] sm:$0xff]
    %v1639 = vld [vmem:[#allocation3 + $0x20] sm:$0xff]
    %v1640 = vld [vmem:[#allocation3 + $0x28] sm:$0xff]
    %v1641 = vld [vmem:[#allocation3 + $0x30] sm:$0xff]
    %v1642 = vld [vmem:[#allocation3 + $0x38] sm:$0xff]
    %v1643 = vld [vmem:[#allocation3 + $0x40] sm:$0xff]
    %v1644 = vld [vmem:[#allocation3 + $0x48] sm:$0xff]
    %v1645 = vld [vmem:[#allocation3 + $0x50] sm:$0xff]
    %v1646 = vld [vmem:[#allocation3 + $0x58] sm:$0xff]
    %v1647 = vld [vmem:[#allocation3 + $0x60] sm:$0xff]
    %v1648 = vld [vmem:[#allocation3 + $0x68] sm:$0xff]
    %v1649 = vld [vmem:[#allocation3 + $0x70] sm:$0xff]
    %v1650 = vld [vmem:[#allocation3 + $0x78] sm:$0xff]
    %v1651 = vld [vmem:[#allocation3 + $0x80] sm:$0xff]
    %v1652 = vld [vmem:[#allocation3 + $0x88] sm:$0xff]
    %v1653 = vld [vmem:[#allocation3 + $0x90] sm:$0xff]
    %v1654 = vld [vmem:[#allocation3 + $0x98] sm:$0xff]
    %v1655 = vld [vmem:[#allocation3 + $0xa0] sm:$0xff]
    %v1656 = vld [vmem:[#allocation3 + $0xa8] sm:$0xff]
    %v1657 = vld [vmem:[#allocation3 + $0xb0] sm:$0xff]
    %v1658 = vld [vmem:[#allocation3 + $0xb8] sm:$0xff]
    %v1659 = vld [vmem:[#allocation3 + $0xc0] sm:$0xff]
    %v1660 = vld [vmem:[#allocation3 + $0xc8] sm:$0xff]
    %v1661 = vld [vmem:[#allocation3 + $0xd0] sm:$0xff]
    %v1662 = vld [vmem:[#allocation3 + $0xd8] sm:$0xff]
    %v1663 = vld [vmem:[#allocation3 + $0xe0] sm:$0xff]
    %v1664 = vld [vmem:[#allocation3 + $0xe8] sm:$0xff]
    %v1665 = vld [vmem:[#allocation3 + $0xf0] sm:$0xff]
    %v1666 = vld [vmem:[#allocation3 + $0xf8] sm:$0xff]
    %v1667 = vld [vmem:[%s5] sm:$0xff]
    %v1668 = vld [vmem:[%s5 + $0x8] sm:$0xff]
    %v1669 = vld [vmem:[%s5 + $0x10] sm:$0xff]
    %v1670 = vld [vmem:[%s5 + $0x18] sm:$0xff]
    %v1671 = vld [vmem:[%s6] sm:$0x1]
    %v1673 = vlaneseq
    %v1674 = vshrl.u32 %v1673, 7
    %v1675 = vsub.s32 0, %v1674
    %v1676 = vrot.slane %v1671, %v1675
    %vm1678 = vcmask 261120
    %v1680 = vsel %vm1678, %v1635, 0
    %v1683 = vsel %vm1678, %v1636, 0
    %v1686 = vsel %vm1678, %v1637, 0
    %v1689 = vsel %vm1678, %v1638, 0
    %v1692 = vsel %vm1678, %v1639, 0
    %v1695 = vsel %vm1678, %v1640, 0
    %v1698 = vsel %vm1678, %v1641, 0
    %v1701 = vsel %vm1678, %v1642, 0
    %v1704 = vsel %vm1678, %v1643, 0
    %v1707 = vsel %vm1678, %v1644, 0
    %v1710 = vsel %vm1678, %v1645, 0
    %v1713 = vsel %vm1678, %v1646, 0
    %v1716 = vsel %vm1678, %v1647, 0
    %v1719 = vsel %vm1678, %v1648, 0
    %v1722 = vsel %vm1678, %v1649, 0
    %v1725 = vsel %vm1678, %v1650, 0
    %v1728 = vsel %vm1678, %v1651, 0
    %v1731 = vsel %vm1678, %v1652, 0
    %v1734 = vsel %vm1678, %v1653, 0
    %v1737 = vsel %vm1678, %v1654, 0
    %v1740 = vsel %vm1678, %v1655, 0
    %v1743 = vsel %vm1678, %v1656, 0
    %v1746 = vsel %vm1678, %v1657, 0
    %v1749 = vsel %vm1678, %v1658, 0
    %v1752 = vsel %vm1678, %v1659, 0
    %v1755 = vsel %vm1678, %v1660, 0
    %v1758 = vsel %vm1678, %v1661, 0
    %v1761 = vsel %vm1678, %v1662, 0
    %v1764 = vsel %vm1678, %v1663, 0
    %v1767 = vsel %vm1678, %v1664, 0
    %v1770 = vsel %vm1678, %v1665, 0
    %v1773 = vsel %vm1678, %v1666, 0
    %1775 = vmatprep.subr.mxu0 0.0
    %1776 = vmatpush1.msra.mxu0 %v1667
    %1777 = vmatprep.subr.mxu0 0.0
    %1778 = vmatpush1.msra.mxu0 %v1668
    %1779 = vmatprep.subr.mxu0 0.0
    %1780 = vmatpush1.msra.mxu0 %v1669
    %1781 = vmatprep.subr.mxu0 0.0
    %1782 = vmatpush1.msra.mxu0 %v1670
    %1783 = vmatprep.subr.mxu0 0.0
    %1784 = vmatpush1.msra.mxu0 0.0
    %1785 = vmatprep.subr.mxu0 0.0
    %1786 = vmatpush1.msra.mxu0 0.0
    %1787 = vmatprep.subr.mxu0 0.0
    %1788 = vmatpush1.msra.mxu0 0.0
    %1789 = vmatprep.subr.mxu0 0.0
    %1790 = vmatpush1.msra.mxu0 0.0
    %1791 = vmatprep.subr.mxu0 0.0
    %1792 = vmatpush1.msra.mxu0 0.0
    %1793 = vmatprep.subr.mxu0 0.0
    %1794 = vmatpush1.msra.mxu0 0.0
    %1795 = vmatprep.subr.mxu0 0.0
    %1796 = vmatpush1.msra.mxu0 0.0
    %1797 = vmatprep.subr.mxu0 0.0
    %1798 = vmatpush1.msra.mxu0 0.0
    %1799 = vmatprep.subr.mxu0 0.0
    %1800 = vmatpush1.msra.mxu0 0.0
    %1801 = vmatprep.subr.mxu0 0.0
    %1802 = vmatpush1.msra.mxu0 0.0
    %1803 = vmatprep.subr.mxu0 0.0
    %1804 = vmatpush1.msra.mxu0 0.0
    %1805 = vmatprep.subr.mxu0 0.0
    %1806 = vmatpush1.msra.mxu0 0.0
    %1807 = vmatprep.subr.mxu0 0.0
    %1808 = vmatpush1.msra.mxu0 0.0
    %1809 = vmatprep.subr.mxu0 0.0
    %1810 = vmatpush1.msra.mxu0 0.0
    %1811 = vmatprep.subr.mxu0 0.0
    %1812 = vmatpush1.msra.mxu0 0.0
    %1813 = vmatprep.subr.mxu0 0.0
    %1814 = vmatpush1.msra.mxu0 0.0
    %1815 = vmatprep.subr.mxu0 0.0
    %1816 = vmatpush1.msra.mxu0 0.0
    %1817 = vmatprep.subr.mxu0 0.0
    %1818 = vmatpush1.msra.mxu0 0.0
    %1819 = vmatprep.subr.mxu0 0.0
    %1820 = vmatpush1.msra.mxu0 0.0
    %1821 = vmatprep.subr.mxu0 0.0
    %1822 = vmatpush1.msra.mxu0 0.0
    %1823 = vmatprep.subr.mxu0 0.0
    %1824 = vmatpush1.msra.mxu0 0.0
    %1825 = vmatprep.subr.mxu0 0.0
    %1826 = vmatpush1.msra.mxu0 0.0
    %1827 = vmatprep.subr.mxu0 0.0
    %1828 = vmatpush1.msra.mxu0 0.0
    %1829 = vmatprep.subr.mxu0 0.0
    %1830 = vmatpush1.msra.mxu0 0.0
    %1831 = vmatprep.subr.mxu0 0.0
    %1832 = vmatpush1.msra.mxu0 0.0
    %1833 = vmatprep.subr.mxu0 0.0
    %1834 = vmatpush1.msra.mxu0 0.0
    %1835 = vmatprep.subr.mxu0 0.0
    %1836 = vmatpush1.msra.mxu0 0.0
    %1837 = vmatprep.subr.mxu0 0.0
    %1838 = vmatpush1.msra.mxu0 0.0
    %1839 = vmatprep.mubr.f32.mxu0 0.0
    %1840 = vmatmul.mubr.f32.gmra.mrb[0].mxu0 %v1680
    %v1841 = vpop.f32.mrb[0].mxu0
    %v1842 = vadd.f32 %v1676, %v1841
    %v1843 = vpop.f32.mrb[0].mxu0
    %1844 = vmatprep.mubr.f32.mxu0 0.0
    %1845 = vmatmul.mubr.f32.gmra.mrb[0].mxu0 %v1683
    %v1846 = vpop.f32.mrb[0].mxu0
    %v1847 = vadd.f32 %v1676, %v1846
    %v1848 = vpop.f32.mrb[0].mxu0
    %1849 = vmatprep.mubr.f32.mxu0 0.0
    %1850 = vmatmul.mubr.f32.gmra.mrb[0].mxu0 %v1686
    %v1851 = vpop.f32.mrb[0].mxu0
    %v1852 = vadd.f32 %v1676, %v1851
    %v1853 = vpop.f32.mrb[0].mxu0
    %1854 = vmatprep.mubr.f32.mxu0 0.0
    %1855 = vmatmul.mubr.f32.gmra.mrb[0].mxu0 %v1689
    %v1856 = vpop.f32.mrb[0].mxu0
    %v1857 = vadd.f32 %v1676, %v1856
    %v1858 = vpop.f32.mrb[0].mxu0
    %1859 = vmatprep.mubr.f32.mxu0 0.0
    %1860 = vmatmul.mubr.f32.gmra.mrb[0].mxu0 %v1692
    %v1861 = vpop.f32.mrb[0].mxu0
    %v1862 = vadd.f32 %v1676, %v1861
    %v1863 = vpop.f32.mrb[0].mxu0
    %1864 = vmatprep.mubr.f32.mxu0 0.0
    %1865 = vmatmul.mubr.f32.gmra.mrb[0].mxu0 %v1695
    %v1866 = vpop.f32.mrb[0].mxu0
    %v1867 = vadd.f32 %v1676, %v1866
    %v1868 = vpop.f32.mrb[0].mxu0
    %1869 = vmatprep.mubr.f32.mxu0 0.0
    %1870 = vmatmul.mubr.f32.gmra.mrb[0].mxu0 %v1698
    %v1871 = vpop.f32.mrb[0].mxu0
    %v1872 = vadd.f32 %v1676, %v1871
    %v1873 = vpop.f32.mrb[0].mxu0
    %1874 = vmatprep.mubr.f32.mxu0 0.0
    %1875 = vmatmul.mubr.f32.gmra.mrb[0].mxu0 %v1701
    %v1876 = vpop.f32.mrb[0].mxu0
    %v1877 = vadd.f32 %v1676, %v1876
    %v1878 = vpop.f32.mrb[0].mxu0
    %1879 = vmatprep.mubr.f32.mxu0 0.0
    %1880 = vmatmul.mubr.f32.gmra.mrb[0].mxu0 %v1704
    %v1881 = vpop.f32.mrb[0].mxu0
    %v1882 = vadd.f32 %v1676, %v1881
    %v1883 = vpop.f32.mrb[0].mxu0
    %1884 = vmatprep.mubr.f32.mxu0 0.0
    %1885 = vmatmul.mubr.f32.gmra.mrb[0].mxu0 %v1707
    %v1886 = vpop.f32.mrb[0].mxu0
    %v1887 = vadd.f32 %v1676, %v1886
    %v1888 = vpop.f32.mrb[0].mxu0
    %1889 = vmatprep.mubr.f32.mxu0 0.0
    %1890 = vmatmul.mubr.f32.gmra.mrb[0].mxu0 %v1710
    %v1891 = vpop.f32.mrb[0].mxu0
    %v1892 = vadd.f32 %v1676, %v1891
    %v1893 = vpop.f32.mrb[0].mxu0
    %1894 = vmatprep.mubr.f32.mxu0 0.0
    %1895 = vmatmul.mubr.f32.gmra.mrb[0].mxu0 %v1713
    %v1896 = vpop.f32.mrb[0].mxu0
    %v1897 = vadd.f32 %v1676, %v1896
    %v1898 = vpop.f32.mrb[0].mxu0
    %1899 = vmatprep.mubr.f32.mxu0 0.0
    %1900 = vmatmul.mubr.f32.gmra.mrb[0].mxu0 %v1716
    %v1901 = vpop.f32.mrb[0].mxu0
    %v1902 = vadd.f32 %v1676, %v1901
    %v1903 = vpop.f32.mrb[0].mxu0
    %1904 = vmatprep.mubr.f32.mxu0 0.0
    %1905 = vmatmul.mubr.f32.gmra.mrb[0].mxu0 %v1719
    %v1906 = vpop.f32.mrb[0].mxu0
    %v1907 = vadd.f32 %v1676, %v1906
    %v1908 = vpop.f32.mrb[0].mxu0
    %1909 = vmatprep.mubr.f32.mxu0 0.0
    %1910 = vmatmul.mubr.f32.gmra.mrb[0].mxu0 %v1722
    %v1911 = vpop.f32.mrb[0].mxu0
    %v1912 = vadd.f32 %v1676, %v1911
    %v1913 = vpop.f32.mrb[0].mxu0
    %1914 = vmatprep.mubr.f32.mxu0 0.0
    %1915 = vmatmul.mubr.f32.gmra.mrb[0].mxu0 %v1725
    %v1916 = vpop.f32.mrb[0].mxu0
    %v1917 = vadd.f32 %v1676, %v1916
    %v1918 = vpop.f32.mrb[0].mxu0
    %1919 = vmatprep.mubr.f32.mxu0 0.0
    %1920 = vmatmul.mubr.f32.gmra.mrb[0].mxu0 %v1728
    %v1921 = vpop.f32.mrb[0].mxu0
    %v1922 = vadd.f32 %v1676, %v1921
    %v1923 = vpop.f32.mrb[0].mxu0
    %1924 = vmatprep.mubr.f32.mxu0 0.0
    %1925 = vmatmul.mubr.f32.gmra.mrb[0].mxu0 %v1731
    %v1926 = vpop.f32.mrb[0].mxu0
    %v1927 = vadd.f32 %v1676, %v1926
    %v1928 = vpop.f32.mrb[0].mxu0
    %1929 = vmatprep.mubr.f32.mxu0 0.0
    %1930 = vmatmul.mubr.f32.gmra.mrb[0].mxu0 %v1734
    %v1931 = vpop.f32.mrb[0].mxu0
    %v1932 = vadd.f32 %v1676, %v1931
    %v1933 = vpop.f32.mrb[0].mxu0
    %1934 = vmatprep.mubr.f32.mxu0 0.0
    %1935 = vmatmul.mubr.f32.gmra.mrb[0].mxu0 %v1737
    %v1936 = vpop.f32.mrb[0].mxu0
    %v1937 = vadd.f32 %v1676, %v1936
    %v1938 = vpop.f32.mrb[0].mxu0
    %1939 = vmatprep.mubr.f32.mxu0 0.0
    %1940 = vmatmul.mubr.f32.gmra.mrb[0].mxu0 %v1740
    %v1941 = vpop.f32.mrb[0].mxu0
    %v1942 = vadd.f32 %v1676, %v1941
    %v1943 = vpop.f32.mrb[0].mxu0
    %1944 = vmatprep.mubr.f32.mxu0 0.0
    %1945 = vmatmul.mubr.f32.gmra.mrb[0].mxu0 %v1743
    %v1946 = vpop.f32.mrb[0].mxu0
    %v1947 = vadd.f32 %v1676, %v1946
    %v1948 = vpop.f32.mrb[0].mxu0
    %1949 = vmatprep.mubr.f32.mxu0 0.0
    %1950 = vmatmul.mubr.f32.gmra.mrb[0].mxu0 %v1746
    %v1951 = vpop.f32.mrb[0].mxu0
    %v1952 = vadd.f32 %v1676, %v1951
    %v1953 = vpop.f32.mrb[0].mxu0
    %1954 = vmatprep.mubr.f32.mxu0 0.0
    %1955 = vmatmul.mubr.f32.gmra.mrb[0].mxu0 %v1749
    %v1956 = vpop.f32.mrb[0].mxu0
    %v1957 = vadd.f32 %v1676, %v1956
    %v1958 = vpop.f32.mrb[0].mxu0
    %1959 = vmatprep.mubr.f32.mxu0 0.0
    %1960 = vmatmul.mubr.f32.gmra.mrb[0].mxu0 %v1752
    %v1961 = vpop.f32.mrb[0].mxu0
    %v1962 = vadd.f32 %v1676, %v1961
    %v1963 = vpop.f32.mrb[0].mxu0
    %1964 = vmatprep.mubr.f32.mxu0 0.0
    %1965 = vmatmul.mubr.f32.gmra.mrb[0].mxu0 %v1755
    %v1966 = vpop.f32.mrb[0].mxu0
    %v1967 = vadd.f32 %v1676, %v1966
    %v1968 = vpop.f32.mrb[0].mxu0
    %1969 = vmatprep.mubr.f32.mxu0 0.0
    %1970 = vmatmul.mubr.f32.gmra.mrb[0].mxu0 %v1758
    %v1971 = vpop.f32.mrb[0].mxu0
    %v1972 = vadd.f32 %v1676, %v1971
    %v1973 = vpop.f32.mrb[0].mxu0
    %1974 = vmatprep.mubr.f32.mxu0 0.0
    %1975 = vmatmul.mubr.f32.gmra.mrb[0].mxu0 %v1761
    %v1976 = vpop.f32.mrb[0].mxu0
    %v1977 = vadd.f32 %v1676, %v1976
    %v1978 = vpop.f32.mrb[0].mxu0
    %1979 = vmatprep.mubr.f32.mxu0 0.0
    %1980 = vmatmul.mubr.f32.gmra.mrb[0].mxu0 %v1764
    %v1981 = vpop.f32.mrb[0].mxu0
    %v1982 = vadd.f32 %v1676, %v1981
    %v1983 = vpop.f32.mrb[0].mxu0
    %1984 = vmatprep.mubr.f32.mxu0 0.0
    %1985 = vmatmul.mubr.f32.gmra.mrb[0].mxu0 %v1767
    %v1986 = vpop.f32.mrb[0].mxu0
    %v1987 = vadd.f32 %v1676, %v1986
    %v1988 = vpop.f32.mrb[0].mxu0
    %1989 = vmatprep.mubr.f32.mxu0 0.0
    %1990 = vmatmul.mubr.f32.gmra.mrb[0].mxu0 %v1770
    %v1991 = vpop.f32.mrb[0].mxu0
    %v1992 = vadd.f32 %v1676, %v1991
    %v1993 = vpop.f32.mrb[0].mxu0
    %1994 = vmatprep.mubr.f32.mxu0 0.0
    %1995 = vmatmul.mubr.f32.gmra.mrb[0].mxu0 %v1773
    %v1996 = vpop.f32.mrb[0].mxu0
    %v1997 = vadd.f32 %v1676, %v1996
    %v1998 = vpop.f32.mrb[0].mxu0
    %1999 = vdwg.mxu0
    %v2000 = vld [vmem:[%s7] sm:$0xff]
    %v2001 = vld [vmem:[%s7 + $0x8] sm:$0xff]
    %v2002 = vld [vmem:[%s7 + $0x10] sm:$0xff]
    %v2003 = vld [vmem:[%s7 + $0x18] sm:$0xff]
    %v2004 = vld [vmem:[%s7 + $0x20] sm:$0xff]
    %v2005 = vld [vmem:[%s7 + $0x28] sm:$0xff]
    %v2006 = vld [vmem:[%s7 + $0x30] sm:$0xff]
    %v2007 = vld [vmem:[%s7 + $0x38] sm:$0xff]
    %v2008 = vld [vmem:[%s7 + $0x40] sm:$0xff]
    %v2009 = vld [vmem:[%s7 + $0x48] sm:$0xff]
    %v2010 = vld [vmem:[%s7 + $0x50] sm:$0xff]
    %v2011 = vld [vmem:[%s7 + $0x58] sm:$0xff]
    %v2012 = vld [vmem:[%s7 + $0x60] sm:$0xff]
    %v2013 = vld [vmem:[%s7 + $0x68] sm:$0xff]
    %v2014 = vld [vmem:[%s7 + $0x70] sm:$0xff]
    %v2015 = vld [vmem:[%s7 + $0x78] sm:$0xff]
    %v2016 = vadd.f32 %v1842, %v2000
    %v2017 = vadd.f32 %v1847, %v2001
    %v2018 = vadd.f32 %v1852, %v2002
    %v2019 = vadd.f32 %v1857, %v2003
    %v2020 = vadd.f32 %v1862, %v2004
    %v2021 = vadd.f32 %v1867, %v2005
    %v2022 = vadd.f32 %v1872, %v2006
    %v2023 = vadd.f32 %v1877, %v2007
    %v2024 = vadd.f32 %v1882, %v2008
    %v2025 = vadd.f32 %v1887, %v2009
    %v2026 = vadd.f32 %v1892, %v2010
    %v2027 = vadd.f32 %v1897, %v2011
    %v2028 = vadd.f32 %v1902, %v2012
    %v2029 = vadd.f32 %v1907, %v2013
    %v2030 = vadd.f32 %v1912, %v2014
    %v2031 = vadd.f32 %v1917, %v2015
    %v2032 = vadd.f32 %v1922, %v2000
    %v2033 = vadd.f32 %v1927, %v2001
    %v2034 = vadd.f32 %v1932, %v2002
    %v2035 = vadd.f32 %v1937, %v2003
    %v2036 = vadd.f32 %v1942, %v2004
    %v2037 = vadd.f32 %v1947, %v2005
    %v2038 = vadd.f32 %v1952, %v2006
    %v2039 = vadd.f32 %v1957, %v2007
    %v2040 = vadd.f32 %v1962, %v2008
    %v2041 = vadd.f32 %v1967, %v2009
    %v2042 = vadd.f32 %v1972, %v2010
    %v2043 = vadd.f32 %v1977, %v2011
    %v2044 = vadd.f32 %v1982, %v2012
    %v2045 = vadd.f32 %v1987, %v2013
    %v2046 = vadd.f32 %v1992, %v2014
    %v2047 = vadd.f32 %v1997, %v2015
    %v2048 = vld [vmem:[%s8] sm:$0xf]
    %v2049 = vld [vmem:[%s9] sm:$0x1]
    %v2051 = vlaneseq
    %v2052 = vshrl.u32 %v2051, 7
    %v2053 = vsub.s32 0, %v2052
    %v2054 = vrot.slane %v2049, %v2053
    %v2057 = vsel %vm122, %v2016, 0
    %v2060 = vsel %vm122, %v2017, 0
    %v2063 = vsel %vm122, %v2018, 0
    %v2066 = vsel %vm122, %v2019, 0
    %v2069 = vsel %vm122, %v2020, 0
    %v2072 = vsel %vm122, %v2021, 0
    %v2075 = vsel %vm122, %v2022, 0
    %v2078 = vsel %vm122, %v2023, 0
    %v2081 = vsel %vm122, %v2024, 0
    %v2084 = vsel %vm122, %v2025, 0
    %v2087 = vsel %vm122, %v2026, 0
    %v2090 = vsel %vm122, %v2027, 0
    %v2093 = vsel %vm122, %v2028, 0
    %v2096 = vsel %vm122, %v2029, 0
    %v2099 = vsel %vm122, %v2030, 0
    %v2102 = vsel %vm122, %v2031, 0
    %v2105 = vsel %vm122, %v2032, 0
    %v2108 = vsel %vm122, %v2033, 0
    %v2111 = vsel %vm122, %v2034, 0
    %v2114 = vsel %vm122, %v2035, 0
    %v2117 = vsel %vm122, %v2036, 0
    %v2120 = vsel %vm122, %v2037, 0
    %v2123 = vsel %vm122, %v2038, 0
    %v2126 = vsel %vm122, %v2039, 0
    %v2129 = vsel %vm122, %v2040, 0
    %v2132 = vsel %vm122, %v2041, 0
    %v2135 = vsel %vm122, %v2042, 0
    %v2138 = vsel %vm122, %v2043, 0
    %v2141 = vsel %vm122, %v2044, 0
    %v2144 = vsel %vm122, %v2045, 0
    %v2147 = vsel %vm122, %v2046, 0
    %v2150 = vsel %vm122, %v2047, 0
    %v2153 = vsel %vm219, %v2048, 0
    %2155 = vmatprep.subr.mxu0 0.0
    %2156 = vmatpush1.msra.mxu0 %v2153
    %2157 = vmatprep.subr.mxu0 0.0
    %2158 = vmatpush1.msra.mxu0 0.0
    %2159 = vmatprep.subr.mxu0 0.0
    %2160 = vmatpush1.msra.mxu0 0.0
    %2161 = vmatprep.subr.mxu0 0.0
    %2162 = vmatpush1.msra.mxu0 0.0
    %2163 = vmatprep.subr.mxu0 0.0
    %2164 = vmatpush1.msra.mxu0 0.0
    %2165 = vmatprep.subr.mxu0 0.0
    %2166 = vmatpush1.msra.mxu0 0.0
    %2167 = vmatprep.subr.mxu0 0.0
    %2168 = vmatpush1.msra.mxu0 0.0
    %2169 = vmatprep.subr.mxu0 0.0
    %2170 = vmatpush1.msra.mxu0 0.0
    %2171 = vmatprep.subr.mxu0 0.0
    %2172 = vmatpush1.msra.mxu0 0.0
    %2173 = vmatprep.subr.mxu0 0.0
    %2174 = vmatpush1.msra.mxu0 0.0
    %2175 = vmatprep.subr.mxu0 0.0
    %2176 = vmatpush1.msra.mxu0 0.0
    %2177 = vmatprep.subr.mxu0 0.0
    %2178 = vmatpush1.msra.mxu0 0.0
    %2179 = vmatprep.subr.mxu0 0.0
    %2180 = vmatpush1.msra.mxu0 0.0
    %2181 = vmatprep.subr.mxu0 0.0
    %2182 = vmatpush1.msra.mxu0 0.0
    %2183 = vmatprep.subr.mxu0 0.0
    %2184 = vmatpush1.msra.mxu0 0.0
    %2185 = vmatprep.subr.mxu0 0.0
    %2186 = vmatpush1.msra.mxu0 0.0
    %2187 = vmatprep.subr.mxu0 0.0
    %2188 = vmatpush1.msra.mxu0 0.0
    %2189 = vmatprep.subr.mxu0 0.0
    %2190 = vmatpush1.msra.mxu0 0.0
    %2191 = vmatprep.subr.mxu0 0.0
    %2192 = vmatpush1.msra.mxu0 0.0
    %2193 = vmatprep.subr.mxu0 0.0
    %2194 = vmatpush1.msra.mxu0 0.0
    %2195 = vmatprep.subr.mxu0 0.0
    %2196 = vmatpush1.msra.mxu0 0.0
    %2197 = vmatprep.subr.mxu0 0.0
    %2198 = vmatpush1.msra.mxu0 0.0
    %2199 = vmatprep.subr.mxu0 0.0
    %2200 = vmatpush1.msra.mxu0 0.0
    %2201 = vmatprep.subr.mxu0 0.0
    %2202 = vmatpush1.msra.mxu0 0.0
    %2203 = vmatprep.subr.mxu0 0.0
    %2204 = vmatpush1.msra.mxu0 0.0
    %2205 = vmatprep.subr.mxu0 0.0
    %2206 = vmatpush1.msra.mxu0 0.0
    %2207 = vmatprep.subr.mxu0 0.0
    %2208 = vmatpush1.msra.mxu0 0.0
    %2209 = vmatprep.subr.mxu0 0.0
    %2210 = vmatpush1.msra.mxu0 0.0
    %2211 = vmatprep.subr.mxu0 0.0
    %2212 = vmatpush1.msra.mxu0 0.0
    %2213 = vmatprep.subr.mxu0 0.0
    %2214 = vmatpush1.msra.mxu0 0.0
    %2215 = vmatprep.subr.mxu0 0.0
    %2216 = vmatpush1.msra.mxu0 0.0
    %2217 = vmatprep.subr.mxu0 0.0
    %2218 = vmatpush1.msra.mxu0 0.0
    %2219 = vmatprep.mubr.f32.mxu0 0.0
    %2220 = vmatmul.mubr.f32.gmra.mrb[0].mxu0 %v2057
    %v2221 = vpop.f32.mrb[0].mxu0
    %v2222 = vadd.f32 %v2054, %v2221
    %v2223 = vpop.f32.mrb[0].mxu0
    %2224 = vmatprep.mubr.f32.mxu0 0.0
    %2225 = vmatmul.mubr.f32.gmra.mrb[0].mxu0 %v2060
    %v2226 = vpop.f32.mrb[0].mxu0
    %v2227 = vadd.f32 %v2054, %v2226
    %v2228 = vpop.f32.mrb[0].mxu0
    %2229 = vmatprep.mubr.f32.mxu0 0.0
    %2230 = vmatmul.mubr.f32.gmra.mrb[0].mxu0 %v2063
    %v2231 = vpop.f32.mrb[0].mxu0
    %v2232 = vadd.f32 %v2054, %v2231
    %v2233 = vpop.f32.mrb[0].mxu0
    %2234 = vmatprep.mubr.f32.mxu0 0.0
    %2235 = vmatmul.mubr.f32.gmra.mrb[0].mxu0 %v2066
    %v2236 = vpop.f32.mrb[0].mxu0
    %v2237 = vadd.f32 %v2054, %v2236
    %v2238 = vpop.f32.mrb[0].mxu0
    %2239 = vmatprep.mubr.f32.mxu0 0.0
    %2240 = vmatmul.mubr.f32.gmra.mrb[0].mxu0 %v2069
    %v2241 = vpop.f32.mrb[0].mxu0
    %v2242 = vadd.f32 %v2054, %v2241
    %v2243 = vpop.f32.mrb[0].mxu0
    %2244 = vmatprep.mubr.f32.mxu0 0.0
    %2245 = vmatmul.mubr.f32.gmra.mrb[0].mxu0 %v2072
    %v2246 = vpop.f32.mrb[0].mxu0
    %v2247 = vadd.f32 %v2054, %v2246
    %v2248 = vpop.f32.mrb[0].mxu0
    %2249 = vmatprep.mubr.f32.mxu0 0.0
    %2250 = vmatmul.mubr.f32.gmra.mrb[0].mxu0 %v2075
    %v2251 = vpop.f32.mrb[0].mxu0
    %v2252 = vadd.f32 %v2054, %v2251
    %v2253 = vpop.f32.mrb[0].mxu0
    %2254 = vmatprep.mubr.f32.mxu0 0.0
    %2255 = vmatmul.mubr.f32.gmra.mrb[0].mxu0 %v2078
    %v2256 = vpop.f32.mrb[0].mxu0
    %v2257 = vadd.f32 %v2054, %v2256
    %v2258 = vpop.f32.mrb[0].mxu0
    %2259 = vmatprep.mubr.f32.mxu0 0.0
    %2260 = vmatmul.mubr.f32.gmra.mrb[0].mxu0 %v2081
    %v2261 = vpop.f32.mrb[0].mxu0
    %v2262 = vadd.f32 %v2054, %v2261
    %v2263 = vpop.f32.mrb[0].mxu0
    %2264 = vmatprep.mubr.f32.mxu0 0.0
    %2265 = vmatmul.mubr.f32.gmra.mrb[0].mxu0 %v2084
    %v2266 = vpop.f32.mrb[0].mxu0
    %v2267 = vadd.f32 %v2054, %v2266
    %v2268 = vpop.f32.mrb[0].mxu0
    %2269 = vmatprep.mubr.f32.mxu0 0.0
    %2270 = vmatmul.mubr.f32.gmra.mrb[0].mxu0 %v2087
    %v2271 = vpop.f32.mrb[0].mxu0
    %v2272 = vadd.f32 %v2054, %v2271
    %v2273 = vpop.f32.mrb[0].mxu0
    %2274 = vmatprep.mubr.f32.mxu0 0.0
    %2275 = vmatmul.mubr.f32.gmra.mrb[0].mxu0 %v2090
    %v2276 = vpop.f32.mrb[0].mxu0
    %v2277 = vadd.f32 %v2054, %v2276
    %v2278 = vpop.f32.mrb[0].mxu0
    %2279 = vmatprep.mubr.f32.mxu0 0.0
    %2280 = vmatmul.mubr.f32.gmra.mrb[0].mxu0 %v2093
    %v2281 = vpop.f32.mrb[0].mxu0
    %v2282 = vadd.f32 %v2054, %v2281
    %v2283 = vpop.f32.mrb[0].mxu0
    %2284 = vmatprep.mubr.f32.mxu0 0.0
    %2285 = vmatmul.mubr.f32.gmra.mrb[0].mxu0 %v2096
    %v2286 = vpop.f32.mrb[0].mxu0
    %v2287 = vadd.f32 %v2054, %v2286
    %v2288 = vpop.f32.mrb[0].mxu0
    %2289 = vmatprep.mubr.f32.mxu0 0.0
    %2290 = vmatmul.mubr.f32.gmra.mrb[0].mxu0 %v2099
    %v2291 = vpop.f32.mrb[0].mxu0
    %v2292 = vadd.f32 %v2054, %v2291
    %v2293 = vpop.f32.mrb[0].mxu0
    %2294 = vmatprep.mubr.f32.mxu0 0.0
    %2295 = vmatmul.mubr.f32.gmra.mrb[0].mxu0 %v2102
    %v2296 = vpop.f32.mrb[0].mxu0
    %v2297 = vadd.f32 %v2054, %v2296
    %v2298 = vpop.f32.mrb[0].mxu0
    %2299 = vmatprep.mubr.f32.mxu0 0.0
    %2300 = vmatmul.mubr.f32.gmra.mrb[0].mxu0 %v2105
    %v2301 = vpop.f32.mrb[0].mxu0
    %v2302 = vadd.f32 %v2054, %v2301
    %v2303 = vpop.f32.mrb[0].mxu0
    %2304 = vmatprep.mubr.f32.mxu0 0.0
    %2305 = vmatmul.mubr.f32.gmra.mrb[0].mxu0 %v2108
    %v2306 = vpop.f32.mrb[0].mxu0
    %v2307 = vadd.f32 %v2054, %v2306
    %v2308 = vpop.f32.mrb[0].mxu0
    %2309 = vmatprep.mubr.f32.mxu0 0.0
    %2310 = vmatmul.mubr.f32.gmra.mrb[0].mxu0 %v2111
    %v2311 = vpop.f32.mrb[0].mxu0
    %v2312 = vadd.f32 %v2054, %v2311
    %v2313 = vpop.f32.mrb[0].mxu0
    %2314 = vmatprep.mubr.f32.mxu0 0.0
    %2315 = vmatmul.mubr.f32.gmra.mrb[0].mxu0 %v2114
    %v2316 = vpop.f32.mrb[0].mxu0
    %v2317 = vadd.f32 %v2054, %v2316
    %v2318 = vpop.f32.mrb[0].mxu0
    %2319 = vmatprep.mubr.f32.mxu0 0.0
    %2320 = vmatmul.mubr.f32.gmra.mrb[0].mxu0 %v2117
    %v2321 = vpop.f32.mrb[0].mxu0
    %v2322 = vadd.f32 %v2054, %v2321
    %v2323 = vpop.f32.mrb[0].mxu0
    %2324 = vmatprep.mubr.f32.mxu0 0.0
    %2325 = vmatmul.mubr.f32.gmra.mrb[0].mxu0 %v2120
    %v2326 = vpop.f32.mrb[0].mxu0
    %v2327 = vadd.f32 %v2054, %v2326
    %v2328 = vpop.f32.mrb[0].mxu0
    %2329 = vmatprep.mubr.f32.mxu0 0.0
    %2330 = vmatmul.mubr.f32.gmra.mrb[0].mxu0 %v2123
    %v2331 = vpop.f32.mrb[0].mxu0
    %v2332 = vadd.f32 %v2054, %v2331
    %v2333 = vpop.f32.mrb[0].mxu0
    %2334 = vmatprep.mubr.f32.mxu0 0.0
    %2335 = vmatmul.mubr.f32.gmra.mrb[0].mxu0 %v2126
    %v2336 = vpop.f32.mrb[0].mxu0
    %v2337 = vadd.f32 %v2054, %v2336
    %v2338 = vpop.f32.mrb[0].mxu0
    %2339 = vmatprep.mubr.f32.mxu0 0.0
    %2340 = vmatmul.mubr.f32.gmra.mrb[0].mxu0 %v2129
    %v2341 = vpop.f32.mrb[0].mxu0
    %v2342 = vadd.f32 %v2054, %v2341
    %v2343 = vpop.f32.mrb[0].mxu0
    %2344 = vmatprep.mubr.f32.mxu0 0.0
    %2345 = vmatmul.mubr.f32.gmra.mrb[0].mxu0 %v2132
    %v2346 = vpop.f32.mrb[0].mxu0
    %v2347 = vadd.f32 %v2054, %v2346
    %v2348 = vpop.f32.mrb[0].mxu0
    %2349 = vmatprep.mubr.f32.mxu0 0.0
    %2350 = vmatmul.mubr.f32.gmra.mrb[0].mxu0 %v2135
    %v2351 = vpop.f32.mrb[0].mxu0
    %v2352 = vadd.f32 %v2054, %v2351
    %v2353 = vpop.f32.mrb[0].mxu0
    %2354 = vmatprep.mubr.f32.mxu0 0.0
    %2355 = vmatmul.mubr.f32.gmra.mrb[0].mxu0 %v2138
    %v2356 = vpop.f32.mrb[0].mxu0
    %v2357 = vadd.f32 %v2054, %v2356
    %v2358 = vpop.f32.mrb[0].mxu0
    %2359 = vmatprep.mubr.f32.mxu0 0.0
    %2360 = vmatmul.mubr.f32.gmra.mrb[0].mxu0 %v2141
    %v2361 = vpop.f32.mrb[0].mxu0
    %v2362 = vadd.f32 %v2054, %v2361
    %v2363 = vpop.f32.mrb[0].mxu0
    %2364 = vmatprep.mubr.f32.mxu0 0.0
    %2365 = vmatmul.mubr.f32.gmra.mrb[0].mxu0 %v2144
    %v2366 = vpop.f32.mrb[0].mxu0
    %v2367 = vadd.f32 %v2054, %v2366
    %v2368 = vpop.f32.mrb[0].mxu0
    %2369 = vmatprep.mubr.f32.mxu0 0.0
    %2370 = vmatmul.mubr.f32.gmra.mrb[0].mxu0 %v2147
    %v2371 = vpop.f32.mrb[0].mxu0
    %v2372 = vadd.f32 %v2054, %v2371
    %v2373 = vpop.f32.mrb[0].mxu0
    %2374 = vmatprep.mubr.f32.mxu0 0.0
    %2375 = vmatmul.mubr.f32.gmra.mrb[0].mxu0 %v2150
    %v2376 = vpop.f32.mrb[0].mxu0
    %v2377 = vadd.f32 %v2054, %v2376
    %v2378 = vpop.f32.mrb[0].mxu0
    %2379 = vdwg.mxu0
    %v2380 = vmul.f32 %v2222, 0.5
    %v2381 = vmul.f32 %v2227, 0.5
    %v2382 = vmul.f32 %v2232, 0.5
    %v2383 = vmul.f32 %v2237, 0.5
    %v2384 = vmul.f32 %v2242, 0.5
    %v2385 = vmul.f32 %v2247, 0.5
    %v2386 = vmul.f32 %v2252, 0.5
    %v2387 = vmul.f32 %v2257, 0.5
    %v2388 = vmul.f32 %v2262, 0.5
    %v2389 = vmul.f32 %v2267, 0.5
    %v2390 = vmul.f32 %v2272, 0.5
    %v2391 = vmul.f32 %v2277, 0.5
    %v2392 = vmul.f32 %v2282, 0.5
    %v2393 = vmul.f32 %v2287, 0.5
    %v2394 = vmul.f32 %v2292, 0.5
    %v2395 = vmul.f32 %v2297, 0.5
    %v2396 = vmul.f32 %v2302, 0.5
    %v2397 = vmul.f32 %v2307, 0.5
    %v2398 = vmul.f32 %v2312, 0.5
    %v2399 = vmul.f32 %v2317, 0.5
    %v2400 = vmul.f32 %v2322, 0.5
    %v2401 = vmul.f32 %v2327, 0.5
    %v2402 = vmul.f32 %v2332, 0.5
    %v2403 = vmul.f32 %v2337, 0.5
    %v2404 = vmul.f32 %v2342, 0.5
    %v2405 = vmul.f32 %v2347, 0.5
    %v2406 = vmul.f32 %v2352, 0.5
    %v2407 = vmul.f32 %v2357, 0.5
    %v2408 = vmul.f32 %v2362, 0.5
    %v2409 = vmul.f32 %v2367, 0.5
    %v2410 = vmul.f32 %v2372, 0.5
    %v2411 = vmul.f32 %v2377, 0.5
    %2428 = vrot.lane.b32.xlu0 %v2222, 124
    %v2429 = vpop.permute.xlu0 %2428
    %2430 = vrot.lane.b32.xlu0 %v2227, 124
    %v2431 = vpop.permute.xlu0 %2430
    %2432 = vrot.lane.b32.xlu0 %v2232, 124
    %v2433 = vpop.permute.xlu0 %2432
    %2434 = vrot.lane.b32.xlu0 %v2237, 124
    %v2435 = vpop.permute.xlu0 %2434
    %2436 = vrot.lane.b32.xlu0 %v2242, 124
    %v2437 = vpop.permute.xlu0 %2436
    %2438 = vrot.lane.b32.xlu0 %v2247, 124
    %v2439 = vpop.permute.xlu0 %2438
    %2440 = vrot.lane.b32.xlu0 %v2252, 124
    %v2441 = vpop.permute.xlu0 %2440
    %2442 = vrot.lane.b32.xlu0 %v2257, 124
    %v2443 = vpop.permute.xlu0 %2442
    %2444 = vrot.lane.b32.xlu0 %v2262, 124
    %v2445 = vpop.permute.xlu0 %2444
    %2446 = vrot.lane.b32.xlu0 %v2267, 124
    %v2447 = vpop.permute.xlu0 %2446
    %2448 = vrot.lane.b32.xlu0 %v2272, 124
    %v2449 = vpop.permute.xlu0 %2448
    %2450 = vrot.lane.b32.xlu0 %v2277, 124
    %v2451 = vpop.permute.xlu0 %2450
    %2452 = vrot.lane.b32.xlu0 %v2282, 124
    %v2453 = vpop.permute.xlu0 %2452
    %2454 = vrot.lane.b32.xlu0 %v2287, 124
    %v2455 = vpop.permute.xlu0 %2454
    %2456 = vrot.lane.b32.xlu0 %v2292, 124
    %v2457 = vpop.permute.xlu0 %2456
    %2458 = vrot.lane.b32.xlu0 %v2297, 124
    %v2459 = vpop.permute.xlu0 %2458
    %v2461 = vsel %vm122, %v2380, 0
    %v2464 = vsel %vm122, %v2381, 0
    %v2467 = vsel %vm122, %v2382, 0
    %v2470 = vsel %vm122, %v2383, 0
    %v2473 = vsel %vm122, %v2384, 0
    %v2476 = vsel %vm122, %v2385, 0
    %v2479 = vsel %vm122, %v2386, 0
    %v2482 = vsel %vm122, %v2387, 0
    %v2485 = vsel %vm122, %v2388, 0
    %v2488 = vsel %vm122, %v2389, 0
    %v2491 = vsel %vm122, %v2390, 0
    %v2494 = vsel %vm122, %v2391, 0
    %v2497 = vsel %vm122, %v2392, 0
    %v2500 = vsel %vm122, %v2393, 0
    %v2503 = vsel %vm122, %v2394, 0
    %v2506 = vsel %vm122, %v2395, 0
    %v2508 = vsel %vm122, %v2429, 0
    %v2510 = vsel %vm122, %v2431, 0
    %v2512 = vsel %vm122, %v2433, 0
    %v2514 = vsel %vm122, %v2435, 0
    %v2516 = vsel %vm122, %v2437, 0
    %v2518 = vsel %vm122, %v2439, 0
    %v2520 = vsel %vm122, %v2441, 0
    %v2522 = vsel %vm122, %v2443, 0
    %v2524 = vsel %vm122, %v2445, 0
    %v2526 = vsel %vm122, %v2447, 0
    %v2528 = vsel %vm122, %v2449, 0
    %v2530 = vsel %vm122, %v2451, 0
    %v2532 = vsel %vm122, %v2453, 0
    %v2534 = vsel %vm122, %v2455, 0
    %v2536 = vsel %vm122, %v2457, 0
    %v2538 = vsel %vm122, %v2459, 0
    %2540 = vmatprep.subr.mxu0 0.0
    %2541 = vmatpush1.xpose.msra.mxu0 %v2508
    %2542 = vmatprep.subr.mxu0 0.0
    %2543 = vmatpush1.xpose.msra.mxu0 %v2510
    %2544 = vmatprep.subr.mxu0 0.0
    %2545 = vmatpush1.xpose.msra.mxu0 %v2512
    %2546 = vmatprep.subr.mxu0 0.0
    %2547 = vmatpush1.xpose.msra.mxu0 %v2514
    %2548 = vmatprep.subr.mxu0 0.0
    %2549 = vmatpush1.xpose.msra.mxu0 %v2516
    %2550 = vmatprep.subr.mxu0 0.0
    %2551 = vmatpush1.xpose.msra.mxu0 %v2518
    %2552 = vmatprep.subr.mxu0 0.0
    %2553 = vmatpush1.xpose.msra.mxu0 %v2520
    %2554 = vmatprep.subr.mxu0 0.0
    %2555 = vmatpush1.xpose.msra.mxu0 %v2522
    %2556 = vmatprep.subr.mxu0 0.0
    %2557 = vmatpush1.xpose.msra.mxu0 %v2524
    %2558 = vmatprep.subr.mxu0 0.0
    %2559 = vmatpush1.xpose.msra.mxu0 %v2526
    %2560 = vmatprep.subr.mxu0 0.0
    %2561 = vmatpush1.xpose.msra.mxu0 %v2528
    %2562 = vmatprep.subr.mxu0 0.0
    %2563 = vmatpush1.xpose.msra.mxu0 %v2530
    %2564 = vmatprep.subr.mxu0 0.0
    %2565 = vmatpush1.xpose.msra.mxu0 %v2532
    %2566 = vmatprep.subr.mxu0 0.0
    %2567 = vmatpush1.xpose.msra.mxu0 %v2534
    %2568 = vmatprep.subr.mxu0 0.0
    %2569 = vmatpush1.xpose.msra.mxu0 %v2536
    %2570 = vmatprep.subr.mxu0 0.0
    %2571 = vmatpush1.xpose.msra.mxu0 %v2538
    %2572 = vmatprep.subr.mxu0 0.0
    %2573 = vmatpush1.xpose.msra.mxu0 0.0
    %2574 = vmatprep.subr.mxu0 0.0
    %2575 = vmatpush1.xpose.msra.mxu0 0.0
    %2576 = vmatprep.subr.mxu0 0.0
    %2577 = vmatpush1.xpose.msra.mxu0 0.0
    %2578 = vmatprep.subr.mxu0 0.0
    %2579 = vmatpush1.xpose.msra.mxu0 0.0
    %2580 = vmatprep.subr.mxu0 0.0
    %2581 = vmatpush1.xpose.msra.mxu0 0.0
    %2582 = vmatprep.subr.mxu0 0.0
    %2583 = vmatpush1.xpose.msra.mxu0 0.0
    %2584 = vmatprep.subr.mxu0 0.0
    %2585 = vmatpush1.xpose.msra.mxu0 0.0
    %2586 = vmatprep.subr.mxu0 0.0
    %2587 = vmatpush1.xpose.msra.mxu0 0.0
    %2588 = vmatprep.subr.mxu0 0.0
    %2589 = vmatpush1.xpose.msra.mxu0 0.0
    %2590 = vmatprep.subr.mxu0 0.0
    %2591 = vmatpush1.xpose.msra.mxu0 0.0
    %2592 = vmatprep.subr.mxu0 0.0
    %2593 = vmatpush1.xpose.msra.mxu0 0.0
    %2594 = vmatprep.subr.mxu0 0.0
    %2595 = vmatpush1.xpose.msra.mxu0 0.0
    %2596 = vmatprep.subr.mxu0 0.0
    %2597 = vmatpush1.xpose.msra.mxu0 0.0
    %2598 = vmatprep.subr.mxu0 0.0
    %2599 = vmatpush1.xpose.msra.mxu0 0.0
    %2600 = vmatprep.subr.mxu0 0.0
    %2601 = vmatpush1.xpose.msra.mxu0 0.0
    %2602 = vmatprep.subr.mxu0 0.0
    %2603 = vmatpush1.xpose.msra.mxu0 0.0
    %2604 = vmatprep.mubr.f32.mxu0 0.0
    %2605 = vmatmul.mubr.f32.gmra.mrb[0].mxu0 %v2461
    %v2606 = vpop.f32.mrb[0].mxu0
    %v2607 = vadd.f32 0.0, %v2606
    %v2608 = vpop.f32.mrb[0].mxu0
    %2609 = vmatprep.mubr.f32.mxu0 0.0
    %2610 = vmatmul.mubr.f32.gmra.mrb[0].mxu0 %v2464
    %v2611 = vpop.f32.mrb[0].mxu0
    %v2612 = vadd.f32 0.0, %v2611
    %v2613 = vpop.f32.mrb[0].mxu0
    %2614 = vmatprep.mubr.f32.mxu0 0.0
    %2615 = vmatmul.mubr.f32.gmra.mrb[0].mxu0 %v2467
    %v2616 = vpop.f32.mrb[0].mxu0
    %v2617 = vadd.f32 0.0, %v2616
    %v2618 = vpop.f32.mrb[0].mxu0
    %2619 = vmatprep.mubr.f32.mxu0 0.0
    %2620 = vmatmul.mubr.f32.gmra.mrb[0].mxu0 %v2470
    %v2621 = vpop.f32.mrb[0].mxu0
    %v2622 = vadd.f32 0.0, %v2621
    %v2623 = vpop.f32.mrb[0].mxu0
    %2624 = vmatprep.mubr.f32.mxu0 0.0
    %2625 = vmatmul.mubr.f32.gmra.mrb[0].mxu0 %v2473
    %v2626 = vpop.f32.mrb[0].mxu0
    %v2627 = vadd.f32 0.0, %v2626
    %v2628 = vpop.f32.mrb[0].mxu0
    %2629 = vmatprep.mubr.f32.mxu0 0.0
    %2630 = vmatmul.mubr.f32.gmra.mrb[0].mxu0 %v2476
    %v2631 = vpop.f32.mrb[0].mxu0
    %v2632 = vadd.f32 0.0, %v2631
    %v2633 = vpop.f32.mrb[0].mxu0
    %2634 = vmatprep.mubr.f32.mxu0 0.0
    %2635 = vmatmul.mubr.f32.gmra.mrb[0].mxu0 %v2479
    %v2636 = vpop.f32.mrb[0].mxu0
    %v2637 = vadd.f32 0.0, %v2636
    %v2638 = vpop.f32.mrb[0].mxu0
    %2639 = vmatprep.mubr.f32.mxu0 0.0
    %2640 = vmatmul.mubr.f32.gmra.mrb[0].mxu0 %v2482
    %v2641 = vpop.f32.mrb[0].mxu0
    %v2642 = vadd.f32 0.0, %v2641
    %v2643 = vpop.f32.mrb[0].mxu0
    %2644 = vmatprep.mubr.f32.mxu0 0.0
    %2645 = vmatmul.mubr.f32.gmra.mrb[0].mxu0 %v2485
    %v2646 = vpop.f32.mrb[0].mxu0
    %v2647 = vadd.f32 0.0, %v2646
    %v2648 = vpop.f32.mrb[0].mxu0
    %2649 = vmatprep.mubr.f32.mxu0 0.0
    %2650 = vmatmul.mubr.f32.gmra.mrb[0].mxu0 %v2488
    %v2651 = vpop.f32.mrb[0].mxu0
    %v2652 = vadd.f32 0.0, %v2651
    %v2653 = vpop.f32.mrb[0].mxu0
    %2654 = vmatprep.mubr.f32.mxu0 0.0
    %2655 = vmatmul.mubr.f32.gmra.mrb[0].mxu0 %v2491
    %v2656 = vpop.f32.mrb[0].mxu0
    %v2657 = vadd.f32 0.0, %v2656
    %v2658 = vpop.f32.mrb[0].mxu0
    %2659 = vmatprep.mubr.f32.mxu0 0.0
    %2660 = vmatmul.mubr.f32.gmra.mrb[0].mxu0 %v2494
    %v2661 = vpop.f32.mrb[0].mxu0
    %v2662 = vadd.f32 0.0, %v2661
    %v2663 = vpop.f32.mrb[0].mxu0
    %2664 = vmatprep.mubr.f32.mxu0 0.0
    %2665 = vmatmul.mubr.f32.gmra.mrb[0].mxu0 %v2497
    %v2666 = vpop.f32.mrb[0].mxu0
    %v2667 = vadd.f32 0.0, %v2666
    %v2668 = vpop.f32.mrb[0].mxu0
    %2669 = vmatprep.mubr.f32.mxu0 0.0
    %2670 = vmatmul.mubr.f32.gmra.mrb[0].mxu0 %v2500
    %v2671 = vpop.f32.mrb[0].mxu0
    %v2672 = vadd.f32 0.0, %v2671
    %v2673 = vpop.f32.mrb[0].mxu0
    %2674 = vmatprep.mubr.f32.mxu0 0.0
    %2675 = vmatmul.mubr.f32.gmra.mrb[0].mxu0 %v2503
    %v2676 = vpop.f32.mrb[0].mxu0
    %v2677 = vadd.f32 0.0, %v2676
    %v2678 = vpop.f32.mrb[0].mxu0
    %2679 = vmatprep.mubr.f32.mxu0 0.0
    %2680 = vmatmul.mubr.f32.gmra.mrb[0].mxu0 %v2506
    %v2681 = vpop.f32.mrb[0].mxu0
    %v2682 = vadd.f32 0.0, %v2681
    %v2683 = vpop.f32.mrb[0].mxu0
    %2684 = vdwg.mxu0
    %2701 = vrot.lane.b32.xlu0 %v2302, 124
    %v2702 = vpop.permute.xlu0 %2701
    %2703 = vrot.lane.b32.xlu0 %v2307, 124
    %v2704 = vpop.permute.xlu0 %2703
    %2705 = vrot.lane.b32.xlu0 %v2312, 124
    %v2706 = vpop.permute.xlu0 %2705
    %2707 = vrot.lane.b32.xlu0 %v2317, 124
    %v2708 = vpop.permute.xlu0 %2707
    %2709 = vrot.lane.b32.xlu0 %v2322, 124
    %v2710 = vpop.permute.xlu0 %2709
    %2711 = vrot.lane.b32.xlu0 %v2327, 124
    %v2712 = vpop.permute.xlu0 %2711
    %2713 = vrot.lane.b32.xlu0 %v2332, 124
    %v2714 = vpop.permute.xlu0 %2713
    %2715 = vrot.lane.b32.xlu0 %v2337, 124
    %v2716 = vpop.permute.xlu0 %2715
    %2717 = vrot.lane.b32.xlu0 %v2342, 124
    %v2718 = vpop.permute.xlu0 %2717
    %2719 = vrot.lane.b32.xlu0 %v2347, 124
    %v2720 = vpop.permute.xlu0 %2719
    %2721 = vrot.lane.b32.xlu0 %v2352, 124
    %v2722 = vpop.permute.xlu0 %2721
    %2723 = vrot.lane.b32.xlu0 %v2357, 124
    %v2724 = vpop.permute.xlu0 %2723
    %2725 = vrot.lane.b32.xlu0 %v2362, 124
    %v2726 = vpop.permute.xlu0 %2725
    %2727 = vrot.lane.b32.xlu0 %v2367, 124
    %v2728 = vpop.permute.xlu0 %2727
    %2729 = vrot.lane.b32.xlu0 %v2372, 124
    %v2730 = vpop.permute.xlu0 %2729
    %2731 = vrot.lane.b32.xlu0 %v2377, 124
    %v2732 = vpop.permute.xlu0 %2731
    %v2734 = vsel %vm122, %v2396, 0
    %v2737 = vsel %vm122, %v2397, 0
    %v2740 = vsel %vm122, %v2398, 0
    %v2743 = vsel %vm122, %v2399, 0
    %v2746 = vsel %vm122, %v2400, 0
    %v2749 = vsel %vm122, %v2401, 0
    %v2752 = vsel %vm122, %v2402, 0
    %v2755 = vsel %vm122, %v2403, 0
    %v2758 = vsel %vm122, %v2404, 0
    %v2761 = vsel %vm122, %v2405, 0
    %v2764 = vsel %vm122, %v2406, 0
    %v2767 = vsel %vm122, %v2407, 0
    %v2770 = vsel %vm122, %v2408, 0
    %v2773 = vsel %vm122, %v2409, 0
    %v2776 = vsel %vm122, %v2410, 0
    %v2779 = vsel %vm122, %v2411, 0
    %v2781 = vsel %vm122, %v2702, 0
    %v2783 = vsel %vm122, %v2704, 0
    %v2785 = vsel %vm122, %v2706, 0
    %v2787 = vsel %vm122, %v2708, 0
    %v2789 = vsel %vm122, %v2710, 0
    %v2791 = vsel %vm122, %v2712, 0
    %v2793 = vsel %vm122, %v2714, 0
    %v2795 = vsel %vm122, %v2716, 0
    %v2797 = vsel %vm122, %v2718, 0
    %v2799 = vsel %vm122, %v2720, 0
    %v2801 = vsel %vm122, %v2722, 0
    %v2803 = vsel %vm122, %v2724, 0
    %v2805 = vsel %vm122, %v2726, 0
    %v2807 = vsel %vm122, %v2728, 0
    %v2809 = vsel %vm122, %v2730, 0
    %v2811 = vsel %vm122, %v2732, 0
    %2813 = vmatprep.subr.mxu0 0.0
    %2814 = vmatpush1.xpose.msra.mxu0 %v2781
    %2815 = vmatprep.subr.mxu0 0.0
    %2816 = vmatpush1.xpose.msra.mxu0 %v2783
    %2817 = vmatprep.subr.mxu0 0.0
    %2818 = vmatpush1.xpose.msra.mxu0 %v2785
    %2819 = vmatprep.subr.mxu0 0.0
    %2820 = vmatpush1.xpose.msra.mxu0 %v2787
    %2821 = vmatprep.subr.mxu0 0.0
    %2822 = vmatpush1.xpose.msra.mxu0 %v2789
    %2823 = vmatprep.subr.mxu0 0.0
    %2824 = vmatpush1.xpose.msra.mxu0 %v2791
    %2825 = vmatprep.subr.mxu0 0.0
    %2826 = vmatpush1.xpose.msra.mxu0 %v2793
    %2827 = vmatprep.subr.mxu0 0.0
    %2828 = vmatpush1.xpose.msra.mxu0 %v2795
    %2829 = vmatprep.subr.mxu0 0.0
    %2830 = vmatpush1.xpose.msra.mxu0 %v2797
    %2831 = vmatprep.subr.mxu0 0.0
    %2832 = vmatpush1.xpose.msra.mxu0 %v2799
    %2833 = vmatprep.subr.mxu0 0.0
    %2834 = vmatpush1.xpose.msra.mxu0 %v2801
    %2835 = vmatprep.subr.mxu0 0.0
    %2836 = vmatpush1.xpose.msra.mxu0 %v2803
    %2837 = vmatprep.subr.mxu0 0.0
    %2838 = vmatpush1.xpose.msra.mxu0 %v2805
    %2839 = vmatprep.subr.mxu0 0.0
    %2840 = vmatpush1.xpose.msra.mxu0 %v2807
    %2841 = vmatprep.subr.mxu0 0.0
    %2842 = vmatpush1.xpose.msra.mxu0 %v2809
    %2843 = vmatprep.subr.mxu0 0.0
    %2844 = vmatpush1.xpose.msra.mxu0 %v2811
    %2845 = vmatprep.subr.mxu0 0.0
    %2846 = vmatpush1.xpose.msra.mxu0 0.0
    %2847 = vmatprep.subr.mxu0 0.0
    %2848 = vmatpush1.xpose.msra.mxu0 0.0
    %2849 = vmatprep.subr.mxu0 0.0
    %2850 = vmatpush1.xpose.msra.mxu0 0.0
    %2851 = vmatprep.subr.mxu0 0.0
    %2852 = vmatpush1.xpose.msra.mxu0 0.0
    %2853 = vmatprep.subr.mxu0 0.0
    %2854 = vmatpush1.xpose.msra.mxu0 0.0
    %2855 = vmatprep.subr.mxu0 0.0
    %2856 = vmatpush1.xpose.msra.mxu0 0.0
    %2857 = vmatprep.subr.mxu0 0.0
    %2858 = vmatpush1.xpose.msra.mxu0 0.0
    %2859 = vmatprep.subr.mxu0 0.0
    %2860 = vmatpush1.xpose.msra.mxu0 0.0
    %2861 = vmatprep.subr.mxu0 0.0
    %2862 = vmatpush1.xpose.msra.mxu0 0.0
    %2863 = vmatprep.subr.mxu0 0.0
    %2864 = vmatpush1.xpose.msra.mxu0 0.0
    %2865 = vmatprep.subr.mxu0 0.0
    %2866 = vmatpush1.xpose.msra.mxu0 0.0
    %2867 = vmatprep.subr.mxu0 0.0
    %2868 = vmatpush1.xpose.msra.mxu0 0.0
    %2869 = vmatprep.subr.mxu0 0.0
    %2870 = vmatpush1.xpose.msra.mxu0 0.0
    %2871 = vmatprep.subr.mxu0 0.0
    %2872 = vmatpush1.xpose.msra.mxu0 0.0
    %2873 = vmatprep.subr.mxu0 0.0
    %2874 = vmatpush1.xpose.msra.mxu0 0.0
    %2875 = vmatprep.subr.mxu0 0.0
    %2876 = vmatpush1.xpose.msra.mxu0 0.0
    %2877 = vmatprep.mubr.f32.mxu0 0.0
    %2878 = vmatmul.mubr.f32.gmra.mrb[0].mxu0 %v2734
    %v2879 = vpop.f32.mrb[0].mxu0
    %v2880 = vadd.f32 0.0, %v2879
    %v2881 = vpop.f32.mrb[0].mxu0
    %2882 = vmatprep.mubr.f32.mxu0 0.0
    %2883 = vmatmul.mubr.f32.gmra.mrb[0].mxu0 %v2737
    %v2884 = vpop.f32.mrb[0].mxu0
    %v2885 = vadd.f32 0.0, %v2884
    %v2886 = vpop.f32.mrb[0].mxu0
    %2887 = vmatprep.mubr.f32.mxu0 0.0
    %2888 = vmatmul.mubr.f32.gmra.mrb[0].mxu0 %v2740
    %v2889 = vpop.f32.mrb[0].mxu0
    %v2890 = vadd.f32 0.0, %v2889
    %v2891 = vpop.f32.mrb[0].mxu0
    %2892 = vmatprep.mubr.f32.mxu0 0.0
    %2893 = vmatmul.mubr.f32.gmra.mrb[0].mxu0 %v2743
    %v2894 = vpop.f32.mrb[0].mxu0
    %v2895 = vadd.f32 0.0, %v2894
    %v2896 = vpop.f32.mrb[0].mxu0
    %2897 = vmatprep.mubr.f32.mxu0 0.0
    %2898 = vmatmul.mubr.f32.gmra.mrb[0].mxu0 %v2746
    %v2899 = vpop.f32.mrb[0].mxu0
    %v2900 = vadd.f32 0.0, %v2899
    %v2901 = vpop.f32.mrb[0].mxu0
    %2902 = vmatprep.mubr.f32.mxu0 0.0
    %2903 = vmatmul.mubr.f32.gmra.mrb[0].mxu0 %v2749
    %v2904 = vpop.f32.mrb[0].mxu0
    %v2905 = vadd.f32 0.0, %v2904
    %v2906 = vpop.f32.mrb[0].mxu0
    %2907 = vmatprep.mubr.f32.mxu0 0.0
    %2908 = vmatmul.mubr.f32.gmra.mrb[0].mxu0 %v2752
    %v2909 = vpop.f32.mrb[0].mxu0
    %v2910 = vadd.f32 0.0, %v2909
    %v2911 = vpop.f32.mrb[0].mxu0
    %2912 = vmatprep.mubr.f32.mxu0 0.0
    %2913 = vmatmul.mubr.f32.gmra.mrb[0].mxu0 %v2755
    %v2914 = vpop.f32.mrb[0].mxu0
    %v2915 = vadd.f32 0.0, %v2914
    %v2916 = vpop.f32.mrb[0].mxu0
    %2917 = vmatprep.mubr.f32.mxu0 0.0
    %2918 = vmatmul.mubr.f32.gmra.mrb[0].mxu0 %v2758
    %v2919 = vpop.f32.mrb[0].mxu0
    %v2920 = vadd.f32 0.0, %v2919
    %v2921 = vpop.f32.mrb[0].mxu0
    %2922 = vmatprep.mubr.f32.mxu0 0.0
    %2923 = vmatmul.mubr.f32.gmra.mrb[0].mxu0 %v2761
    %v2924 = vpop.f32.mrb[0].mxu0
    %v2925 = vadd.f32 0.0, %v2924
    %v2926 = vpop.f32.mrb[0].mxu0
    %2927 = vmatprep.mubr.f32.mxu0 0.0
    %2928 = vmatmul.mubr.f32.gmra.mrb[0].mxu0 %v2764
    %v2929 = vpop.f32.mrb[0].mxu0
    %v2930 = vadd.f32 0.0, %v2929
    %v2931 = vpop.f32.mrb[0].mxu0
    %2932 = vmatprep.mubr.f32.mxu0 0.0
    %2933 = vmatmul.mubr.f32.gmra.mrb[0].mxu0 %v2767
    %v2934 = vpop.f32.mrb[0].mxu0
    %v2935 = vadd.f32 0.0, %v2934
    %v2936 = vpop.f32.mrb[0].mxu0
    %2937 = vmatprep.mubr.f32.mxu0 0.0
    %2938 = vmatmul.mubr.f32.gmra.mrb[0].mxu0 %v2770
    %v2939 = vpop.f32.mrb[0].mxu0
    %v2940 = vadd.f32 0.0, %v2939
    %v2941 = vpop.f32.mrb[0].mxu0
    %2942 = vmatprep.mubr.f32.mxu0 0.0
    %2943 = vmatmul.mubr.f32.gmra.mrb[0].mxu0 %v2773
    %v2944 = vpop.f32.mrb[0].mxu0
    %v2945 = vadd.f32 0.0, %v2944
    %v2946 = vpop.f32.mrb[0].mxu0
    %2947 = vmatprep.mubr.f32.mxu0 0.0
    %2948 = vmatmul.mubr.f32.gmra.mrb[0].mxu0 %v2776
    %v2949 = vpop.f32.mrb[0].mxu0
    %v2950 = vadd.f32 0.0, %v2949
    %v2951 = vpop.f32.mrb[0].mxu0
    %2952 = vmatprep.mubr.f32.mxu0 0.0
    %2953 = vmatmul.mubr.f32.gmra.mrb[0].mxu0 %v2779
    %v2954 = vpop.f32.mrb[0].mxu0
    %v2955 = vadd.f32 0.0, %v2954
    %v2956 = vpop.f32.mrb[0].mxu0
    %2957 = vdwg.mxu0
    %v2958 = vlaneseq
    %v2959 = vand.u32 %v2958, 127
    %vm2960 = vcmp.lt.s32.totalorder %v2959, 121
    %v2961 = vsel %vm2960, 1, 0
    %vm2962 = vcmp.eq.s32.totalorder %v2961, 1
    %v2963 = vsel %vm2962, %v2607, -1e+30
    %v2964 = vsel %vm2962, %v2612, -1e+30
    %v2965 = vsel %vm2962, %v2617, -1e+30
    %v2966 = vsel %vm2962, %v2622, -1e+30
    %v2967 = vsel %vm2962, %v2627, -1e+30
    %v2968 = vsel %vm2962, %v2632, -1e+30
    %v2969 = vsel %vm2962, %v2637, -1e+30
    %v2970 = vsel %vm2962, %v2642, -1e+30
    %v2971 = vsel %vm2962, %v2647, -1e+30
    %v2972 = vsel %vm2962, %v2652, -1e+30
    %v2973 = vsel %vm2962, %v2657, -1e+30
    %v2974 = vsel %vm2962, %v2662, -1e+30
    %v2975 = vsel %vm2962, %v2667, -1e+30
    %v2976 = vsel %vm2962, %v2672, -1e+30
    %v2977 = vsel %vm2962, %v2677, -1e+30
    %v2978 = vsel %vm2962, %v2682, -1e+30
    %v2979 = vsel %vm2962, %v2880, -1e+30
    %v2980 = vsel %vm2962, %v2885, -1e+30
    %v2981 = vsel %vm2962, %v2890, -1e+30
    %v2982 = vsel %vm2962, %v2895, -1e+30
    %v2983 = vsel %vm2962, %v2900, -1e+30
    %v2984 = vsel %vm2962, %v2905, -1e+30
    %v2985 = vsel %vm2962, %v2910, -1e+30
    %v2986 = vsel %vm2962, %v2915, -1e+30
    %v2987 = vsel %vm2962, %v2920, -1e+30
    %v2988 = vsel %vm2962, %v2925, -1e+30
    %v2989 = vsel %vm2962, %v2930, -1e+30
    %v2990 = vsel %vm2962, %v2935, -1e+30
    %v2991 = vsel %vm2962, %v2940, -1e+30
    %v2992 = vsel %vm2962, %v2945, -1e+30
    %v2993 = vsel %vm2962, %v2950, -1e+30
    %v2994 = vsel %vm2962, %v2955, -1e+30
    %2995 = vmax.xlane.f32.xlu0 %v2963
    %v2996 = vpop.xlane.xlu0 %2995
    %2997 = vmax.xlane.f32.xlu0 %v2964
    %v2998 = vpop.xlane.xlu0 %2997
    %2999 = vmax.xlane.f32.xlu0 %v2965
    %v3000 = vpop.xlane.xlu0 %2999
    %3001 = vmax.xlane.f32.xlu0 %v2966
    %v3002 = vpop.xlane.xlu0 %3001
    %3003 = vmax.xlane.f32.xlu0 %v2967
    %v3004 = vpop.xlane.xlu0 %3003
    %3005 = vmax.xlane.f32.xlu0 %v2968
    %v3006 = vpop.xlane.xlu0 %3005
    %3007 = vmax.xlane.f32.xlu0 %v2969
    %v3008 = vpop.xlane.xlu0 %3007
    %3009 = vmax.xlane.f32.xlu0 %v2970
    %v3010 = vpop.xlane.xlu0 %3009
    %3011 = vmax.xlane.f32.xlu0 %v2971
    %v3012 = vpop.xlane.xlu0 %3011
    %3013 = vmax.xlane.f32.xlu0 %v2972
    %v3014 = vpop.xlane.xlu0 %3013
    %3015 = vmax.xlane.f32.xlu0 %v2973
    %v3016 = vpop.xlane.xlu0 %3015
    %3017 = vmax.xlane.f32.xlu0 %v2974
    %v3018 = vpop.xlane.xlu0 %3017
    %3019 = vmax.xlane.f32.xlu0 %v2975
    %v3020 = vpop.xlane.xlu0 %3019
    %3021 = vmax.xlane.f32.xlu0 %v2976
    %v3022 = vpop.xlane.xlu0 %3021
    %3023 = vmax.xlane.f32.xlu0 %v2977
    %v3024 = vpop.xlane.xlu0 %3023
    %3025 = vmax.xlane.f32.xlu0 %v2978
    %v3026 = vpop.xlane.xlu0 %3025
    %3027 = vmax.xlane.f32.xlu0 %v2979
    %v3028 = vpop.xlane.xlu0 %3027
    %3029 = vmax.xlane.f32.xlu0 %v2980
    %v3030 = vpop.xlane.xlu0 %3029
    %3031 = vmax.xlane.f32.xlu0 %v2981
    %v3032 = vpop.xlane.xlu0 %3031
    %3033 = vmax.xlane.f32.xlu0 %v2982
    %v3034 = vpop.xlane.xlu0 %3033
    %3035 = vmax.xlane.f32.xlu0 %v2983
    %v3036 = vpop.xlane.xlu0 %3035
    %3037 = vmax.xlane.f32.xlu0 %v2984
    %v3038 = vpop.xlane.xlu0 %3037
    %3039 = vmax.xlane.f32.xlu0 %v2985
    %v3040 = vpop.xlane.xlu0 %3039
    %3041 = vmax.xlane.f32.xlu0 %v2986
    %v3042 = vpop.xlane.xlu0 %3041
    %3043 = vmax.xlane.f32.xlu0 %v2987
    %v3044 = vpop.xlane.xlu0 %3043
    %3045 = vmax.xlane.f32.xlu0 %v2988
    %v3046 = vpop.xlane.xlu0 %3045
    %3047 = vmax.xlane.f32.xlu0 %v2989
    %v3048 = vpop.xlane.xlu0 %3047
    %3049 = vmax.xlane.f32.xlu0 %v2990
    %v3050 = vpop.xlane.xlu0 %3049
    %3051 = vmax.xlane.f32.xlu0 %v2991
    %v3052 = vpop.xlane.xlu0 %3051
    %3053 = vmax.xlane.f32.xlu0 %v2992
    %v3054 = vpop.xlane.xlu0 %3053
    %3055 = vmax.xlane.f32.xlu0 %v2993
    %v3056 = vpop.xlane.xlu0 %3055
    %3057 = vmax.xlane.f32.xlu0 %v2994
    %v3058 = vpop.xlane.xlu0 %3057
    %v3059 = vsub.f32 %v2963, %v2996
    %v3060 = vsub.f32 %v2964, %v2998
    %v3061 = vsub.f32 %v2965, %v3000
    %v3062 = vsub.f32 %v2966, %v3002
    %v3063 = vsub.f32 %v2967, %v3004
    %v3064 = vsub.f32 %v2968, %v3006
    %v3065 = vsub.f32 %v2969, %v3008
    %v3066 = vsub.f32 %v2970, %v3010
    %v3067 = vsub.f32 %v2971, %v3012
    %v3068 = vsub.f32 %v2972, %v3014
    %v3069 = vsub.f32 %v2973, %v3016
    %v3070 = vsub.f32 %v2974, %v3018
    %v3071 = vsub.f32 %v2975, %v3020
    %v3072 = vsub.f32 %v2976, %v3022
    %v3073 = vsub.f32 %v2977, %v3024
    %v3074 = vsub.f32 %v2978, %v3026
    %v3075 = vsub.f32 %v2979, %v3028
    %v3076 = vsub.f32 %v2980, %v3030
    %v3077 = vsub.f32 %v2981, %v3032
    %v3078 = vsub.f32 %v2982, %v3034
    %v3079 = vsub.f32 %v2983, %v3036
    %v3080 = vsub.f32 %v2984, %v3038
    %v3081 = vsub.f32 %v2985, %v3040
    %v3082 = vsub.f32 %v2986, %v3042
    %v3083 = vsub.f32 %v2987, %v3044
    %v3084 = vsub.f32 %v2988, %v3046
    %v3085 = vsub.f32 %v2989, %v3048
    %v3086 = vsub.f32 %v2990, %v3050
    %v3087 = vsub.f32 %v2991, %v3052
    %v3088 = vsub.f32 %v2992, %v3054
    %v3089 = vsub.f32 %v2993, %v3056
    %v3090 = vsub.f32 %v2994, %v3058
    %v3091 = vmul.f32 %v3059, 1.442695
    %v3092 = vpow.pop %v3091
    %v3093 = vmul.f32 %v3060, 1.442695
    %v3094 = vpow.pop %v3093
    %v3095 = vmul.f32 %v3061, 1.442695
    %v3096 = vpow.pop %v3095
    %v3097 = vmul.f32 %v3062, 1.442695
    %v3098 = vpow.pop %v3097
    %v3099 = vmul.f32 %v3063, 1.442695
    %v3100 = vpow.pop %v3099
    %v3101 = vmul.f32 %v3064, 1.442695
    %v3102 = vpow.pop %v3101
    %v3103 = vmul.f32 %v3065, 1.442695
    %v3104 = vpow.pop %v3103
    %v3105 = vmul.f32 %v3066, 1.442695
    %v3106 = vpow.pop %v3105
    %v3107 = vmul.f32 %v3067, 1.442695
    %v3108 = vpow.pop %v3107
    %v3109 = vmul.f32 %v3068, 1.442695
    %v3110 = vpow.pop %v3109
    %v3111 = vmul.f32 %v3069, 1.442695
    %v3112 = vpow.pop %v3111
    %v3113 = vmul.f32 %v3070, 1.442695
    %v3114 = vpow.pop %v3113
    %v3115 = vmul.f32 %v3071, 1.442695
    %v3116 = vpow.pop %v3115
    %v3117 = vmul.f32 %v3072, 1.442695
    %v3118 = vpow.pop %v3117
    %v3119 = vmul.f32 %v3073, 1.442695
    %v3120 = vpow.pop %v3119
    %v3121 = vmul.f32 %v3074, 1.442695
    %v3122 = vpow.pop %v3121
    %v3123 = vmul.f32 %v3075, 1.442695
    %v3124 = vpow.pop %v3123
    %v3125 = vmul.f32 %v3076, 1.442695
    %v3126 = vpow.pop %v3125
    %v3127 = vmul.f32 %v3077, 1.442695
    %v3128 = vpow.pop %v3127
    %v3129 = vmul.f32 %v3078, 1.442695
    %v3130 = vpow.pop %v3129
    %v3131 = vmul.f32 %v3079, 1.442695
    %v3132 = vpow.pop %v3131
    %v3133 = vmul.f32 %v3080, 1.442695
    %v3134 = vpow.pop %v3133
    %v3135 = vmul.f32 %v3081, 1.442695
    %v3136 = vpow.pop %v3135
    %v3137 = vmul.f32 %v3082, 1.442695
    %v3138 = vpow.pop %v3137
    %v3139 = vmul.f32 %v3083, 1.442695
    %v3140 = vpow.pop %v3139
    %v3141 = vmul.f32 %v3084, 1.442695
    %v3142 = vpow.pop %v3141
    %v3143 = vmul.f32 %v3085, 1.442695
    %v3144 = vpow.pop %v3143
    %v3145 = vmul.f32 %v3086, 1.442695
    %v3146 = vpow.pop %v3145
    %v3147 = vmul.f32 %v3087, 1.442695
    %v3148 = vpow.pop %v3147
    %v3149 = vmul.f32 %v3088, 1.442695
    %v3150 = vpow.pop %v3149
    %v3151 = vmul.f32 %v3089, 1.442695
    %v3152 = vpow.pop %v3151
    %v3153 = vmul.f32 %v3090, 1.442695
    %v3154 = vpow.pop %v3153
    %3155 = vadd.xlane.f32.xlu0 %v3092
    %v3156 = vpop.xlane.xlu0 %3155
    %3157 = vadd.xlane.f32.xlu0 %v3094
    %v3158 = vpop.xlane.xlu0 %3157
    %3159 = vadd.xlane.f32.xlu0 %v3096
    %v3160 = vpop.xlane.xlu0 %3159
    %3161 = vadd.xlane.f32.xlu0 %v3098
    %v3162 = vpop.xlane.xlu0 %3161
    %3163 = vadd.xlane.f32.xlu0 %v3100
    %v3164 = vpop.xlane.xlu0 %3163
    %3165 = vadd.xlane.f32.xlu0 %v3102
    %v3166 = vpop.xlane.xlu0 %3165
    %3167 = vadd.xlane.f32.xlu0 %v3104
    %v3168 = vpop.xlane.xlu0 %3167
    %3169 = vadd.xlane.f32.xlu0 %v3106
    %v3170 = vpop.xlane.xlu0 %3169
    %3171 = vadd.xlane.f32.xlu0 %v3108
    %v3172 = vpop.xlane.xlu0 %3171
    %3173 = vadd.xlane.f32.xlu0 %v3110
    %v3174 = vpop.xlane.xlu0 %3173
    %3175 = vadd.xlane.f32.xlu0 %v3112
    %v3176 = vpop.xlane.xlu0 %3175
    %3177 = vadd.xlane.f32.xlu0 %v3114
    %v3178 = vpop.xlane.xlu0 %3177
    %3179 = vadd.xlane.f32.xlu0 %v3116
    %v3180 = vpop.xlane.xlu0 %3179
    %3181 = vadd.xlane.f32.xlu0 %v3118
    %v3182 = vpop.xlane.xlu0 %3181
    %3183 = vadd.xlane.f32.xlu0 %v3120
    %v3184 = vpop.xlane.xlu0 %3183
    %3185 = vadd.xlane.f32.xlu0 %v3122
    %v3186 = vpop.xlane.xlu0 %3185
    %3187 = vadd.xlane.f32.xlu0 %v3124
    %v3188 = vpop.xlane.xlu0 %3187
    %3189 = vadd.xlane.f32.xlu0 %v3126
    %v3190 = vpop.xlane.xlu0 %3189
    %3191 = vadd.xlane.f32.xlu0 %v3128
    %v3192 = vpop.xlane.xlu0 %3191
    %3193 = vadd.xlane.f32.xlu0 %v3130
    %v3194 = vpop.xlane.xlu0 %3193
    %3195 = vadd.xlane.f32.xlu0 %v3132
    %v3196 = vpop.xlane.xlu0 %3195
    %3197 = vadd.xlane.f32.xlu0 %v3134
    %v3198 = vpop.xlane.xlu0 %3197
    %3199 = vadd.xlane.f32.xlu0 %v3136
    %v3200 = vpop.xlane.xlu0 %3199
    %3201 = vadd.xlane.f32.xlu0 %v3138
    %v3202 = vpop.xlane.xlu0 %3201
    %3203 = vadd.xlane.f32.xlu0 %v3140
    %v3204 = vpop.xlane.xlu0 %3203
    %3205 = vadd.xlane.f32.xlu0 %v3142
    %v3206 = vpop.xlane.xlu0 %3205
    %3207 = vadd.xlane.f32.xlu0 %v3144
    %v3208 = vpop.xlane.xlu0 %3207
    %3209 = vadd.xlane.f32.xlu0 %v3146
    %v3210 = vpop.xlane.xlu0 %3209
    %3211 = vadd.xlane.f32.xlu0 %v3148
    %v3212 = vpop.xlane.xlu0 %3211
    %3213 = vadd.xlane.f32.xlu0 %v3150
    %v3214 = vpop.xlane.xlu0 %3213
    %3215 = vadd.xlane.f32.xlu0 %v3152
    %v3216 = vpop.xlane.xlu0 %3215
    %3217 = vadd.xlane.f32.xlu0 %v3154
    %v3218 = vpop.xlane.xlu0 %3217
    %3219 = vrot.lane.b32.xlu0 %v2222, 120
    %v3220 = vpop.permute.xlu0 %3219
    %3221 = vrot.lane.b32.xlu0 %v2227, 120
    %v3222 = vpop.permute.xlu0 %3221
    %3223 = vrot.lane.b32.xlu0 %v2232, 120
    %v3224 = vpop.permute.xlu0 %3223
    %3225 = vrot.lane.b32.xlu0 %v2237, 120
    %v3226 = vpop.permute.xlu0 %3225
    %3227 = vrot.lane.b32.xlu0 %v2242, 120
    %v3228 = vpop.permute.xlu0 %3227
    %3229 = vrot.lane.b32.xlu0 %v2247, 120
    %v3230 = vpop.permute.xlu0 %3229
    %3231 = vrot.lane.b32.xlu0 %v2252, 120
    %v3232 = vpop.permute.xlu0 %3231
    %3233 = vrot.lane.b32.xlu0 %v2257, 120
    %v3234 = vpop.permute.xlu0 %3233
    %3235 = vrot.lane.b32.xlu0 %v2262, 120
    %v3236 = vpop.permute.xlu0 %3235
    %3237 = vrot.lane.b32.xlu0 %v2267, 120
    %v3238 = vpop.permute.xlu0 %3237
    %3239 = vrot.lane.b32.xlu0 %v2272, 120
    %v3240 = vpop.permute.xlu0 %3239
    %3241 = vrot.lane.b32.xlu0 %v2277, 120
    %v3242 = vpop.permute.xlu0 %3241
    %3243 = vrot.lane.b32.xlu0 %v2282, 120
    %v3244 = vpop.permute.xlu0 %3243
    %3245 = vrot.lane.b32.xlu0 %v2287, 120
    %v3246 = vpop.permute.xlu0 %3245
    %3247 = vrot.lane.b32.xlu0 %v2292, 120
    %v3248 = vpop.permute.xlu0 %3247
    %3249 = vrot.lane.b32.xlu0 %v2297, 120
    %v3250 = vpop.permute.xlu0 %3249
    %3267 = vmatprep.subr.mxu0 0.0
    %3268 = vmatpush1.msra.mxu0 %v3220
    %3269 = vmatprep.subr.mxu0 0.0
    %3270 = vmatpush1.msra.mxu0 %v3222
    %3271 = vmatprep.subr.mxu0 0.0
    %3272 = vmatpush1.msra.mxu0 %v3224
    %3273 = vmatprep.subr.mxu0 0.0
    %3274 = vmatpush1.msra.mxu0 %v3226
    %3275 = vmatprep.subr.mxu0 0.0
    %3276 = vmatpush1.msra.mxu0 %v3228
    %3277 = vmatprep.subr.mxu0 0.0
    %3278 = vmatpush1.msra.mxu0 %v3230
    %3279 = vmatprep.subr.mxu0 0.0
    %3280 = vmatpush1.msra.mxu0 %v3232
    %3281 = vmatprep.subr.mxu0 0.0
    %3282 = vmatpush1.msra.mxu0 %v3234
    %3283 = vmatprep.subr.mxu0 0.0
    %3284 = vmatpush1.msra.mxu0 %v3236
    %3285 = vmatprep.subr.mxu0 0.0
    %3286 = vmatpush1.msra.mxu0 %v3238
    %3287 = vmatprep.subr.mxu0 0.0
    %3288 = vmatpush1.msra.mxu0 %v3240
    %3289 = vmatprep.subr.mxu0 0.0
    %3290 = vmatpush1.msra.mxu0 %v3242
    %3291 = vmatprep.subr.mxu0 0.0
    %3292 = vmatpush1.msra.mxu0 %v3244
    %3293 = vmatprep.subr.mxu0 0.0
    %3294 = vmatpush1.msra.mxu0 %v3246
    %3295 = vmatprep.subr.mxu0 0.0
    %3296 = vmatpush1.msra.mxu0 %v3248
    %3297 = vmatprep.subr.mxu0 0.0
    %3298 = vmatpush1.msra.mxu0 %v3250
    %3299 = vmatprep.subr.mxu0 0.0
    %3300 = vmatpush1.msra.mxu0 0.0
    %3301 = vmatprep.subr.mxu0 0.0
    %3302 = vmatpush1.msra.mxu0 0.0
    %3303 = vmatprep.subr.mxu0 0.0
    %3304 = vmatpush1.msra.mxu0 0.0
    %3305 = vmatprep.subr.mxu0 0.0
    %3306 = vmatpush1.msra.mxu0 0.0
    %3307 = vmatprep.subr.mxu0 0.0
    %3308 = vmatpush1.msra.mxu0 0.0
    %3309 = vmatprep.subr.mxu0 0.0
    %3310 = vmatpush1.msra.mxu0 0.0
    %3311 = vmatprep.subr.mxu0 0.0
    %3312 = vmatpush1.msra.mxu0 0.0
    %3313 = vmatprep.subr.mxu0 0.0
    %3314 = vmatpush1.msra.mxu0 0.0
    %3315 = vmatprep.subr.mxu0 0.0
    %3316 = vmatpush1.msra.mxu0 0.0
    %3317 = vmatprep.subr.mxu0 0.0
    %3318 = vmatpush1.msra.mxu0 0.0
    %3319 = vmatprep.subr.mxu0 0.0
    %3320 = vmatpush1.msra.mxu0 0.0
    %3321 = vmatprep.subr.mxu0 0.0
    %3322 = vmatpush1.msra.mxu0 0.0
    %3323 = vmatprep.subr.mxu0 0.0
    %3324 = vmatpush1.msra.mxu0 0.0
    %3325 = vmatprep.subr.mxu0 0.0
    %3326 = vmatpush1.msra.mxu0 0.0
    %3327 = vmatprep.subr.mxu0 0.0
    %3328 = vmatpush1.msra.mxu0 0.0
    %3329 = vmatprep.subr.mxu0 0.0
    %3330 = vmatpush1.msra.mxu0 0.0
    %3331 = vmatprep.mubr.f32.mxu0 0.0
    %3332 = vmatmul.mubr.f32.gmra.mrb[0].mxu0 %v3092
    %v3333 = vpop.f32.mrb[0].mxu0
    %v3334 = vadd.f32 0.0, %v3333
    %v3335 = vpop.f32.mrb[0].mxu0
    %3336 = vmatprep.mubr.f32.mxu0 0.0
    %3337 = vmatmul.mubr.f32.gmra.mrb[0].mxu0 %v3094
    %v3338 = vpop.f32.mrb[0].mxu0
    %v3339 = vadd.f32 0.0, %v3338
    %v3340 = vpop.f32.mrb[0].mxu0
    %3341 = vmatprep.mubr.f32.mxu0 0.0
    %3342 = vmatmul.mubr.f32.gmra.mrb[0].mxu0 %v3096
    %v3343 = vpop.f32.mrb[0].mxu0
    %v3344 = vadd.f32 0.0, %v3343
    %v3345 = vpop.f32.mrb[0].mxu0
    %3346 = vmatprep.mubr.f32.mxu0 0.0
    %3347 = vmatmul.mubr.f32.gmra.mrb[0].mxu0 %v3098
    %v3348 = vpop.f32.mrb[0].mxu0
    %v3349 = vadd.f32 0.0, %v3348
    %v3350 = vpop.f32.mrb[0].mxu0
    %3351 = vmatprep.mubr.f32.mxu0 0.0
    %3352 = vmatmul.mubr.f32.gmra.mrb[0].mxu0 %v3100
    %v3353 = vpop.f32.mrb[0].mxu0
    %v3354 = vadd.f32 0.0, %v3353
    %v3355 = vpop.f32.mrb[0].mxu0
    %3356 = vmatprep.mubr.f32.mxu0 0.0
    %3357 = vmatmul.mubr.f32.gmra.mrb[0].mxu0 %v3102
    %v3358 = vpop.f32.mrb[0].mxu0
    %v3359 = vadd.f32 0.0, %v3358
    %v3360 = vpop.f32.mrb[0].mxu0
    %3361 = vmatprep.mubr.f32.mxu0 0.0
    %3362 = vmatmul.mubr.f32.gmra.mrb[0].mxu0 %v3104
    %v3363 = vpop.f32.mrb[0].mxu0
    %v3364 = vadd.f32 0.0, %v3363
    %v3365 = vpop.f32.mrb[0].mxu0
    %3366 = vmatprep.mubr.f32.mxu0 0.0
    %3367 = vmatmul.mubr.f32.gmra.mrb[0].mxu0 %v3106
    %v3368 = vpop.f32.mrb[0].mxu0
    %v3369 = vadd.f32 0.0, %v3368
    %v3370 = vpop.f32.mrb[0].mxu0
    %3371 = vmatprep.mubr.f32.mxu0 0.0
    %3372 = vmatmul.mubr.f32.gmra.mrb[0].mxu0 %v3108
    %v3373 = vpop.f32.mrb[0].mxu0
    %v3374 = vadd.f32 0.0, %v3373
    %v3375 = vpop.f32.mrb[0].mxu0
    %3376 = vmatprep.mubr.f32.mxu0 0.0
    %3377 = vmatmul.mubr.f32.gmra.mrb[0].mxu0 %v3110
    %v3378 = vpop.f32.mrb[0].mxu0
    %v3379 = vadd.f32 0.0, %v3378
    %v3380 = vpop.f32.mrb[0].mxu0
    %3381 = vmatprep.mubr.f32.mxu0 0.0
    %3382 = vmatmul.mubr.f32.gmra.mrb[0].mxu0 %v3112
    %v3383 = vpop.f32.mrb[0].mxu0
    %v3384 = vadd.f32 0.0, %v3383
    %v3385 = vpop.f32.mrb[0].mxu0
    %3386 = vmatprep.mubr.f32.mxu0 0.0
    %3387 = vmatmul.mubr.f32.gmra.mrb[0].mxu0 %v3114
    %v3388 = vpop.f32.mrb[0].mxu0
    %v3389 = vadd.f32 0.0, %v3388
    %v3390 = vpop.f32.mrb[0].mxu0
    %3391 = vmatprep.mubr.f32.mxu0 0.0
    %3392 = vmatmul.mubr.f32.gmra.mrb[0].mxu0 %v3116
    %v3393 = vpop.f32.mrb[0].mxu0
    %v3394 = vadd.f32 0.0, %v3393
    %v3395 = vpop.f32.mrb[0].mxu0
    %3396 = vmatprep.mubr.f32.mxu0 0.0
    %3397 = vmatmul.mubr.f32.gmra.mrb[0].mxu0 %v3118
    %v3398 = vpop.f32.mrb[0].mxu0
    %v3399 = vadd.f32 0.0, %v3398
    %v3400 = vpop.f32.mrb[0].mxu0
    %3401 = vmatprep.mubr.f32.mxu0 0.0
    %3402 = vmatmul.mubr.f32.gmra.mrb[0].mxu0 %v3120
    %v3403 = vpop.f32.mrb[0].mxu0
    %v3404 = vadd.f32 0.0, %v3403
    %v3405 = vpop.f32.mrb[0].mxu0
    %3406 = vmatprep.mubr.f32.mxu0 0.0
    %3407 = vmatmul.mubr.f32.gmra.mrb[0].mxu0 %v3122
    %v3408 = vpop.f32.mrb[0].mxu0
    %v3409 = vadd.f32 0.0, %v3408
    %v3410 = vpop.f32.mrb[0].mxu0
    %3411 = vdwg.mxu0
    %3412 = vrot.lane.b32.xlu0 %v2302, 120
    %v3413 = vpop.permute.xlu0 %3412
    %3414 = vrot.lane.b32.xlu0 %v2307, 120
    %v3415 = vpop.permute.xlu0 %3414
    %3416 = vrot.lane.b32.xlu0 %v2312, 120
    %v3417 = vpop.permute.xlu0 %3416
    %3418 = vrot.lane.b32.xlu0 %v2317, 120
    %v3419 = vpop.permute.xlu0 %3418
    %3420 = vrot.lane.b32.xlu0 %v2322, 120
    %v3421 = vpop.permute.xlu0 %3420
    %3422 = vrot.lane.b32.xlu0 %v2327, 120
    %v3423 = vpop.permute.xlu0 %3422
    %3424 = vrot.lane.b32.xlu0 %v2332, 120
    %v3425 = vpop.permute.xlu0 %3424
    %3426 = vrot.lane.b32.xlu0 %v2337, 120
    %v3427 = vpop.permute.xlu0 %3426
    %3428 = vrot.lane.b32.xlu0 %v2342, 120
    %v3429 = vpop.permute.xlu0 %3428
    %3430 = vrot.lane.b32.xlu0 %v2347, 120
    %v3431 = vpop.permute.xlu0 %3430
    %3432 = vrot.lane.b32.xlu0 %v2352, 120
    %v3433 = vpop.permute.xlu0 %3432
    %3434 = vrot.lane.b32.xlu0 %v2357, 120
    %v3435 = vpop.permute.xlu0 %3434
    %3436 = vrot.lane.b32.xlu0 %v2362, 120
    %v3437 = vpop.permute.xlu0 %3436
    %3438 = vrot.lane.b32.xlu0 %v2367, 120
    %v3439 = vpop.permute.xlu0 %3438
    %3440 = vrot.lane.b32.xlu0 %v2372, 120
    %v3441 = vpop.permute.xlu0 %3440
    %3442 = vrot.lane.b32.xlu0 %v2377, 120
    %v3443 = vpop.permute.xlu0 %3442
    %3460 = vmatprep.subr.mxu0 0.0
    %3461 = vmatpush1.msra.mxu0 %v3413
    %3462 = vmatprep.subr.mxu0 0.0
    %3463 = vmatpush1.msra.mxu0 %v3415
    %3464 = vmatprep.subr.mxu0 0.0
    %3465 = vmatpush1.msra.mxu0 %v3417
    %3466 = vmatprep.subr.mxu0 0.0
    %3467 = vmatpush1.msra.mxu0 %v3419
    %3468 = vmatprep.subr.mxu0 0.0
    %3469 = vmatpush1.msra.mxu0 %v3421
    %3470 = vmatprep.subr.mxu0 0.0
    %3471 = vmatpush1.msra.mxu0 %v3423
    %3472 = vmatprep.subr.mxu0 0.0
    %3473 = vmatpush1.msra.mxu0 %v3425
    %3474 = vmatprep.subr.mxu0 0.0
    %3475 = vmatpush1.msra.mxu0 %v3427
    %3476 = vmatprep.subr.mxu0 0.0
    %3477 = vmatpush1.msra.mxu0 %v3429
    %3478 = vmatprep.subr.mxu0 0.0
    %3479 = vmatpush1.msra.mxu0 %v3431
    %3480 = vmatprep.subr.mxu0 0.0
    %3481 = vmatpush1.msra.mxu0 %v3433
    %3482 = vmatprep.subr.mxu0 0.0
    %3483 = vmatpush1.msra.mxu0 %v3435
    %3484 = vmatprep.subr.mxu0 0.0
    %3485 = vmatpush1.msra.mxu0 %v3437
    %3486 = vmatprep.subr.mxu0 0.0
    %3487 = vmatpush1.msra.mxu0 %v3439
    %3488 = vmatprep.subr.mxu0 0.0
    %3489 = vmatpush1.msra.mxu0 %v3441
    %3490 = vmatprep.subr.mxu0 0.0
    %3491 = vmatpush1.msra.mxu0 %v3443
    %3492 = vmatprep.subr.mxu0 0.0
    %3493 = vmatpush1.msra.mxu0 0.0
    %3494 = vmatprep.subr.mxu0 0.0
    %3495 = vmatpush1.msra.mxu0 0.0
    %3496 = vmatprep.subr.mxu0 0.0
    %3497 = vmatpush1.msra.mxu0 0.0
    %3498 = vmatprep.subr.mxu0 0.0
    %3499 = vmatpush1.msra.mxu0 0.0
    %3500 = vmatprep.subr.mxu0 0.0
    %3501 = vmatpush1.msra.mxu0 0.0
    %3502 = vmatprep.subr.mxu0 0.0
    %3503 = vmatpush1.msra.mxu0 0.0
    %3504 = vmatprep.subr.mxu0 0.0
    %3505 = vmatpush1.msra.mxu0 0.0
    %3506 = vmatprep.subr.mxu0 0.0
    %3507 = vmatpush1.msra.mxu0 0.0
    %3508 = vmatprep.subr.mxu0 0.0
    %3509 = vmatpush1.msra.mxu0 0.0
    %3510 = vmatprep.subr.mxu0 0.0
    %3511 = vmatpush1.msra.mxu0 0.0
    %3512 = vmatprep.subr.mxu0 0.0
    %3513 = vmatpush1.msra.mxu0 0.0
    %3514 = vmatprep.subr.mxu0 0.0
    %3515 = vmatpush1.msra.mxu0 0.0
    %3516 = vmatprep.subr.mxu0 0.0
    %3517 = vmatpush1.msra.mxu0 0.0
    %3518 = vmatprep.subr.mxu0 0.0
    %3519 = vmatpush1.msra.mxu0 0.0
    %3520 = vmatprep.subr.mxu0 0.0
    %3521 = vmatpush1.msra.mxu0 0.0
    %3522 = vmatprep.subr.mxu0 0.0
    %3523 = vmatpush1.msra.mxu0 0.0
    %3524 = vmatprep.mubr.f32.mxu0 0.0
    %3525 = vmatmul.mubr.f32.gmra.mrb[0].mxu0 %v3124
    %v3526 = vpop.f32.mrb[0].mxu0
    %v3527 = vadd.f32 0.0, %v3526
    %v3528 = vpop.f32.mrb[0].mxu0
    %3529 = vmatprep.mubr.f32.mxu0 0.0
    %3530 = vmatmul.mubr.f32.gmra.mrb[0].mxu0 %v3126
    %v3531 = vpop.f32.mrb[0].mxu0
    %v3532 = vadd.f32 0.0, %v3531
    %v3533 = vpop.f32.mrb[0].mxu0
    %3534 = vmatprep.mubr.f32.mxu0 0.0
    %3535 = vmatmul.mubr.f32.gmra.mrb[0].mxu0 %v3128
    %v3536 = vpop.f32.mrb[0].mxu0
    %v3537 = vadd.f32 0.0, %v3536
    %v3538 = vpop.f32.mrb[0].mxu0
    %3539 = vmatprep.mubr.f32.mxu0 0.0
    %3540 = vmatmul.mubr.f32.gmra.mrb[0].mxu0 %v3130
    %v3541 = vpop.f32.mrb[0].mxu0
    %v3542 = vadd.f32 0.0, %v3541
    %v3543 = vpop.f32.mrb[0].mxu0
    %3544 = vmatprep.mubr.f32.mxu0 0.0
    %3545 = vmatmul.mubr.f32.gmra.mrb[0].mxu0 %v3132
    %v3546 = vpop.f32.mrb[0].mxu0
    %v3547 = vadd.f32 0.0, %v3546
    %v3548 = vpop.f32.mrb[0].mxu0
    %3549 = vmatprep.mubr.f32.mxu0 0.0
    %3550 = vmatmul.mubr.f32.gmra.mrb[0].mxu0 %v3134
    %v3551 = vpop.f32.mrb[0].mxu0
    %v3552 = vadd.f32 0.0, %v3551
    %v3553 = vpop.f32.mrb[0].mxu0
    %3554 = vmatprep.mubr.f32.mxu0 0.0
    %3555 = vmatmul.mubr.f32.gmra.mrb[0].mxu0 %v3136
    %v3556 = vpop.f32.mrb[0].mxu0
    %v3557 = vadd.f32 0.0, %v3556
    %v3558 = vpop.f32.mrb[0].mxu0
    %3559 = vmatprep.mubr.f32.mxu0 0.0
    %3560 = vmatmul.mubr.f32.gmra.mrb[0].mxu0 %v3138
    %v3561 = vpop.f32.mrb[0].mxu0
    %v3562 = vadd.f32 0.0, %v3561
    %v3563 = vpop.f32.mrb[0].mxu0
    %3564 = vmatprep.mubr.f32.mxu0 0.0
    %3565 = vmatmul.mubr.f32.gmra.mrb[0].mxu0 %v3140
    %v3566 = vpop.f32.mrb[0].mxu0
    %v3567 = vadd.f32 0.0, %v3566
    %v3568 = vpop.f32.mrb[0].mxu0
    %3569 = vmatprep.mubr.f32.mxu0 0.0
    %3570 = vmatmul.mubr.f32.gmra.mrb[0].mxu0 %v3142
    %v3571 = vpop.f32.mrb[0].mxu0
    %v3572 = vadd.f32 0.0, %v3571
    %v3573 = vpop.f32.mrb[0].mxu0
    %3574 = vmatprep.mubr.f32.mxu0 0.0
    %3575 = vmatmul.mubr.f32.gmra.mrb[0].mxu0 %v3144
    %v3576 = vpop.f32.mrb[0].mxu0
    %v3577 = vadd.f32 0.0, %v3576
    %v3578 = vpop.f32.mrb[0].mxu0
    %3579 = vmatprep.mubr.f32.mxu0 0.0
    %3580 = vmatmul.mubr.f32.gmra.mrb[0].mxu0 %v3146
    %v3581 = vpop.f32.mrb[0].mxu0
    %v3582 = vadd.f32 0.0, %v3581
    %v3583 = vpop.f32.mrb[0].mxu0
    %3584 = vmatprep.mubr.f32.mxu0 0.0
    %3585 = vmatmul.mubr.f32.gmra.mrb[0].mxu0 %v3148
    %v3586 = vpop.f32.mrb[0].mxu0
    %v3587 = vadd.f32 0.0, %v3586
    %v3588 = vpop.f32.mrb[0].mxu0
    %3589 = vmatprep.mubr.f32.mxu0 0.0
    %3590 = vmatmul.mubr.f32.gmra.mrb[0].mxu0 %v3150
    %v3591 = vpop.f32.mrb[0].mxu0
    %v3592 = vadd.f32 0.0, %v3591
    %v3593 = vpop.f32.mrb[0].mxu0
    %3594 = vmatprep.mubr.f32.mxu0 0.0
    %3595 = vmatmul.mubr.f32.gmra.mrb[0].mxu0 %v3152
    %v3596 = vpop.f32.mrb[0].mxu0
    %v3597 = vadd.f32 0.0, %v3596
    %v3598 = vpop.f32.mrb[0].mxu0
    %3599 = vmatprep.mubr.f32.mxu0 0.0
    %3600 = vmatmul.mubr.f32.gmra.mrb[0].mxu0 %v3154
    %v3601 = vpop.f32.mrb[0].mxu0
    %v3602 = vadd.f32 0.0, %v3601
    %v3603 = vpop.f32.mrb[0].mxu0
    %3604 = vdwg.mxu0
    %v3605 = vrcp.pop %v3156
    %v3606 = vrcp.pop %v3158
    %v3607 = vrcp.pop %v3160
    %v3608 = vrcp.pop %v3162
    %v3609 = vrcp.pop %v3164
    %v3610 = vrcp.pop %v3166
    %v3611 = vrcp.pop %v3168
    %v3612 = vrcp.pop %v3170
    %v3613 = vrcp.pop %v3172
    %v3614 = vrcp.pop %v3174
    %v3615 = vrcp.pop %v3176
    %v3616 = vrcp.pop %v3178
    %v3617 = vrcp.pop %v3180
    %v3618 = vrcp.pop %v3182
    %v3619 = vrcp.pop %v3184
    %v3620 = vrcp.pop %v3186
    %v3621 = vrcp.pop %v3188
    %v3622 = vrcp.pop %v3190
    %v3623 = vrcp.pop %v3192
    %v3624 = vrcp.pop %v3194
    %v3625 = vrcp.pop %v3196
    %v3626 = vrcp.pop %v3198
    %v3627 = vrcp.pop %v3200
    %v3628 = vrcp.pop %v3202
    %v3629 = vrcp.pop %v3204
    %v3630 = vrcp.pop %v3206
    %v3631 = vrcp.pop %v3208
    %v3632 = vrcp.pop %v3210
    %v3633 = vrcp.pop %v3212
    %v3634 = vrcp.pop %v3214
    %v3635 = vrcp.pop %v3216
    %v3636 = vrcp.pop %v3218
    %v3637 = vmul.f32 %v3334, %v3605
    %v3638 = vmul.f32 %v3339, %v3606
    %v3639 = vmul.f32 %v3344, %v3607
    %v3640 = vmul.f32 %v3349, %v3608
    %v3641 = vmul.f32 %v3354, %v3609
    %v3642 = vmul.f32 %v3359, %v3610
    %v3643 = vmul.f32 %v3364, %v3611
    %v3644 = vmul.f32 %v3369, %v3612
    %v3645 = vmul.f32 %v3374, %v3613
    %v3646 = vmul.f32 %v3379, %v3614
    %v3647 = vmul.f32 %v3384, %v3615
    %v3648 = vmul.f32 %v3389, %v3616
    %v3649 = vmul.f32 %v3394, %v3617
    %v3650 = vmul.f32 %v3399, %v3618
    %v3651 = vmul.f32 %v3404, %v3619
    %v3652 = vmul.f32 %v3409, %v3620
    %v3653 = vmul.f32 %v3527, %v3621
    %v3654 = vmul.f32 %v3532, %v3622
    %v3655 = vmul.f32 %v3537, %v3623
    %v3656 = vmul.f32 %v3542, %v3624
    %v3657 = vmul.f32 %v3547, %v3625
    %v3658 = vmul.f32 %v3552, %v3626
    %v3659 = vmul.f32 %v3557, %v3627
    %v3660 = vmul.f32 %v3562, %v3628
    %v3661 = vmul.f32 %v3567, %v3629
    %v3662 = vmul.f32 %v3572, %v3630
    %v3663 = vmul.f32 %v3577, %v3631
    %v3664 = vmul.f32 %v3582, %v3632
    %v3665 = vmul.f32 %v3587, %v3633
    %v3666 = vmul.f32 %v3592, %v3634
    %v3667 = vmul.f32 %v3597, %v3635
    %v3668 = vmul.f32 %v3602, %v3636
    %v3669 = vld [vmem:[%s10] sm:$0xf]
    %v3670 = vld [vmem:[%s11] sm:$0x1]
    %v3672 = vlaneseq
    %v3673 = vshrl.u32 %v3672, 7
    %v3674 = vsub.s32 0, %v3673
    %v3675 = vrot.slane %v3670, %v3674
    %v3678 = vsel %vm122, %v3637, 0
    %v3681 = vsel %vm122, %v3638, 0
    %v3684 = vsel %vm122, %v3639, 0
    %v3687 = vsel %vm122, %v3640, 0
    %v3690 = vsel %vm122, %v3641, 0
    %v3693 = vsel %vm122, %v3642, 0
    %v3696 = vsel %vm122, %v3643, 0
    %v3699 = vsel %vm122, %v3644, 0
    %v3702 = vsel %vm122, %v3645, 0
    %v3705 = vsel %vm122, %v3646, 0
    %v3708 = vsel %vm122, %v3647, 0
    %v3711 = vsel %vm122, %v3648, 0
    %v3714 = vsel %vm122, %v3649, 0
    %v3717 = vsel %vm122, %v3650, 0
    %v3720 = vsel %vm122, %v3651, 0
    %v3723 = vsel %vm122, %v3652, 0
    %v3726 = vsel %vm122, %v3653, 0
    %v3729 = vsel %vm122, %v3654, 0
    %v3732 = vsel %vm122, %v3655, 0
    %v3735 = vsel %vm122, %v3656, 0
    %v3738 = vsel %vm122, %v3657, 0
    %v3741 = vsel %vm122, %v3658, 0
    %v3744 = vsel %vm122, %v3659, 0
    %v3747 = vsel %vm122, %v3660, 0
    %v3750 = vsel %vm122, %v3661, 0
    %v3753 = vsel %vm122, %v3662, 0
    %v3756 = vsel %vm122, %v3663, 0
    %v3759 = vsel %vm122, %v3664, 0
    %v3762 = vsel %vm122, %v3665, 0
    %v3765 = vsel %vm122, %v3666, 0
    %v3768 = vsel %vm122, %v3667, 0
    %v3771 = vsel %vm122, %v3668, 0
    %v3774 = vsel %vm219, %v3669, 0
    %3776 = vmatprep.subr.mxu0 0.0
    %3777 = vmatpush1.msra.mxu0 %v3774
    %3778 = vmatprep.subr.mxu0 0.0
    %3779 = vmatpush1.msra.mxu0 0.0
    %3780 = vmatprep.subr.mxu0 0.0
    %3781 = vmatpush1.msra.mxu0 0.0
    %3782 = vmatprep.subr.mxu0 0.0
    %3783 = vmatpush1.msra.mxu0 0.0
    %3784 = vmatprep.subr.mxu0 0.0
    %3785 = vmatpush1.msra.mxu0 0.0
    %3786 = vmatprep.subr.mxu0 0.0
    %3787 = vmatpush1.msra.mxu0 0.0
    %3788 = vmatprep.subr.mxu0 0.0
    %3789 = vmatpush1.msra.mxu0 0.0
    %3790 = vmatprep.subr.mxu0 0.0
    %3791 = vmatpush1.msra.mxu0 0.0
    %3792 = vmatprep.subr.mxu0 0.0
    %3793 = vmatpush1.msra.mxu0 0.0
    %3794 = vmatprep.subr.mxu0 0.0
    %3795 = vmatpush1.msra.mxu0 0.0
    %3796 = vmatprep.subr.mxu0 0.0
    %3797 = vmatpush1.msra.mxu0 0.0
    %3798 = vmatprep.subr.mxu0 0.0
    %3799 = vmatpush1.msra.mxu0 0.0
    %3800 = vmatprep.subr.mxu0 0.0
    %3801 = vmatpush1.msra.mxu0 0.0
    %3802 = vmatprep.subr.mxu0 0.0
    %3803 = vmatpush1.msra.mxu0 0.0
    %3804 = vmatprep.subr.mxu0 0.0
    %3805 = vmatpush1.msra.mxu0 0.0
    %3806 = vmatprep.subr.mxu0 0.0
    %3807 = vmatpush1.msra.mxu0 0.0
    %3808 = vmatprep.subr.mxu0 0.0
    %3809 = vmatpush1.msra.mxu0 0.0
    %3810 = vmatprep.subr.mxu0 0.0
    %3811 = vmatpush1.msra.mxu0 0.0
    %3812 = vmatprep.subr.mxu0 0.0
    %3813 = vmatpush1.msra.mxu0 0.0
    %3814 = vmatprep.subr.mxu0 0.0
    %3815 = vmatpush1.msra.mxu0 0.0
    %3816 = vmatprep.subr.mxu0 0.0
    %3817 = vmatpush1.msra.mxu0 0.0
    %3818 = vmatprep.subr.mxu0 0.0
    %3819 = vmatpush1.msra.mxu0 0.0
    %3820 = vmatprep.subr.mxu0 0.0
    %3821 = vmatpush1.msra.mxu0 0.0
    %3822 = vmatprep.subr.mxu0 0.0
    %3823 = vmatpush1.msra.mxu0 0.0
    %3824 = vmatprep.subr.mxu0 0.0
    %3825 = vmatpush1.msra.mxu0 0.0
    %3826 = vmatprep.subr.mxu0 0.0
    %3827 = vmatpush1.msra.mxu0 0.0
    %3828 = vmatprep.subr.mxu0 0.0
    %3829 = vmatpush1.msra.mxu0 0.0
    %3830 = vmatprep.subr.mxu0 0.0
    %3831 = vmatpush1.msra.mxu0 0.0
    %3832 = vmatprep.subr.mxu0 0.0
    %3833 = vmatpush1.msra.mxu0 0.0
    %3834 = vmatprep.subr.mxu0 0.0
    %3835 = vmatpush1.msra.mxu0 0.0
    %3836 = vmatprep.subr.mxu0 0.0
    %3837 = vmatpush1.msra.mxu0 0.0
    %3838 = vmatprep.subr.mxu0 0.0
    %3839 = vmatpush1.msra.mxu0 0.0
    %3840 = vmatprep.mubr.f32.mxu0 0.0
    %3841 = vmatmul.mubr.f32.gmra.mrb[0].mxu0 %v3678
    %v3842 = vpop.f32.mrb[0].mxu0
    %v3843 = vadd.f32 %v3675, %v3842
    %v3844 = vpop.f32.mrb[0].mxu0
    %3845 = vmatprep.mubr.f32.mxu0 0.0
    %3846 = vmatmul.mubr.f32.gmra.mrb[0].mxu0 %v3681
    %v3847 = vpop.f32.mrb[0].mxu0
    %v3848 = vadd.f32 %v3675, %v3847
    %v3849 = vpop.f32.mrb[0].mxu0
    %3850 = vmatprep.mubr.f32.mxu0 0.0
    %3851 = vmatmul.mubr.f32.gmra.mrb[0].mxu0 %v3684
    %v3852 = vpop.f32.mrb[0].mxu0
    %v3853 = vadd.f32 %v3675, %v3852
    %v3854 = vpop.f32.mrb[0].mxu0
    %3855 = vmatprep.mubr.f32.mxu0 0.0
    %3856 = vmatmul.mubr.f32.gmra.mrb[0].mxu0 %v3687
    %v3857 = vpop.f32.mrb[0].mxu0
    %v3858 = vadd.f32 %v3675, %v3857
    %v3859 = vpop.f32.mrb[0].mxu0
    %3860 = vmatprep.mubr.f32.mxu0 0.0
    %3861 = vmatmul.mubr.f32.gmra.mrb[0].mxu0 %v3690
    %v3862 = vpop.f32.mrb[0].mxu0
    %v3863 = vadd.f32 %v3675, %v3862
    %v3864 = vpop.f32.mrb[0].mxu0
    %3865 = vmatprep.mubr.f32.mxu0 0.0
    %3866 = vmatmul.mubr.f32.gmra.mrb[0].mxu0 %v3693
    %v3867 = vpop.f32.mrb[0].mxu0
    %v3868 = vadd.f32 %v3675, %v3867
    %v3869 = vpop.f32.mrb[0].mxu0
    %3870 = vmatprep.mubr.f32.mxu0 0.0
    %3871 = vmatmul.mubr.f32.gmra.mrb[0].mxu0 %v3696
    %v3872 = vpop.f32.mrb[0].mxu0
    %v3873 = vadd.f32 %v3675, %v3872
    %v3874 = vpop.f32.mrb[0].mxu0
    %3875 = vmatprep.mubr.f32.mxu0 0.0
    %3876 = vmatmul.mubr.f32.gmra.mrb[0].mxu0 %v3699
    %v3877 = vpop.f32.mrb[0].mxu0
    %v3878 = vadd.f32 %v3675, %v3877
    %v3879 = vpop.f32.mrb[0].mxu0
    %3880 = vmatprep.mubr.f32.mxu0 0.0
    %3881 = vmatmul.mubr.f32.gmra.mrb[0].mxu0 %v3702
    %v3882 = vpop.f32.mrb[0].mxu0
    %v3883 = vadd.f32 %v3675, %v3882
    %v3884 = vpop.f32.mrb[0].mxu0
    %3885 = vmatprep.mubr.f32.mxu0 0.0
    %3886 = vmatmul.mubr.f32.gmra.mrb[0].mxu0 %v3705
    %v3887 = vpop.f32.mrb[0].mxu0
    %v3888 = vadd.f32 %v3675, %v3887
    %v3889 = vpop.f32.mrb[0].mxu0
    %3890 = vmatprep.mubr.f32.mxu0 0.0
    %3891 = vmatmul.mubr.f32.gmra.mrb[0].mxu0 %v3708
    %v3892 = vpop.f32.mrb[0].mxu0
    %v3893 = vadd.f32 %v3675, %v3892
    %v3894 = vpop.f32.mrb[0].mxu0
    %3895 = vmatprep.mubr.f32.mxu0 0.0
    %3896 = vmatmul.mubr.f32.gmra.mrb[0].mxu0 %v3711
    %v3897 = vpop.f32.mrb[0].mxu0
    %v3898 = vadd.f32 %v3675, %v3897
    %v3899 = vpop.f32.mrb[0].mxu0
    %3900 = vmatprep.mubr.f32.mxu0 0.0
    %3901 = vmatmul.mubr.f32.gmra.mrb[0].mxu0 %v3714
    %v3902 = vpop.f32.mrb[0].mxu0
    %v3903 = vadd.f32 %v3675, %v3902
    %v3904 = vpop.f32.mrb[0].mxu0
    %3905 = vmatprep.mubr.f32.mxu0 0.0
    %3906 = vmatmul.mubr.f32.gmra.mrb[0].mxu0 %v3717
    %v3907 = vpop.f32.mrb[0].mxu0
    %v3908 = vadd.f32 %v3675, %v3907
    %v3909 = vpop.f32.mrb[0].mxu0
    %3910 = vmatprep.mubr.f32.mxu0 0.0
    %3911 = vmatmul.mubr.f32.gmra.mrb[0].mxu0 %v3720
    %v3912 = vpop.f32.mrb[0].mxu0
    %v3913 = vadd.f32 %v3675, %v3912
    %v3914 = vpop.f32.mrb[0].mxu0
    %3915 = vmatprep.mubr.f32.mxu0 0.0
    %3916 = vmatmul.mubr.f32.gmra.mrb[0].mxu0 %v3723
    %v3917 = vpop.f32.mrb[0].mxu0
    %v3918 = vadd.f32 %v3675, %v3917
    %v3919 = vpop.f32.mrb[0].mxu0
    %3920 = vmatprep.mubr.f32.mxu0 0.0
    %3921 = vmatmul.mubr.f32.gmra.mrb[0].mxu0 %v3726
    %v3922 = vpop.f32.mrb[0].mxu0
    %v3923 = vadd.f32 %v3675, %v3922
    %v3924 = vpop.f32.mrb[0].mxu0
    %3925 = vmatprep.mubr.f32.mxu0 0.0
    %3926 = vmatmul.mubr.f32.gmra.mrb[0].mxu0 %v3729
    %v3927 = vpop.f32.mrb[0].mxu0
    %v3928 = vadd.f32 %v3675, %v3927
    %v3929 = vpop.f32.mrb[0].mxu0
    %3930 = vmatprep.mubr.f32.mxu0 0.0
    %3931 = vmatmul.mubr.f32.gmra.mrb[0].mxu0 %v3732
    %v3932 = vpop.f32.mrb[0].mxu0
    %v3933 = vadd.f32 %v3675, %v3932
    %v3934 = vpop.f32.mrb[0].mxu0
    %3935 = vmatprep.mubr.f32.mxu0 0.0
    %3936 = vmatmul.mubr.f32.gmra.mrb[0].mxu0 %v3735
    %v3937 = vpop.f32.mrb[0].mxu0
    %v3938 = vadd.f32 %v3675, %v3937
    %v3939 = vpop.f32.mrb[0].mxu0
    %3940 = vmatprep.mubr.f32.mxu0 0.0
    %3941 = vmatmul.mubr.f32.gmra.mrb[0].mxu0 %v3738
    %v3942 = vpop.f32.mrb[0].mxu0
    %v3943 = vadd.f32 %v3675, %v3942
    %v3944 = vpop.f32.mrb[0].mxu0
    %3945 = vmatprep.mubr.f32.mxu0 0.0
    %3946 = vmatmul.mubr.f32.gmra.mrb[0].mxu0 %v3741
    %v3947 = vpop.f32.mrb[0].mxu0
    %v3948 = vadd.f32 %v3675, %v3947
    %v3949 = vpop.f32.mrb[0].mxu0
    %3950 = vmatprep.mubr.f32.mxu0 0.0
    %3951 = vmatmul.mubr.f32.gmra.mrb[0].mxu0 %v3744
    %v3952 = vpop.f32.mrb[0].mxu0
    %v3953 = vadd.f32 %v3675, %v3952
    %v3954 = vpop.f32.mrb[0].mxu0
    %3955 = vmatprep.mubr.f32.mxu0 0.0
    %3956 = vmatmul.mubr.f32.gmra.mrb[0].mxu0 %v3747
    %v3957 = vpop.f32.mrb[0].mxu0
    %v3958 = vadd.f32 %v3675, %v3957
    %v3959 = vpop.f32.mrb[0].mxu0
    %3960 = vmatprep.mubr.f32.mxu0 0.0
    %3961 = vmatmul.mubr.f32.gmra.mrb[0].mxu0 %v3750
    %v3962 = vpop.f32.mrb[0].mxu0
    %v3963 = vadd.f32 %v3675, %v3962
    %v3964 = vpop.f32.mrb[0].mxu0
    %3965 = vmatprep.mubr.f32.mxu0 0.0
    %3966 = vmatmul.mubr.f32.gmra.mrb[0].mxu0 %v3753
    %v3967 = vpop.f32.mrb[0].mxu0
    %v3968 = vadd.f32 %v3675, %v3967
    %v3969 = vpop.f32.mrb[0].mxu0
    %3970 = vmatprep.mubr.f32.mxu0 0.0
    %3971 = vmatmul.mubr.f32.gmra.mrb[0].mxu0 %v3756
    %v3972 = vpop.f32.mrb[0].mxu0
    %v3973 = vadd.f32 %v3675, %v3972
    %v3974 = vpop.f32.mrb[0].mxu0
    %3975 = vmatprep.mubr.f32.mxu0 0.0
    %3976 = vmatmul.mubr.f32.gmra.mrb[0].mxu0 %v3759
    %v3977 = vpop.f32.mrb[0].mxu0
    %v3978 = vadd.f32 %v3675, %v3977
    %v3979 = vpop.f32.mrb[0].mxu0
    %3980 = vmatprep.mubr.f32.mxu0 0.0
    %3981 = vmatmul.mubr.f32.gmra.mrb[0].mxu0 %v3762
    %v3982 = vpop.f32.mrb[0].mxu0
    %v3983 = vadd.f32 %v3675, %v3982
    %v3984 = vpop.f32.mrb[0].mxu0
    %3985 = vmatprep.mubr.f32.mxu0 0.0
    %3986 = vmatmul.mubr.f32.gmra.mrb[0].mxu0 %v3765
    %v3987 = vpop.f32.mrb[0].mxu0
    %v3988 = vadd.f32 %v3675, %v3987
    %v3989 = vpop.f32.mrb[0].mxu0
    %3990 = vmatprep.mubr.f32.mxu0 0.0
    %3991 = vmatmul.mubr.f32.gmra.mrb[0].mxu0 %v3768
    %v3992 = vpop.f32.mrb[0].mxu0
    %v3993 = vadd.f32 %v3675, %v3992
    %v3994 = vpop.f32.mrb[0].mxu0
    %3995 = vmatprep.mubr.f32.mxu0 0.0
    %3996 = vmatmul.mubr.f32.gmra.mrb[0].mxu0 %v3771
    %v3997 = vpop.f32.mrb[0].mxu0
    %v3998 = vadd.f32 %v3675, %v3997
    %v3999 = vpop.f32.mrb[0].mxu0
    %4000 = vdwg.mxu0
    %v4001 = vlaneseq
    %v4002 = vshrl.u32 %v4001, 7
    %v4003 = vadd.s32 %v4002, 8
    %v4004 = vadd.s32 %v4002, 16
    %v4005 = vadd.s32 %v4002, 24
    %v4006 = vadd.s32 %v4002, 32
    %v4007 = vadd.s32 %v4002, 40
    %v4008 = vadd.s32 %v4002, 48
    %v4009 = vadd.s32 %v4002, 56
    %v4010 = vadd.s32 %v4002, 64
    %v4011 = vadd.s32 %v4002, 72
    %v4012 = vadd.s32 %v4002, 80
    %v4013 = vadd.s32 %v4002, 88
    %v4014 = vadd.s32 %v4002, 96
    %v4015 = vadd.s32 %v4002, 104
    %v4016 = vadd.s32 %v4002, 112
    %v4017 = vadd.s32 %v4002, 120
    %vm4018 = vcmp.lt.s32.totalorder %v4002, 121
    %vm4019 = vcmp.lt.s32.totalorder %v4003, 121
    %vm4020 = vcmp.lt.s32.totalorder %v4004, 121
    %vm4021 = vcmp.lt.s32.totalorder %v4005, 121
    %vm4022 = vcmp.lt.s32.totalorder %v4006, 121
    %vm4023 = vcmp.lt.s32.totalorder %v4007, 121
    %vm4024 = vcmp.lt.s32.totalorder %v4008, 121
    %vm4025 = vcmp.lt.s32.totalorder %v4009, 121
    %vm4026 = vcmp.lt.s32.totalorder %v4010, 121
    %vm4027 = vcmp.lt.s32.totalorder %v4011, 121
    %vm4028 = vcmp.lt.s32.totalorder %v4012, 121
    %vm4029 = vcmp.lt.s32.totalorder %v4013, 121
    %vm4030 = vcmp.lt.s32.totalorder %v4014, 121
    %vm4031 = vcmp.lt.s32.totalorder %v4015, 121
    %vm4032 = vcmp.lt.s32.totalorder %v4016, 121
    %vm4033 = vcmp.lt.s32.totalorder %v4017, 121
    %v4034 = vsel %vm4018, 1, 0
    %v4035 = vsel %vm4019, 1, 0
    %v4036 = vsel %vm4020, 1, 0
    %v4037 = vsel %vm4021, 1, 0
    %v4038 = vsel %vm4022, 1, 0
    %v4039 = vsel %vm4023, 1, 0
    %v4040 = vsel %vm4024, 1, 0
    %v4041 = vsel %vm4025, 1, 0
    %v4042 = vsel %vm4026, 1, 0
    %v4043 = vsel %vm4027, 1, 0
    %v4044 = vsel %vm4028, 1, 0
    %v4045 = vsel %vm4029, 1, 0
    %v4046 = vsel %vm4030, 1, 0
    %v4047 = vsel %vm4031, 1, 0
    %v4048 = vsel %vm4032, 1, 0
    %v4049 = vsel %vm4033, 1, 0
    %vm4050 = vcmp.eq.s32.totalorder %v4034, 1
    %vm4051 = vcmp.eq.s32.totalorder %v4035, 1
    %vm4052 = vcmp.eq.s32.totalorder %v4036, 1
    %vm4053 = vcmp.eq.s32.totalorder %v4037, 1
    %vm4054 = vcmp.eq.s32.totalorder %v4038, 1
    %vm4055 = vcmp.eq.s32.totalorder %v4039, 1
    %vm4056 = vcmp.eq.s32.totalorder %v4040, 1
    %vm4057 = vcmp.eq.s32.totalorder %v4041, 1
    %vm4058 = vcmp.eq.s32.totalorder %v4042, 1
    %vm4059 = vcmp.eq.s32.totalorder %v4043, 1
    %vm4060 = vcmp.eq.s32.totalorder %v4044, 1
    %vm4061 = vcmp.eq.s32.totalorder %v4045, 1
    %vm4062 = vcmp.eq.s32.totalorder %v4046, 1
    %vm4063 = vcmp.eq.s32.totalorder %v4047, 1
    %vm4064 = vcmp.eq.s32.totalorder %v4048, 1
    %vm4065 = vcmp.eq.s32.totalorder %v4049, 1
    %v4066 = vsel %vm4050, %v3843, 0.0
    %v4067 = vsel %vm4051, %v3848, 0.0
    %v4068 = vsel %vm4052, %v3853, 0.0
    %v4069 = vsel %vm4053, %v3858, 0.0
    %v4070 = vsel %vm4054, %v3863, 0.0
    %v4071 = vsel %vm4055, %v3868, 0.0
    %v4072 = vsel %vm4056, %v3873, 0.0
    %v4073 = vsel %vm4057, %v3878, 0.0
    %v4074 = vsel %vm4058, %v3883, 0.0
    %v4075 = vsel %vm4059, %v3888, 0.0
    %v4076 = vsel %vm4060, %v3893, 0.0
    %v4077 = vsel %vm4061, %v3898, 0.0
    %v4078 = vsel %vm4062, %v3903, 0.0
    %v4079 = vsel %vm4063, %v3908, 0.0
    %v4080 = vsel %vm4064, %v3913, 0.0
    %v4081 = vsel %vm4065, %v3918, 0.0
    %v4082 = vsel %vm4050, %v3923, 0.0
    %v4083 = vsel %vm4051, %v3928, 0.0
    %v4084 = vsel %vm4052, %v3933, 0.0
    %v4085 = vsel %vm4053, %v3938, 0.0
    %v4086 = vsel %vm4054, %v3943, 0.0
    %v4087 = vsel %vm4055, %v3948, 0.0
    %v4088 = vsel %vm4056, %v3953, 0.0
    %v4089 = vsel %vm4057, %v3958, 0.0
    %v4090 = vsel %vm4058, %v3963, 0.0
    %v4091 = vsel %vm4059, %v3968, 0.0
    %v4092 = vsel %vm4060, %v3973, 0.0
    %v4093 = vsel %vm4061, %v3978, 0.0
    %v4094 = vsel %vm4062, %v3983, 0.0
    %v4095 = vsel %vm4063, %v3988, 0.0
    %v4096 = vsel %vm4064, %v3993, 0.0
    %v4097 = vsel %vm4065, %v3998, 0.0
    %v4098 = vsel %vm122, %v4066, 0.0
    %v4099 = vsel %vm122, %v4067, 0.0
    %v4100 = vadd.f32 %v4098, %v4099
    %v4101 = vsel %vm122, %v4068, 0.0
    %v4102 = vadd.f32 %v4100, %v4101
    %v4103 = vsel %vm122, %v4069, 0.0
    %v4104 = vadd.f32 %v4102, %v4103
    %v4105 = vsel %vm122, %v4070, 0.0
    %v4106 = vadd.f32 %v4104, %v4105
    %v4107 = vsel %vm122, %v4071, 0.0
    %v4108 = vadd.f32 %v4106, %v4107
    %v4109 = vsel %vm122, %v4072, 0.0
    %v4110 = vadd.f32 %v4108, %v4109
    %v4111 = vsel %vm122, %v4073, 0.0
    %v4112 = vadd.f32 %v4110, %v4111
    %v4113 = vsel %vm122, %v4074, 0.0
    %v4114 = vadd.f32 %v4112, %v4113
    %v4115 = vsel %vm122, %v4075, 0.0
    %v4116 = vadd.f32 %v4114, %v4115
    %v4117 = vsel %vm122, %v4076, 0.0
    %v4118 = vadd.f32 %v4116, %v4117
    %v4119 = vsel %vm122, %v4077, 0.0
    %v4120 = vadd.f32 %v4118, %v4119
    %v4121 = vsel %vm122, %v4078, 0.0
    %v4122 = vadd.f32 %v4120, %v4121
    %v4123 = vsel %vm122, %v4079, 0.0
    %v4124 = vadd.f32 %v4122, %v4123
    %v4125 = vsel %vm122, %v4080, 0.0
    %v4126 = vadd.f32 %v4124, %v4125
    %v4127 = vsel %vm122, %v4081, 0.0
    %v4128 = vadd.f32 %v4126, %v4127
    %v4129 = vrot.slane %v4128, 4
    %v4130 = vadd.f32 %v4128, %v4129
    %v4131 = vrot.slane %v4130, 2
    %v4132 = vadd.f32 %v4130, %v4131
    %v4133 = vrot.slane %v4132, 1
    %v4134 = vadd.f32 %v4132, %v4133
    %v4135 = vsel %vm122, %v4082, 0.0
    %v4136 = vsel %vm122, %v4083, 0.0
    %v4137 = vadd.f32 %v4135, %v4136
    %v4138 = vsel %vm122, %v4084, 0.0
    %v4139 = vadd.f32 %v4137, %v4138
    %v4140 = vsel %vm122, %v4085, 0.0
    %v4141 = vadd.f32 %v4139, %v4140
    %v4142 = vsel %vm122, %v4086, 0.0
    %v4143 = vadd.f32 %v4141, %v4142
    %v4144 = vsel %vm122, %v4087, 0.0
    %v4145 = vadd.f32 %v4143, %v4144
    %v4146 = vsel %vm122, %v4088, 0.0
    %v4147 = vadd.f32 %v4145, %v4146
    %v4148 = vsel %vm122, %v4089, 0.0
    %v4149 = vadd.f32 %v4147, %v4148
    %v4150 = vsel %vm122, %v4090, 0.0
    %v4151 = vadd.f32 %v4149, %v4150
    %v4152 = vsel %vm122, %v4091, 0.0
    %v4153 = vadd.f32 %v4151, %v4152
    %v4154 = vsel %vm122, %v4092, 0.0
    %v4155 = vadd.f32 %v4153, %v4154
    %v4156 = vsel %vm122, %v4093, 0.0
    %v4157 = vadd.f32 %v4155, %v4156
    %v4158 = vsel %vm122, %v4094, 0.0
    %v4159 = vadd.f32 %v4157, %v4158
    %v4160 = vsel %vm122, %v4095, 0.0
    %v4161 = vadd.f32 %v4159, %v4160
    %v4162 = vsel %vm122, %v4096, 0.0
    %v4163 = vadd.f32 %v4161, %v4162
    %v4164 = vsel %vm122, %v4097, 0.0
    %v4165 = vadd.f32 %v4163, %v4164
    %v4166 = vrot.slane %v4165, 4
    %v4167 = vadd.f32 %v4165, %v4166
    %v4168 = vrot.slane %v4167, 2
    %v4169 = vadd.f32 %v4167, %v4168
    %v4170 = vrot.slane %v4169, 1
    %v4171 = vadd.f32 %v4169, %v4170
    %v4172 = vmul.f32 %v4134, 0.008264462
    %v4173 = vmul.f32 %v4171, 0.008264462
    %v4174 = vsub.f32 %v3843, %v4172
    %v4175 = vsub.f32 %v3848, %v4172
    %v4176 = vsub.f32 %v3853, %v4172
    %v4177 = vsub.f32 %v3858, %v4172
    %v4178 = vsub.f32 %v3863, %v4172
    %v4179 = vsub.f32 %v3868, %v4172
    %v4180 = vsub.f32 %v3873, %v4172
    %v4181 = vsub.f32 %v3878, %v4172
    %v4182 = vsub.f32 %v3883, %v4172
    %v4183 = vsub.f32 %v3888, %v4172
    %v4184 = vsub.f32 %v3893, %v4172
    %v4185 = vsub.f32 %v3898, %v4172
    %v4186 = vsub.f32 %v3903, %v4172
    %v4187 = vsub.f32 %v3908, %v4172
    %v4188 = vsub.f32 %v3913, %v4172
    %v4189 = vsub.f32 %v3918, %v4172
    %v4190 = vsub.f32 %v3923, %v4173
    %v4191 = vsub.f32 %v3928, %v4173
    %v4192 = vsub.f32 %v3933, %v4173
    %v4193 = vsub.f32 %v3938, %v4173
    %v4194 = vsub.f32 %v3943, %v4173
    %v4195 = vsub.f32 %v3948, %v4173
    %v4196 = vsub.f32 %v3953, %v4173
    %v4197 = vsub.f32 %v3958, %v4173
    %v4198 = vsub.f32 %v3963, %v4173
    %v4199 = vsub.f32 %v3968, %v4173
    %v4200 = vsub.f32 %v3973, %v4173
    %v4201 = vsub.f32 %v3978, %v4173
    %v4202 = vsub.f32 %v3983, %v4173
    %v4203 = vsub.f32 %v3988, %v4173
    %v4204 = vsub.f32 %v3993, %v4173
    %v4205 = vsub.f32 %v3998, %v4173
    %v4206 = vsel %vm4050, %v4174, 0.0
    %v4207 = vsel %vm4051, %v4175, 0.0
    %v4208 = vsel %vm4052, %v4176, 0.0
    %v4209 = vsel %vm4053, %v4177, 0.0
    %v4210 = vsel %vm4054, %v4178, 0.0
    %v4211 = vsel %vm4055, %v4179, 0.0
    %v4212 = vsel %vm4056, %v4180, 0.0
    %v4213 = vsel %vm4057, %v4181, 0.0
    %v4214 = vsel %vm4058, %v4182, 0.0
    %v4215 = vsel %vm4059, %v4183, 0.0
    %v4216 = vsel %vm4060, %v4184, 0.0
    %v4217 = vsel %vm4061, %v4185, 0.0
    %v4218 = vsel %vm4062, %v4186, 0.0
    %v4219 = vsel %vm4063, %v4187, 0.0
    %v4220 = vsel %vm4064, %v4188, 0.0
    %v4221 = vsel %vm4065, %v4189, 0.0
    %v4222 = vsel %vm4050, %v4190, 0.0
    %v4223 = vsel %vm4051, %v4191, 0.0
    %v4224 = vsel %vm4052, %v4192, 0.0
    %v4225 = vsel %vm4053, %v4193, 0.0
    %v4226 = vsel %vm4054, %v4194, 0.0
    %v4227 = vsel %vm4055, %v4195, 0.0
    %v4228 = vsel %vm4056, %v4196, 0.0
    %v4229 = vsel %vm4057, %v4197, 0.0
    %v4230 = vsel %vm4058, %v4198, 0.0
    %v4231 = vsel %vm4059, %v4199, 0.0
    %v4232 = vsel %vm4060, %v4200, 0.0
    %v4233 = vsel %vm4061, %v4201, 0.0
    %v4234 = vsel %vm4062, %v4202, 0.0
    %v4235 = vsel %vm4063, %v4203, 0.0
    %v4236 = vsel %vm4064, %v4204, 0.0
    %v4237 = vsel %vm4065, %v4205, 0.0
    %v4238 = vmul.f32 %v4206, %v4206
    %v4239 = vmul.f32 %v4207, %v4207
    %v4240 = vmul.f32 %v4208, %v4208
    %v4241 = vmul.f32 %v4209, %v4209
    %v4242 = vmul.f32 %v4210, %v4210
    %v4243 = vmul.f32 %v4211, %v4211
    %v4244 = vmul.f32 %v4212, %v4212
    %v4245 = vmul.f32 %v4213, %v4213
    %v4246 = vmul.f32 %v4214, %v4214
    %v4247 = vmul.f32 %v4215, %v4215
    %v4248 = vmul.f32 %v4216, %v4216
    %v4249 = vmul.f32 %v4217, %v4217
    %v4250 = vmul.f32 %v4218, %v4218
    %v4251 = vmul.f32 %v4219, %v4219
    %v4252 = vmul.f32 %v4220, %v4220
    %v4253 = vmul.f32 %v4221, %v4221
    %v4254 = vmul.f32 %v4222, %v4222
    %v4255 = vmul.f32 %v4223, %v4223
    %v4256 = vmul.f32 %v4224, %v4224
    %v4257 = vmul.f32 %v4225, %v4225
    %v4258 = vmul.f32 %v4226, %v4226
    %v4259 = vmul.f32 %v4227, %v4227
    %v4260 = vmul.f32 %v4228, %v4228
    %v4261 = vmul.f32 %v4229, %v4229
    %v4262 = vmul.f32 %v4230, %v4230
    %v4263 = vmul.f32 %v4231, %v4231
    %v4264 = vmul.f32 %v4232, %v4232
    %v4265 = vmul.f32 %v4233, %v4233
    %v4266 = vmul.f32 %v4234, %v4234
    %v4267 = vmul.f32 %v4235, %v4235
    %v4268 = vmul.f32 %v4236, %v4236
    %v4269 = vmul.f32 %v4237, %v4237
    %v4270 = vsel %vm122, %v4238, 0.0
    %v4271 = vsel %vm122, %v4239, 0.0
    %v4272 = vadd.f32 %v4270, %v4271
    %v4273 = vsel %vm122, %v4240, 0.0
    %v4274 = vadd.f32 %v4272, %v4273
    %v4275 = vsel %vm122, %v4241, 0.0
    %v4276 = vadd.f32 %v4274, %v4275
    %v4277 = vsel %vm122, %v4242, 0.0
    %v4278 = vadd.f32 %v4276, %v4277
    %v4279 = vsel %vm122, %v4243, 0.0
    %v4280 = vadd.f32 %v4278, %v4279
    %v4281 = vsel %vm122, %v4244, 0.0
    %v4282 = vadd.f32 %v4280, %v4281
    %v4283 = vsel %vm122, %v4245, 0.0
    %v4284 = vadd.f32 %v4282, %v4283
    %v4285 = vsel %vm122, %v4246, 0.0
    %v4286 = vadd.f32 %v4284, %v4285
    %v4287 = vsel %vm122, %v4247, 0.0
    %v4288 = vadd.f32 %v4286, %v4287
    %v4289 = vsel %vm122, %v4248, 0.0
    %v4290 = vadd.f32 %v4288, %v4289
    %v4291 = vsel %vm122, %v4249, 0.0
    %v4292 = vadd.f32 %v4290, %v4291
    %v4293 = vsel %vm122, %v4250, 0.0
    %v4294 = vadd.f32 %v4292, %v4293
    %v4295 = vsel %vm122, %v4251, 0.0
    %v4296 = vadd.f32 %v4294, %v4295
    %v4297 = vsel %vm122, %v4252, 0.0
    %v4298 = vadd.f32 %v4296, %v4297
    %v4299 = vsel %vm122, %v4253, 0.0
    %v4300 = vadd.f32 %v4298, %v4299
    %v4301 = vrot.slane %v4300, 4
    %v4302 = vadd.f32 %v4300, %v4301
    %v4303 = vrot.slane %v4302, 2
    %v4304 = vadd.f32 %v4302, %v4303
    %v4305 = vrot.slane %v4304, 1
    %v4306 = vadd.f32 %v4304, %v4305
    %v4307 = vsel %vm122, %v4254, 0.0
    %v4308 = vsel %vm122, %v4255, 0.0
    %v4309 = vadd.f32 %v4307, %v4308
    %v4310 = vsel %vm122, %v4256, 0.0
    %v4311 = vadd.f32 %v4309, %v4310
    %v4312 = vsel %vm122, %v4257, 0.0
    %v4313 = vadd.f32 %v4311, %v4312
    %v4314 = vsel %vm122, %v4258, 0.0
    %v4315 = vadd.f32 %v4313, %v4314
    %v4316 = vsel %vm122, %v4259, 0.0
    %v4317 = vadd.f32 %v4315, %v4316
    %v4318 = vsel %vm122, %v4260, 0.0
    %v4319 = vadd.f32 %v4317, %v4318
    %v4320 = vsel %vm122, %v4261, 0.0
    %v4321 = vadd.f32 %v4319, %v4320
    %v4322 = vsel %vm122, %v4262, 0.0
    %v4323 = vadd.f32 %v4321, %v4322
    %v4324 = vsel %vm122, %v4263, 0.0
    %v4325 = vadd.f32 %v4323, %v4324
    %v4326 = vsel %vm122, %v4264, 0.0
    %v4327 = vadd.f32 %v4325, %v4326
    %v4328 = vsel %vm122, %v4265, 0.0
    %v4329 = vadd.f32 %v4327, %v4328
    %v4330 = vsel %vm122, %v4266, 0.0
    %v4331 = vadd.f32 %v4329, %v4330
    %v4332 = vsel %vm122, %v4267, 0.0
    %v4333 = vadd.f32 %v4331, %v4332
    %v4334 = vsel %vm122, %v4268, 0.0
    %v4335 = vadd.f32 %v4333, %v4334
    %v4336 = vsel %vm122, %v4269, 0.0
    %v4337 = vadd.f32 %v4335, %v4336
    %v4338 = vrot.slane %v4337, 4
    %v4339 = vadd.f32 %v4337, %v4338
    %v4340 = vrot.slane %v4339, 2
    %v4341 = vadd.f32 %v4339, %v4340
    %v4342 = vrot.slane %v4341, 1
    %v4343 = vadd.f32 %v4341, %v4342
    %v4344 = vmul.f32 %v4306, 0.008264462
    %v4345 = vmul.f32 %v4343, 0.008264462
    %v4346 = vadd.f32 %v4344, 1e-05
    %v4347 = vadd.f32 %v4345, 1e-05
    %v4348 = vrsqrt.pop %v4346
    %v4349 = vrsqrt.pop %v4347
    %v4350 = vmul.f32 %v4174, %v4348
    %v4351 = vmul.f32 %v4175, %v4348
    %v4352 = vmul.f32 %v4176, %v4348
    %v4353 = vmul.f32 %v4177, %v4348
    %v4354 = vmul.f32 %v4178, %v4348
    %v4355 = vmul.f32 %v4179, %v4348
    %v4356 = vmul.f32 %v4180, %v4348
    %v4357 = vmul.f32 %v4181, %v4348
    %v4358 = vmul.f32 %v4182, %v4348
    %v4359 = vmul.f32 %v4183, %v4348
    %v4360 = vmul.f32 %v4184, %v4348
    %v4361 = vmul.f32 %v4185, %v4348
    %v4362 = vmul.f32 %v4186, %v4348
    %v4363 = vmul.f32 %v4187, %v4348
    %v4364 = vmul.f32 %v4188, %v4348
    %v4365 = vmul.f32 %v4189, %v4348
    %v4366 = vmul.f32 %v4190, %v4349
    %v4367 = vmul.f32 %v4191, %v4349
    %v4368 = vmul.f32 %v4192, %v4349
    %v4369 = vmul.f32 %v4193, %v4349
    %v4370 = vmul.f32 %v4194, %v4349
    %v4371 = vmul.f32 %v4195, %v4349
    %v4372 = vmul.f32 %v4196, %v4349
    %v4373 = vmul.f32 %v4197, %v4349
    %v4374 = vmul.f32 %v4198, %v4349
    %v4375 = vmul.f32 %v4199, %v4349
    %v4376 = vmul.f32 %v4200, %v4349
    %v4377 = vmul.f32 %v4201, %v4349
    %v4378 = vmul.f32 %v4202, %v4349
    %v4379 = vmul.f32 %v4203, %v4349
    %v4380 = vmul.f32 %v4204, %v4349
    %v4381 = vmul.f32 %v4205, %v4349
    %v4382 = vld [vmem:[%s12] sm:$0xff]
    %v4383 = vld [vmem:[%s12 + $0x8] sm:$0xff]
    %v4384 = vld [vmem:[%s12 + $0x10] sm:$0xff]
    %v4385 = vld [vmem:[%s12 + $0x18] sm:$0xff]
    %v4386 = vld [vmem:[%s12 + $0x20] sm:$0xff]
    %v4387 = vld [vmem:[%s12 + $0x28] sm:$0xff]
    %v4388 = vld [vmem:[%s12 + $0x30] sm:$0xff]
    %v4389 = vld [vmem:[%s12 + $0x38] sm:$0xff]
    %v4390 = vld [vmem:[%s12 + $0x40] sm:$0xff]
    %v4391 = vld [vmem:[%s12 + $0x48] sm:$0xff]
    %v4392 = vld [vmem:[%s12 + $0x50] sm:$0xff]
    %v4393 = vld [vmem:[%s12 + $0x58] sm:$0xff]
    %v4394 = vld [vmem:[%s12 + $0x60] sm:$0xff]
    %v4395 = vld [vmem:[%s12 + $0x68] sm:$0xff]
    %v4396 = vld [vmem:[%s12 + $0x70] sm:$0xff]
    %v4397 = vld [vmem:[%s12 + $0x78] sm:$0xff]
    %v4398 = vmul.f32 %v4350, %v4382
    %v4399 = vmul.f32 %v4351, %v4383
    %v4400 = vmul.f32 %v4352, %v4384
    %v4401 = vmul.f32 %v4353, %v4385
    %v4402 = vmul.f32 %v4354, %v4386
    %v4403 = vmul.f32 %v4355, %v4387
    %v4404 = vmul.f32 %v4356, %v4388
    %v4405 = vmul.f32 %v4357, %v4389
    %v4406 = vmul.f32 %v4358, %v4390
    %v4407 = vmul.f32 %v4359, %v4391
    %v4408 = vmul.f32 %v4360, %v4392
    %v4409 = vmul.f32 %v4361, %v4393
    %v4410 = vmul.f32 %v4362, %v4394
    %v4411 = vmul.f32 %v4363, %v4395
    %v4412 = vmul.f32 %v4364, %v4396
    %v4413 = vmul.f32 %v4365, %v4397
    %v4414 = vmul.f32 %v4366, %v4382
    %v4415 = vmul.f32 %v4367, %v4383
    %v4416 = vmul.f32 %v4368, %v4384
    %v4417 = vmul.f32 %v4369, %v4385
    %v4418 = vmul.f32 %v4370, %v4386
    %v4419 = vmul.f32 %v4371, %v4387
    %v4420 = vmul.f32 %v4372, %v4388
    %v4421 = vmul.f32 %v4373, %v4389
    %v4422 = vmul.f32 %v4374, %v4390
    %v4423 = vmul.f32 %v4375, %v4391
    %v4424 = vmul.f32 %v4376, %v4392
    %v4425 = vmul.f32 %v4377, %v4393
    %v4426 = vmul.f32 %v4378, %v4394
    %v4427 = vmul.f32 %v4379, %v4395
    %v4428 = vmul.f32 %v4380, %v4396
    %v4429 = vmul.f32 %v4381, %v4397
    %v4430 = vld [vmem:[%s13] sm:$0xff]
    %v4431 = vld [vmem:[%s13 + $0x8] sm:$0xff]
    %v4432 = vld [vmem:[%s13 + $0x10] sm:$0xff]
    %v4433 = vld [vmem:[%s13 + $0x18] sm:$0xff]
    %v4434 = vld [vmem:[%s13 + $0x20] sm:$0xff]
    %v4435 = vld [vmem:[%s13 + $0x28] sm:$0xff]
    %v4436 = vld [vmem:[%s13 + $0x30] sm:$0xff]
    %v4437 = vld [vmem:[%s13 + $0x38] sm:$0xff]
    %v4438 = vld [vmem:[%s13 + $0x40] sm:$0xff]
    %v4439 = vld [vmem:[%s13 + $0x48] sm:$0xff]
    %v4440 = vld [vmem:[%s13 + $0x50] sm:$0xff]
    %v4441 = vld [vmem:[%s13 + $0x58] sm:$0xff]
    %v4442 = vld [vmem:[%s13 + $0x60] sm:$0xff]
    %v4443 = vld [vmem:[%s13 + $0x68] sm:$0xff]
    %v4444 = vld [vmem:[%s13 + $0x70] sm:$0xff]
    %v4445 = vld [vmem:[%s13 + $0x78] sm:$0xff]
    %v4446 = vadd.f32 %v4398, %v4430
    %v4447 = vadd.f32 %v4399, %v4431
    %v4448 = vadd.f32 %v4400, %v4432
    %v4449 = vadd.f32 %v4401, %v4433
    %v4450 = vadd.f32 %v4402, %v4434
    %v4451 = vadd.f32 %v4403, %v4435
    %v4452 = vadd.f32 %v4404, %v4436
    %v4453 = vadd.f32 %v4405, %v4437
    %v4454 = vadd.f32 %v4406, %v4438
    %v4455 = vadd.f32 %v4407, %v4439
    %v4456 = vadd.f32 %v4408, %v4440
    %v4457 = vadd.f32 %v4409, %v4441
    %v4458 = vadd.f32 %v4410, %v4442
    %v4459 = vadd.f32 %v4411, %v4443
    %v4460 = vadd.f32 %v4412, %v4444
    %v4461 = vadd.f32 %v4413, %v4445
    %v4462 = vadd.f32 %v4414, %v4430
    %v4463 = vadd.f32 %v4415, %v4431
    %v4464 = vadd.f32 %v4416, %v4432
    %v4465 = vadd.f32 %v4417, %v4433
    %v4466 = vadd.f32 %v4418, %v4434
    %v4467 = vadd.f32 %v4419, %v4435
    %v4468 = vadd.f32 %v4420, %v4436
    %v4469 = vadd.f32 %v4421, %v4437
    %v4470 = vadd.f32 %v4422, %v4438
    %v4471 = vadd.f32 %v4423, %v4439
    %v4472 = vadd.f32 %v4424, %v4440
    %v4473 = vadd.f32 %v4425, %v4441
    %v4474 = vadd.f32 %v4426, %v4442
    %v4475 = vadd.f32 %v4427, %v4443
    %v4476 = vadd.f32 %v4428, %v4444
    %v4477 = vadd.f32 %v4429, %v4445
    %4478 = vxpose.xlu0.b32.start [1/16] %v4446, 128
    %4479 = vxpose.xlu0.b32.cont [2/16] %v4447, 128
    %4480 = vxpose.xlu0.b32.cont [3/16] %v4448, 128
    %4481 = vxpose.xlu0.b32.cont [4/16] %v4449, 128
    %4482 = vxpose.xlu0.b32.cont [5/16] %v4450, 128
    %4483 = vxpose.xlu0.b32.cont [6/16] %v4451, 128
    %4484 = vxpose.xlu0.b32.cont [7/16] %v4452, 128
    %4485 = vxpose.xlu0.b32.cont [8/16] %v4453, 128
    %4486 = vxpose.xlu0.b32.cont [9/16] %v4454, 128
    %4487 = vxpose.xlu0.b32.cont [10/16] %v4455, 128
    %4488 = vxpose.xlu0.b32.cont [11/16] %v4456, 128
    %4489 = vxpose.xlu0.b32.cont [12/16] %v4457, 128
    %4490 = vxpose.xlu0.b32.cont [13/16] %v4458, 128
    %4491 = vxpose.xlu0.b32.cont [14/16] %v4459, 128
    %4492 = vxpose.xlu0.b32.cont [15/16] %v4460, 128
    %4493 = vxpose.xlu0.b32.end [16/16] %v4461, 128
    %v4494 = vpop.trf.xlu0
    %v4495 = vpop.trf.xlu0
    %v4496 = vpop.trf.xlu0
    %v4497 = vpop.trf.xlu0
    %v4498 = vpop.trf.xlu0
    %v4499 = vpop.trf.xlu0
    %v4500 = vpop.trf.xlu0
    %v4501 = vpop.trf.xlu0
    %v4502 = vpop.trf.xlu0
    %v4503 = vpop.trf.xlu0
    %v4504 = vpop.trf.xlu0
    %v4505 = vpop.trf.xlu0
    %v4506 = vpop.trf.xlu0
    %v4507 = vpop.trf.xlu0
    %v4508 = vpop.trf.xlu0
    %v4509 = vpop.trf.xlu0
    %4510 = vxpose.xlu0.b32.start [1/16] %v4462, 128
    %4511 = vxpose.xlu0.b32.cont [2/16] %v4463, 128
    %4512 = vxpose.xlu0.b32.cont [3/16] %v4464, 128
    %4513 = vxpose.xlu0.b32.cont [4/16] %v4465, 128
    %4514 = vxpose.xlu0.b32.cont [5/16] %v4466, 128
    %4515 = vxpose.xlu0.b32.cont [6/16] %v4467, 128
    %4516 = vxpose.xlu0.b32.cont [7/16] %v4468, 128
    %4517 = vxpose.xlu0.b32.cont [8/16] %v4469, 128
    %4518 = vxpose.xlu0.b32.cont [9/16] %v4470, 128
    %4519 = vxpose.xlu0.b32.cont [10/16] %v4471, 128
    %4520 = vxpose.xlu0.b32.cont [11/16] %v4472, 128
    %4521 = vxpose.xlu0.b32.cont [12/16] %v4473, 128
    %4522 = vxpose.xlu0.b32.cont [13/16] %v4474, 128
    %4523 = vxpose.xlu0.b32.cont [14/16] %v4475, 128
    %4524 = vxpose.xlu0.b32.cont [15/16] %v4476, 128
    %4525 = vxpose.xlu0.b32.end [16/16] %v4477, 128
    %v4526 = vpop.trf.xlu0
    %v4527 = vpop.trf.xlu0
    %v4528 = vpop.trf.xlu0
    %v4529 = vpop.trf.xlu0
    %v4530 = vpop.trf.xlu0
    %v4531 = vpop.trf.xlu0
    %v4532 = vpop.trf.xlu0
    %v4533 = vpop.trf.xlu0
    %v4534 = vpop.trf.xlu0
    %v4535 = vpop.trf.xlu0
    %v4536 = vpop.trf.xlu0
    %v4537 = vpop.trf.xlu0
    %v4538 = vpop.trf.xlu0
    %v4539 = vpop.trf.xlu0
    %v4540 = vpop.trf.xlu0
    %v4541 = vpop.trf.xlu0
    %v4542 = vadd.f32 %v4494, %v48
    %v4543 = vadd.f32 %v4526, %v49
    %4544 = vst [vmem:[#allocation4] sm:$0xf] %v4542
    %4545 = vst [vmem:[#allocation4 + $0x4] sm:$0xf] %v4543
    // Predicated region
    $region65: #{tpu_custom_call.1} parent=1 // pred_check
      _
    $region66: #{tpu_custom_call.1} parent=1 // pred_check_branch
      %4547 = sbr.rel (0) target = $region68
    $region67: #{tpu_custom_call.1} parent=1 // pred_region
      %s4549 = ssub.s32 128, 128
      %4550 = vsyncadd [#allocation5], %s4549
      %s4551 = sshll.u32 [#allocation4], 4
      %s4552 = int_to_ptr.vmem [resolvable:$true] %s4551
      %4557 = dma.vmem_to_hbm [thread:$0]  %s4552, 128, %s14, [#allocation5], 64, 64, 4
    $region68: #{tpu_custom_call.1} parent=1 // pred_fallthru
      _
    // Predicated region
    $region69: #{tpu_custom_call.1} parent=1 // pred_check
      _
    $region70: #{tpu_custom_call.1} parent=1 // pred_check_branch
      %4559 = sbr.rel (0) target = $region72
    $region71: #{tpu_custom_call.1} parent=1 // pred_region
      %4560 = dma.done [#allocation5], 128
    $region72: #{tpu_custom_call.1} parent=1 // pred_fallthru
      _
    %4561 = vsyncpa [#allocation5], 1

</llo_original>
